<compile_context>
chip_gen: v6e
topology: v6e:2x2x1
jax: 0.10.0
libtpu: 0.0.40
codegen_flags: <defaults>
</compile_context>

<pallas_src>
import functools

import jax
import jax.numpy as jnp
from jax.experimental import pallas as pl
from jax.experimental.pallas import tpu as pltpu


def _round_up(x, m):
    return (x + m - 1) // m * m


# ---------------------------------------------------------------------------
# Pallas kernel: one (tm, tn) output tile = ReLU( sum_t shift_t(x) @ W_t + bias )
# ---------------------------------------------------------------------------
def _repvgg_fused_kernel(xa_ref, xh_ref, w_ref, b_ref, o_ref, win_ref,
                         *, tm, halo2, offsets):
    # Assemble the row window [i*tm, i*tm + tm + 2*halo) in VMEM:
    # main (tm, Cin) block + the small halo block gathered by the wrapper.
    win_ref[0:tm, :] = xa_ref[...]
    win_ref[tm:tm + halo2, :] = xh_ref[0]

    # Nine accumulated matmuls over statically shifted views of the window.
    acc = jnp.dot(win_ref[offsets[0]:offsets[0] + tm, :], w_ref[0],
                  preferred_element_type=jnp.float32)
    for t in range(1, 9):
        off = offsets[t]
        acc = acc + jnp.dot(win_ref[off:off + tm, :], w_ref[t],
                            preferred_element_type=jnp.float32)

    o_ref[...] = jnp.maximum(acc + b_ref[...], 0.0).astype(o_ref.dtype)


# ---------------------------------------------------------------------------
# Branch fusion (RepVGG algebra, eval-mode BN): one 3x3 kernel + one bias.
# ---------------------------------------------------------------------------
def _fuse_repvgg_params(params, eps=1e-5):
    w3 = params["w3"]                      # (Cout, Cin, 3, 3), OIHW
    w1 = params["w1"]                      # (Cout, Cin, 1, 1)
    Cout, Cin = w3.shape[0], w3.shape[1]

    def scale_shift(g, b, m, v):
        s = g / jnp.sqrt(v + eps)
        return s, b - m * s

    s3, t3 = scale_shift(params["bn3_g"], params["bn3_b"], params["bn3_m"], params["bn3_v"])
    s1, t1 = scale_shift(params["bn1_g"], params["bn1_b"], params["bn1_m"], params["bn1_v"])

    k = w3 * s3[:, None, None, None]
    k = k.at[:, :, 1, 1].add(w1[:, :, 0, 0] * s1[:, None])
    bias = t3 + t1
    if Cin == Cout and "bnid_g" in params:
        sid, tid = scale_shift(params["bnid_g"], params["bnid_b"],
                               params["bnid_m"], params["bnid_v"])
        k = k.at[jnp.arange(Cout), jnp.arange(Cout), 1, 1].add(sid)
        bias = bias + tid
    return k, bias


# ---------------------------------------------------------------------------
# RepVGGBlock forward (kernel_size=3, stride=1, padding=1, groups=1, deploy=False).
# ---------------------------------------------------------------------------
@functools.partial(jax.jit, static_argnames=("tm", "tn"))
def repvgg_block_forward(x_nchw, params, tm=512, tn=128):
    N, Cin, H, W = x_nchw.shape
    Cout = params["w3"].shape[0]

    k, bias = _fuse_repvgg_params(params)                   # (Cout, Cin, 3, 3), (Cout,)

    # Lane-dense output: pad Cout up to a multiple of 128.
    coutp = _round_up(Cout, 128)
    # Wmat[dy*3+dx, cin, cout]
    wmat = jnp.transpose(k, (2, 3, 1, 0)).reshape(9, Cin, Cout)
    wmat = jnp.pad(wmat, ((0, 0), (0, 0), (0, coutp - Cout))).astype(jnp.bfloat16)
    bias_p = jnp.pad(bias, (0, coutp - Cout)).reshape(1, coutp).astype(jnp.float32)

    # NCHW -> NHWC (bf16), pad 1 row top/bottom and 1 zero column on the right,
    # flatten to a (rows, Cin) slab.  A 3x3 tap becomes a pure row shift by
    # delta = (dy-1)*(W+1) + (dx-1); out-of-image taps land on zero rows / the
    # zero column by construction.
    x_nhwc = jnp.transpose(x_nchw, (0, 2, 3, 1)).astype(jnp.bfloat16)
    xpad = jnp.pad(x_nhwc, ((0, 0), (1, 1), (0, 1), (0, 0)))   # (N, H+2, W+1, Cin)
    mp = N * (H + 2) * (W + 1)
    xflat = xpad.reshape(mp, Cin)

    halo = W + 2                       # max |row shift|
    halo2 = 2 * halo
    mp_r = _round_up(mp, tm)
    n_row_tiles = mp_r // tm
    n_col_tiles = coutp // tn

    # slab with halo zeros in front + tail padding up to the tile grid (+ trailing halo)
    xs = jnp.pad(xflat, ((halo, mp_r - mp + halo), (0, 0)))    # (mp_r + 2*halo, Cin)
    # per-tile halo rows: the 2*halo rows immediately after each main block
    hidx = (jnp.arange(n_row_tiles)[:, None] + 1) * tm + jnp.arange(halo2)[None, :]
    xhalo = xs[hidx]                                           # (tiles, 2*halo, Cin)

    # tap t = dy*3+dx reads window rows [dy*(W+1)+dx : dy*(W+1)+dx + tm)
    offsets = tuple(dy * (W + 1) + dx for dy in range(3) for dx in range(3))

    kernel = functools.partial(_repvgg_fused_kernel, tm=tm, halo2=halo2, offsets=offsets)

    out_flat = pl.pallas_call(
        kernel,
        out_shape=jax.ShapeDtypeStruct((mp_r, coutp), jnp.float32),
        grid_spec=pltpu.PrefetchScalarGridSpec(
            num_scalar_prefetch=0,
            grid=(n_row_tiles, n_col_tiles),
            in_specs=[
                pl.BlockSpec((tm, Cin), lambda i, j: (i, 0)),           # main row block
                pl.BlockSpec((1, halo2, Cin), lambda i, j: (i, 0, 0)),  # its halo rows
                pl.BlockSpec((9, Cin, tn), lambda i, j: (0, 0, j)),     # fused weights
                pl.BlockSpec((1, tn), lambda i, j: (0, j)),             # fused bias
            ],
            out_specs=pl.BlockSpec((tm, tn), lambda i, j: (i, j)),
            scratch_shapes=[
                pltpu.VMEM((tm + halo2, Cin), jnp.bfloat16),   # assembled row window
            ],
        ),
        compiler_params=pltpu.CompilerParams(
            dimension_semantics=("parallel", "parallel"),
            vmem_limit_bytes=64 * 1024 * 1024,
        ),
    )(xs, xhalo, wmat, bias_p)

    out = out_flat[:mp, :Cout].reshape(N, H + 2, W + 1, Cout)[:, 1:H + 1, :W, :]
    return jnp.transpose(out, (0, 3, 1, 2))                    # back to NCHW


def rep_block_forward(x, block_params_list):
    """RepBlock.forward: conv1 followed by the (n-1) trailing RepVGGBlocks."""
    for p in block_params_list:
        x = repvgg_block_forward(x, p)
    return x


# ---------------------------------------------------------------------------
# References for checking.
# ---------------------------------------------------------------------------
def repvgg_block_reference(x, params):
    """Pure-JAX mirror of the PyTorch forward (training branches, eval-mode BN), f32."""
    def conv(x, w, pad):
        return jax.lax.conv_general_dilated(
            x, w, window_strides=(1, 1), padding=[(pad, pad), (pad, pad)],
            dimension_numbers=("NCHW", "OIHW", "NCHW"),
            precision=jax.lax.Precision.HIGHEST)

    def bn(y, g, b, m, v, eps=1e-5):
        s = g / jnp.sqrt(v + eps)
        return y * s[None, :, None, None] + (b - m * s)[None, :, None, None]

    Cout, Cin = params["w3"].shape[:2]
    y = bn(conv(x, params["w3"], 1), params["bn3_g"], params["bn3_b"],
           params["bn3_m"], params["bn3_v"])
    y = y + bn(conv(x, params["w1"], 0), params["bn1_g"], params["bn1_b"],
               params["bn1_m"], params["bn1_v"])
    if Cin == Cout and "bnid_g" in params:
        y = y + bn(x, params["bnid_g"], params["bnid_b"],
                   params["bnid_m"], params["bnid_v"])
    return jnp.maximum(y, 0.0)


def repvgg_block_reference_bf16(x, params):
    """Same math as the kernel (fused weights, bf16-rounded operands, f32 accumulation)."""
    k, bias = _fuse_repvgg_params(params)
    xq = x.astype(jnp.bfloat16).astype(jnp.float32)
    kq = k.astype(jnp.bfloat16).astype(jnp.float32)
    y = jax.lax.conv_general_dilated(
        xq, kq, window_strides=(1, 1), padding=[(1, 1), (1, 1)],
        dimension_numbers=("NCHW", "OIHW", "NCHW"),
        precision=jax.lax.Precision.HIGHEST)
    return jnp.maximum(y + bias[None, :, None, None], 0.0)


def make_repvgg_params(key, cin, cout):
    keys = jax.random.split(key, 12)
    p = {
        "w3": jax.random.normal(keys[0], (cout, cin, 3, 3), jnp.float32) * 0.1,
        "w1": jax.random.normal(keys[1], (cout, cin, 1, 1), jnp.float32) * 0.1,
        "bn3_g": 1.0 + 0.1 * jax.random.normal(keys[2], (cout,), jnp.float32),
        "bn3_b": 0.1 * jax.random.normal(keys[3], (cout,), jnp.float32),
        "bn3_m": 0.1 * jax.random.normal(keys[4], (cout,), jnp.float32),
        "bn3_v": 1.0 + 0.1 * jnp.abs(jax.random.normal(keys[5], (cout,), jnp.float32)),
        "bn1_g": 1.0 + 0.1 * jax.random.normal(keys[6], (cout,), jnp.float32),
        "bn1_b": 0.1 * jax.random.normal(keys[7], (cout,), jnp.float32),
        "bn1_m": 0.1 * jax.random.normal(keys[8], (cout,), jnp.float32),
        "bn1_v": 1.0 + 0.1 * jnp.abs(jax.random.normal(keys[9], (cout,), jnp.float32)),
    }
    if cin == cout:  # identity BN branch exists only when shapes match
        p.update({
            "bnid_g": 1.0 + 0.1 * jax.random.normal(keys[10], (cout,), jnp.float32),
            "bnid_b": 0.1 * jax.random.normal(keys[11], (cout,), jnp.float32),
            "bnid_m": jnp.zeros((cout,), jnp.float32),
            "bnid_v": jnp.ones((cout,), jnp.float32),
        })
    return p


if __name__ == "__main__":
    key = jax.random.PRNGKey(0)
    kx, k1, k2, k3 = jax.random.split(key, 4)

    # Case 1: RepBlock(in=4, out=4, n=2) == conv1 RepVGGBlock + one trailing RepVGGBlock.
    x = jax.random.normal(kx, (2, 4, 16, 16), jnp.float32)
    params_a = make_repvgg_params(k1, 4, 4)
    params_b = make_repvgg_params(k3, 4, 4)
    out = jax.block_until_ready(rep_block_forward(x, [params_a, params_b]))
    assert out.shape == (2, 4, 16, 16)
    # Per-block checks against kernel-equivalent math (tight) + full-precision semantics.
    y1 = jax.block_until_ready(repvgg_block_forward(x, params_a))
    ref1_q = repvgg_block_reference_bf16(x, params_a)
    ref1 = repvgg_block_reference(x, params_a)
    assert jnp.allclose(y1, ref1_q, atol=1e-2, rtol=1e-2), float(jnp.max(jnp.abs(y1 - ref1_q)))
    assert jnp.allclose(y1, ref1, atol=1e-1, rtol=1e-1), float(jnp.max(jnp.abs(y1 - ref1)))
    ref2_q = repvgg_block_reference_bf16(ref1_q, params_b)
    assert jnp.allclose(out, ref2_q, atol=3e-2, rtol=3e-2), float(jnp.max(jnp.abs(out - ref2_q)))

    # Case 2: Cin != Cout (no identity branch) exercises the other fusion path.
    x2 = jax.random.normal(k2, (1, 4, 8, 8), jnp.float32)
    params2 = make_repvgg_params(jax.random.fold_in(k1, 7), 4, 8)
    out2 = jax.block_until_ready(repvgg_block_forward(x2, params2))
    assert out2.shape == (1, 8, 8, 8)
    ref3_q = repvgg_block_reference_bf16(x2, params2)
    assert jnp.allclose(out2, ref3_q, atol=1e-2, rtol=1e-2), float(jnp.max(jnp.abs(out2 - ref3_q)))

    print("KERNEL_OK")
</pallas_src>

<mosaic_0001>
module attributes {stable_mosaic.version = 11 : i64} {
  func.func @_repvgg_fused_kernel(%arg0: i32, %arg1: i32, %arg2: memref<512x4xbf16, #tpu.memory_space<vmem>>, %arg3: memref<1x36x4xbf16, #tpu.memory_space<vmem>>, %arg4: memref<9x4x128xbf16, #tpu.memory_space<vmem>>, %arg5: memref<1x128xf32, #tpu.memory_space<vmem>>, %arg6: memref<512x128xf32, #tpu.memory_space<vmem>>, %arg7: memref<548x4xbf16, #tpu.memory_space<vmem>>) attributes {dimension_semantics = [#tpu.dimension_semantics<parallel>, #tpu.dimension_semantics<parallel>], iteration_bounds = array<i64: 2, 1>, scalar_prefetch = 0 : i64, scratch_operands = 1 : i64, tpu.core_type = #tpu.core_type<tc>, window_params = [{transform_indices = @transform_0, window_bounds = array<i64: 512, 4>}, {transform_indices = @transform_1, window_bounds = array<i64: 1, 36, 4>}, {transform_indices = @transform_2, window_bounds = array<i64: 9, 4, 128>}, {transform_indices = @transform_3, window_bounds = array<i64: 1, 128>}, {transform_indices = @transform_4, window_bounds = array<i64: 512, 128>}]} {
    %c0 = arith.constant 0 : index
    %c0_0 = arith.constant 0 : index
    %0 = vector.load %arg2[%c0, %c0_0] : memref<512x4xbf16, #tpu.memory_space<vmem>>, vector<512x4xbf16>
    %c0_1 = arith.constant 0 : index
    %c0_2 = arith.constant 0 : index
    %1 = vector.load %arg7[%c0_1, %c0_2] : memref<548x4xbf16, #tpu.memory_space<vmem>>, vector<512x4xbf16>
    tpu.vector_store %arg7[%c0_1, %c0_2], %0 {strides = array<i32>} : memref<548x4xbf16, #tpu.memory_space<vmem>>, vector<512x4xbf16>,
    %c0_3 = arith.constant 0 : index
    %c0_4 = arith.constant 0 : index
    %c0_5 = arith.constant 0 : index
    %2 = vector.load %arg3[%c0_3, %c0_4, %c0_5] : memref<1x36x4xbf16, #tpu.memory_space<vmem>>, vector<1x36x4xbf16>
    %3 = vector.shape_cast %2 : vector<1x36x4xbf16> to vector<36x4xbf16>
    %c512 = arith.constant 512 : index
    %c0_6 = arith.constant 0 : index
    %4 = vector.load %arg7[%c512, %c0_6] : memref<548x4xbf16, #tpu.memory_space<vmem>>, vector<36x4xbf16>
    tpu.vector_store %arg7[%c512, %c0_6], %3 {strides = array<i32>} : memref<548x4xbf16, #tpu.memory_space<vmem>>, vector<36x4xbf16>,
    %c0_7 = arith.constant 0 : index
    %c0_8 = arith.constant 0 : index
    %5 = vector.load %arg7[%c0_7, %c0_8] : memref<548x4xbf16, #tpu.memory_space<vmem>>, vector<512x4xbf16>
    %c0_9 = arith.constant 0 : index
    %c0_10 = arith.constant 0 : index
    %c0_11 = arith.constant 0 : index
    %6 = vector.load %arg4[%c0_9, %c0_10, %c0_11] : memref<9x4x128xbf16, #tpu.memory_space<vmem>>, vector<1x4x128xbf16>
    %7 = vector.shape_cast %6 : vector<1x4x128xbf16> to vector<4x128xbf16>
    %cst = arith.constant dense<0.000000e+00> : vector<512x128xf32>
    %8 = tpu.matmul %5, %7, %cst {dimension_numbers = #tpu.dot_dimension_numbers<[1], [0], [0], [1], [0, 0, 1, 1], [], []>} : vector<512x4xbf16>, vector<4x128xbf16>, vector<512x128xf32> -> vector<512x128xf32>
    %c1 = arith.constant 1 : index
    %c0_12 = arith.constant 0 : index
    %9 = vector.load %arg7[%c1, %c0_12] : memref<548x4xbf16, #tpu.memory_space<vmem>>, vector<512x4xbf16>
    %c1_13 = arith.constant 1 : index
    %c0_14 = arith.constant 0 : index
    %c0_15 = arith.constant 0 : index
    %10 = vector.load %arg4[%c1_13, %c0_14, %c0_15] : memref<9x4x128xbf16, #tpu.memory_space<vmem>>, vector<1x4x128xbf16>
    %11 = vector.shape_cast %10 : vector<1x4x128xbf16> to vector<4x128xbf16>
    %cst_16 = arith.constant dense<0.000000e+00> : vector<512x128xf32>
    %12 = tpu.matmul %9, %11, %cst_16 {dimension_numbers = #tpu.dot_dimension_numbers<[1], [0], [0], [1], [0, 0, 1, 1], [], []>} : vector<512x4xbf16>, vector<4x128xbf16>, vector<512x128xf32> -> vector<512x128xf32>
    %13 = arith.addf %8, %12 : vector<512x128xf32>
    %c2 = arith.constant 2 : index
    %c0_17 = arith.constant 0 : index
    %14 = vector.load %arg7[%c2, %c0_17] : memref<548x4xbf16, #tpu.memory_space<vmem>>, vector<512x4xbf16>
    %c2_18 = arith.constant 2 : index
    %c0_19 = arith.constant 0 : index
    %c0_20 = arith.constant 0 : index
    %15 = vector.load %arg4[%c2_18, %c0_19, %c0_20] : memref<9x4x128xbf16, #tpu.memory_space<vmem>>, vector<1x4x128xbf16>
    %16 = vector.shape_cast %15 : vector<1x4x128xbf16> to vector<4x128xbf16>
    %cst_21 = arith.constant dense<0.000000e+00> : vector<512x128xf32>
    %17 = tpu.matmul %14, %16, %cst_21 {dimension_numbers = #tpu.dot_dimension_numbers<[1], [0], [0], [1], [0, 0, 1, 1], [], []>} : vector<512x4xbf16>, vector<4x128xbf16>, vector<512x128xf32> -> vector<512x128xf32>
    %18 = arith.addf %13, %17 : vector<512x128xf32>
    %c17 = arith.constant 17 : index
    %c0_22 = arith.constant 0 : index
    %19 = vector.load %arg7[%c17, %c0_22] : memref<548x4xbf16, #tpu.memory_space<vmem>>, vector<512x4xbf16>
    %c3 = arith.constant 3 : index
    %c0_23 = arith.constant 0 : index
    %c0_24 = arith.constant 0 : index
    %20 = vector.load %arg4[%c3, %c0_23, %c0_24] : memref<9x4x128xbf16, #tpu.memory_space<vmem>>, vector<1x4x128xbf16>
    %21 = vector.shape_cast %20 : vector<1x4x128xbf16> to vector<4x128xbf16>
    %cst_25 = arith.constant dense<0.000000e+00> : vector<512x128xf32>
    %22 = tpu.matmul %19, %21, %cst_25 {dimension_numbers = #tpu.dot_dimension_numbers<[1], [0], [0], [1], [0, 0, 1, 1], [], []>} : vector<512x4xbf16>, vector<4x128xbf16>, vector<512x128xf32> -> vector<512x128xf32>
    %23 = arith.addf %18, %22 : vector<512x128xf32>
    %c18 = arith.constant 18 : index
    %c0_26 = arith.constant 0 : index
    %24 = vector.load %arg7[%c18, %c0_26] : memref<548x4xbf16, #tpu.memory_space<vmem>>, vector<512x4xbf16>
    %c4 = arith.constant 4 : index
    %c0_27 = arith.constant 0 : index
    %c0_28 = arith.constant 0 : index
    %25 = vector.load %arg4[%c4, %c0_27, %c0_28] : memref<9x4x128xbf16, #tpu.memory_space<vmem>>, vector<1x4x128xbf16>
    %26 = vector.shape_cast %25 : vector<1x4x128xbf16> to vector<4x128xbf16>
    %cst_29 = arith.constant dense<0.000000e+00> : vector<512x128xf32>
    %27 = tpu.matmul %24, %26, %cst_29 {dimension_numbers = #tpu.dot_dimension_numbers<[1], [0], [0], [1], [0, 0, 1, 1], [], []>} : vector<512x4xbf16>, vector<4x128xbf16>, vector<512x128xf32> -> vector<512x128xf32>
    %28 = arith.addf %23, %27 : vector<512x128xf32>
    %c19 = arith.constant 19 : index
    %c0_30 = arith.constant 0 : index
    %29 = vector.load %arg7[%c19, %c0_30] : memref<548x4xbf16, #tpu.memory_space<vmem>>, vector<512x4xbf16>
    %c5 = arith.constant 5 : index
    %c0_31 = arith.constant 0 : index
    %c0_32 = arith.constant 0 : index
    %30 = vector.load %arg4[%c5, %c0_31, %c0_32] : memref<9x4x128xbf16, #tpu.memory_space<vmem>>, vector<1x4x128xbf16>
    %31 = vector.shape_cast %30 : vector<1x4x128xbf16> to vector<4x128xbf16>
    %cst_33 = arith.constant dense<0.000000e+00> : vector<512x128xf32>
    %32 = tpu.matmul %29, %31, %cst_33 {dimension_numbers = #tpu.dot_dimension_numbers<[1], [0], [0], [1], [0, 0, 1, 1], [], []>} : vector<512x4xbf16>, vector<4x128xbf16>, vector<512x128xf32> -> vector<512x128xf32>
    %33 = arith.addf %28, %32 : vector<512x128xf32>
    %c34 = arith.constant 34 : index
    %c0_34 = arith.constant 0 : index
    %34 = vector.load %arg7[%c34, %c0_34] : memref<548x4xbf16, #tpu.memory_space<vmem>>, vector<512x4xbf16>
    %c6 = arith.constant 6 : index
    %c0_35 = arith.constant 0 : index
    %c0_36 = arith.constant 0 : index
    %35 = vector.load %arg4[%c6, %c0_35, %c0_36] : memref<9x4x128xbf16, #tpu.memory_space<vmem>>, vector<1x4x128xbf16>
    %36 = vector.shape_cast %35 : vector<1x4x128xbf16> to vector<4x128xbf16>
    %cst_37 = arith.constant dense<0.000000e+00> : vector<512x128xf32>
    %37 = tpu.matmul %34, %36, %cst_37 {dimension_numbers = #tpu.dot_dimension_numbers<[1], [0], [0], [1], [0, 0, 1, 1], [], []>} : vector<512x4xbf16>, vector<4x128xbf16>, vector<512x128xf32> -> vector<512x128xf32>
    %38 = arith.addf %33, %37 : vector<512x128xf32>
    %c35 = arith.constant 35 : index
    %c0_38 = arith.constant 0 : index
    %39 = vector.load %arg7[%c35, %c0_38] : memref<548x4xbf16, #tpu.memory_space<vmem>>, vector<512x4xbf16>
    %c7 = arith.constant 7 : index
    %c0_39 = arith.constant 0 : index
    %c0_40 = arith.constant 0 : index
    %40 = vector.load %arg4[%c7, %c0_39, %c0_40] : memref<9x4x128xbf16, #tpu.memory_space<vmem>>, vector<1x4x128xbf16>
    %41 = vector.shape_cast %40 : vector<1x4x128xbf16> to vector<4x128xbf16>
    %cst_41 = arith.constant dense<0.000000e+00> : vector<512x128xf32>
    %42 = tpu.matmul %39, %41, %cst_41 {dimension_numbers = #tpu.dot_dimension_numbers<[1], [0], [0], [1], [0, 0, 1, 1], [], []>} : vector<512x4xbf16>, vector<4x128xbf16>, vector<512x128xf32> -> vector<512x128xf32>
    %43 = arith.addf %38, %42 : vector<512x128xf32>
    %c36 = arith.constant 36 : index
    %c0_42 = arith.constant 0 : index
    %44 = vector.load %arg7[%c36, %c0_42] : memref<548x4xbf16, #tpu.memory_space<vmem>>, vector<512x4xbf16>
    %c8 = arith.constant 8 : index
    %c0_43 = arith.constant 0 : index
    %c0_44 = arith.constant 0 : index
    %45 = vector.load %arg4[%c8, %c0_43, %c0_44] : memref<9x4x128xbf16, #tpu.memory_space<vmem>>, vector<1x4x128xbf16>
    %46 = vector.shape_cast %45 : vector<1x4x128xbf16> to vector<4x128xbf16>
    %cst_45 = arith.constant dense<0.000000e+00> : vector<512x128xf32>
    %47 = tpu.matmul %44, %46, %cst_45 {dimension_numbers = #tpu.dot_dimension_numbers<[1], [0], [0], [1], [0, 0, 1, 1], [], []>} : vector<512x4xbf16>, vector<4x128xbf16>, vector<512x128xf32> -> vector<512x128xf32>
    %48 = arith.addf %43, %47 : vector<512x128xf32>
    %c0_46 = arith.constant 0 : index
    %c0_47 = arith.constant 0 : index
    %49 = vector.load %arg5[%c0_46, %c0_47] : memref<1x128xf32, #tpu.memory_space<vmem>>, vector<1x128xf32>
    %50 = vector.broadcast %49 : vector<1x128xf32> to vector<512x128xf32>
    %51 = arith.addf %48, %50 : vector<512x128xf32>
    %cst_48 = arith.constant 0.000000e+00 : f32
    %52 = vector.broadcast %cst_48 : f32 to vector<512x128xf32>
    %53 = arith.maximumf %51, %52 : vector<512x128xf32>
    %c0_49 = arith.constant 0 : index
    %c0_50 = arith.constant 0 : index
    %54 = vector.load %arg6[%c0_49, %c0_50] : memref<512x128xf32, #tpu.memory_space<vmem>>, vector<512x128xf32>
    tpu.vector_store %arg6[%c0_49, %c0_50], %53 {strides = array<i32>} : memref<512x128xf32, #tpu.memory_space<vmem>>, vector<512x128xf32>,
    return
  }
  func.func @transform_0(%arg0: i32, %arg1: i32) -> (i32, i32) {
    %c0_i32 = arith.constant 0 : i32
    %c0_i32_0 = arith.constant 0 : i32
    return %arg0, %c0_i32 : i32, i32
  }
  func.func @transform_1(%arg0: i32, %arg1: i32) -> (i32, i32, i32) {
    %c0_i32 = arith.constant 0 : i32
    %c0_i32_0 = arith.constant 0 : i32
    %c0_i32_1 = arith.constant 0 : i32
    return %arg0, %c0_i32, %c0_i32_0 : i32, i32, i32
  }
  func.func @transform_2(%arg0: i32, %arg1: i32) -> (i32, i32, i32) {
    %c0_i32 = arith.constant 0 : i32
    %c0_i32_0 = arith.constant 0 : i32
    %c0_i32_1 = arith.constant 0 : i32
    return %c0_i32, %c0_i32_0, %arg1 : i32, i32, i32
  }
  func.func @transform_3(%arg0: i32, %arg1: i32) -> (i32, i32) {
    %c0_i32 = arith.constant 0 : i32
    %c0_i32_0 = arith.constant 0 : i32
    return %c0_i32, %arg1 : i32, i32
  }
  func.func @transform_4(%arg0: i32, %arg1: i32) -> (i32, i32) {
    %c0_i32 = arith.constant 0 : i32
    return %arg0, %arg1 : i32, i32
  }
}

</mosaic_0001>

<llo_original>
// kernel: repvgg_block_forward.1
$region0: #{repvgg_block_forward.1}
  #allocation0 [shape = 'u32[]', space=smem, size = 0x4, offset = 0x4, fixed_abs, tag = 'smem constant byte address 0x4 - core index']
  #allocation1 [shape = 'u32[144,128]{1,0:T(1,128)}', space=vmem, size = 0x12000, scoped, tag = 'internal scratch']
  #allocation2 [shape = 'bf16[548,4]{1,0:T(8,128)(2,1)}', space=vmem, size = 0x22800, scoped, tag = 'scratch operand']
  %s0 = inlined_call_operand.vmem [shape: bf16[1060,4], index: 0, kind: input, shape index: {}]
  %s1 = inlined_call_operand.vmem [shape: bf16[2,36,4], index: 1, kind: input, shape index: {}]
  %s2 = inlined_call_operand.vmem [shape: bf16[9,4,128], index: 2, kind: input, shape index: {}]
  %s3 = inlined_call_operand.vmem [shape: f32[1,128], index: 3, kind: input, shape index: {}]
  %s4 = inlined_call_operand.vmem [shape: f32[1024,128], index: 4, kind: output, shape index: {}]
  %s5 = sld [smem:[#allocation0]]
  $region49: #{repvgg_block_forward.1} parent=0
    _
  %s7 = ssub.s32 1, %s5
  %s8 = scalar_select 0, %s7, %s5
  loop: start=0, step=1, limit=4
  $region2: #{repvgg_block_forward.1} parent=0 // loop_pre_header
    _
  $region3: #{repvgg_block_forward.1} parent=0 // loop_header
    %s10 = sphi 0, %s14
    %p11 = scmp.ge.s32.totalorder %s10, 4
    %s17 = sphi 0, %s29
    %s18 = sphi 0, %s25
    %s19 = sphi 0, %s17
    %s20 = sphi 0, %s18
    %s21 = sphi 0, %s19
    %s22 = sphi 0, %s20
    %s32 = sphi 0, %s34
    %s35 = sphi 0, %s32
    %s36 = sphi 0, %s35
    %s52 = sphi 0, %s36
    %s58 = sphi 0, %s60
    %s61 = sphi 0, %s58
    %s62 = sphi 0, %s61
    %s78 = sphi 0, %s62
    %s84 = sphi 0, %s86
    %s87 = sphi 0, %s84
    %s88 = sphi 0, %s87
    %s104 = sphi 0, %s88
    %s110 = sphi 0, %s112
    %s113 = sphi 0, %s110
    %s114 = sphi 0, %s113
    %s130 = sphi 0, %s114
    %s138 = sphi 0, %s140
    %s141 = sphi 0, %s138
    %s142 = sphi 0, %s141
    %s158 = sphi 0, %s142
  $region4: #{repvgg_block_forward.1} parent=0 // loop_header_branch
    %13 = sbr.rel (%p11) target = $region8
  $region5: #{repvgg_block_forward.1} parent=0 // loop_body
    %s15 = ssub.s32 %s10, 1
    %s16 = ssub.s32 %s10, 2
    %s23 = sadd.s32 1, %s18
    %p24 = scmp.ge.s32.totalorder %s23, 1
    %s25 = scalar_select %p24, 0, %s23
    %s26 = sadd.s32 1, %s17
    %s27 = scalar_select %p24, %s26, %s17
    %p28 = scmp.ge.s32.totalorder %s27, 2
    %s29 = scalar_select %p28, 0, %s27
    %s30 = ssub.s32 %s17, %s29
    %p31 = scmp.eq.s32.totalorder %s30, 0
    %s33 = sadd.s32 %s32, 1
    %s34 = scalar_select %p31, %s32, %s33
    %p37 = pneg %p31
    %p38 = scmp.eq.s32.totalorder %s10, 1
    %p39 = por %p37, %p38
    %p40 = scmp.ne.s32.totalorder %s32, %s35
    %p41 = scmp.eq.s32.totalorder %s10, 0
    %p42 = por %p40, %p41
    %p43 = scmp.ne.s32.totalorder %s32, %s35
    %p44 = scmp.eq.s32.totalorder %s15, 1
    %p45 = por %p43, %p44
    %p46 = scmp.ne.s32.totalorder %s35, %s36
    %p47 = scmp.eq.s32.totalorder %s15, 0
    %p48 = por %p46, %p47
    %p49 = scmp.ne.s32.totalorder %s35, %s36
    %p50 = scmp.eq.s32.totalorder %s16, 1
    %p51 = por %p49, %p50
    %p53 = scmp.ne.s32.totalorder %s36, %s52
    %p54 = scmp.eq.s32.totalorder %s16, 0
    %p55 = por %p53, %p54
    %s56 = ssub.s32 %s17, %s29
    %p57 = scmp.eq.s32.totalorder %s56, 0
    %s59 = sadd.s32 %s58, 1
    %s60 = scalar_select %p57, %s58, %s59
    %p63 = pneg %p57
    %p64 = scmp.eq.s32.totalorder %s10, 1
    %p65 = por %p63, %p64
    %p66 = scmp.ne.s32.totalorder %s58, %s61
    %p67 = scmp.eq.s32.totalorder %s10, 0
    %p68 = por %p66, %p67
    %p69 = scmp.ne.s32.totalorder %s58, %s61
    %p70 = scmp.eq.s32.totalorder %s15, 1
    %p71 = por %p69, %p70
    %p72 = scmp.ne.s32.totalorder %s61, %s62
    %p73 = scmp.eq.s32.totalorder %s15, 0
    %p74 = por %p72, %p73
    %p75 = scmp.ne.s32.totalorder %s61, %s62
    %p76 = scmp.eq.s32.totalorder %s16, 1
    %p77 = por %p75, %p76
    %p79 = scmp.ne.s32.totalorder %s62, %s78
    %p80 = scmp.eq.s32.totalorder %s16, 0
    %p81 = por %p79, %p80
    %s82 = ssub.s32 %s18, %s25
    %p83 = scmp.eq.s32.totalorder %s82, 0
    %s85 = sadd.s32 %s84, 1
    %s86 = scalar_select %p83, %s84, %s85
    %p89 = pneg %p83
    %p90 = scmp.eq.s32.totalorder %s10, 1
    %p91 = por %p89, %p90
    %p92 = scmp.ne.s32.totalorder %s84, %s87
    %p93 = scmp.eq.s32.totalorder %s10, 0
    %p94 = por %p92, %p93
    %p95 = scmp.ne.s32.totalorder %s84, %s87
    %p96 = scmp.eq.s32.totalorder %s15, 1
    %p97 = por %p95, %p96
    %p98 = scmp.ne.s32.totalorder %s87, %s88
    %p99 = scmp.eq.s32.totalorder %s15, 0
    %p100 = por %p98, %p99
    %p101 = scmp.ne.s32.totalorder %s87, %s88
    %p102 = scmp.eq.s32.totalorder %s16, 1
    %p103 = por %p101, %p102
    %p105 = scmp.ne.s32.totalorder %s88, %s104
    %p106 = scmp.eq.s32.totalorder %s16, 0
    %p107 = por %p105, %p106
    %s108 = ssub.s32 %s18, %s25
    %p109 = scmp.eq.s32.totalorder %s108, 0
    %s111 = sadd.s32 %s110, 1
    %s112 = scalar_select %p109, %s110, %s111
    %p115 = pneg %p109
    %p116 = scmp.eq.s32.totalorder %s10, 1
    %p117 = por %p115, %p116
    %p118 = scmp.ne.s32.totalorder %s110, %s113
    %p119 = scmp.eq.s32.totalorder %s10, 0
    %p120 = por %p118, %p119
    %p121 = scmp.ne.s32.totalorder %s110, %s113
    %p122 = scmp.eq.s32.totalorder %s15, 1
    %p123 = por %p121, %p122
    %p124 = scmp.ne.s32.totalorder %s113, %s114
    %p125 = scmp.eq.s32.totalorder %s15, 0
    %p126 = por %p124, %p125
    %p127 = scmp.ne.s32.totalorder %s113, %s114
    %p128 = scmp.eq.s32.totalorder %s16, 1
    %p129 = por %p127, %p128
    %p131 = scmp.ne.s32.totalorder %s114, %s130
    %p132 = scmp.eq.s32.totalorder %s16, 0
    %p133 = por %p131, %p132
    %s134 = ssub.s32 %s17, %s29
    %s135 = ssub.s32 %s18, %s25
    %s136 = sor.u32 %s134, %s135
    %p137 = scmp.eq.s32.totalorder %s136, 0
    %s139 = sadd.s32 %s138, 1
    %s140 = scalar_select %p137, %s138, %s139
    %p143 = pneg %p137
    %p144 = scmp.eq.s32.totalorder %s10, 1
    %p145 = por %p143, %p144
    %p146 = scmp.ne.s32.totalorder %s138, %s141
    %p147 = scmp.eq.s32.totalorder %s10, 0
    %p148 = por %p146, %p147
    %p149 = scmp.ne.s32.totalorder %s138, %s141
    %p150 = scmp.eq.s32.totalorder %s15, 1
    %p151 = por %p149, %p150
    %p152 = scmp.ne.s32.totalorder %s141, %s142
    %p153 = scmp.eq.s32.totalorder %s15, 0
    %p154 = por %p152, %p153
    %p155 = scmp.ne.s32.totalorder %s141, %s142
    %p156 = scmp.eq.s32.totalorder %s16, 1
    %p157 = por %p155, %p156
    %p159 = scmp.ne.s32.totalorder %s142, %s158
    %p160 = scmp.eq.s32.totalorder %s16, 0
    %p161 = por %p159, %p160
    %p162 = scmp.le.s32.totalorder 1, %s10
    %p163 = scmp.lt.s32.totalorder %s10, 3
    %p164 = pnand %p162, %p163
    %p165 = pneg %p164
    // Predicated region
    $region9: #{repvgg_block_forward.1} parent=5 // pred_check
      _
    $region10: #{repvgg_block_forward.1} parent=5 // pred_check_branch
      %167 = sbr.rel (%p164) target = $region12
    $region11: #{repvgg_block_forward.1} parent=5 // pred_region
      %s168 = ssub.s32 %s10, 1
      // Predicated region
      $region13: #{repvgg_block_forward.1} parent=11 // pred_check
        %p169 = pneg %p100
      $region14: #{repvgg_block_forward.1} parent=11 // pred_check_branch
        %171 = sbr.rel (%p169) target = $region16
      $region15: #{repvgg_block_forward.1} parent=11 // pred_region
        %p172 = scmp.lt.s32.totalorder %s20, 0
        %s173 = scalar_select %p172, %s20, 0
        %s174 = smul.addr %s173, 2
        %s175 = scalar_lea.vmem %s2, %s174
      $region16: #{repvgg_block_forward.1} parent=11 // pred_fallthru
        _
      // Predicated region
      $region17: #{repvgg_block_forward.1} parent=11 // pred_check
        %p176 = pneg %p126
      $region18: #{repvgg_block_forward.1} parent=11 // pred_check_branch
        %178 = sbr.rel (%p176) target = $region20
      $region19: #{repvgg_block_forward.1} parent=11 // pred_region
        %p179 = scmp.lt.s32.totalorder %s20, 0
        %s180 = scalar_select %p179, %s20, 0
        %s181 = scalar_lea.vmem %s3, %s180
      $region20: #{repvgg_block_forward.1} parent=11 // pred_fallthru
        _
    $region12: #{repvgg_block_forward.1} parent=5 // pred_fallthru
      _
    %p182 = scmp.lt.s32.totalorder %s10, 2
    // Predicated region
    $region21: #{repvgg_block_forward.1} parent=5 // pred_check
      %p183 = pneg %p182
    $region22: #{repvgg_block_forward.1} parent=5 // pred_check_branch
      %185 = sbr.rel (%p183) target = $region24
    $region23: #{repvgg_block_forward.1} parent=5 // pred_region
      // Predicated region
      $region25: #{repvgg_block_forward.1} parent=23 // pred_check
        %p186 = pneg %p42
      $region26: #{repvgg_block_forward.1} parent=23 // pred_check_branch
        %188 = sbr.rel (%p186) target = $region28
      $region27: #{repvgg_block_forward.1} parent=23 // pred_region
        %s189 = smul.u32 64, %s17
        %s190 = ssub.s32 133, %s189
        %p191 = scmp.lt.s32.totalorder %s190, 64
        %s192 = scalar_select %p191, %s190, 64
        %s193 = smul.u32 64, %s192
        %p194 = scmp.lt.s32.totalorder %s189, 132
        %s195 = scalar_select %p194, %s189, 132
        %s196 = smul.addr %s195, 4
        %s197 = scalar_lea.vmem %s0, %s196
        %s198 = smul.u32 64, %s17
        %s199 = ssub.s32 133, %s198
        %p200 = scmp.lt.s32.totalorder %s199, 64
        %s201 = scalar_select %p200, %s199, 64
        %s202 = smul.u32 64, %s201
      $region28: #{repvgg_block_forward.1} parent=23 // pred_fallthru
        _
      // Predicated region
      $region29: #{repvgg_block_forward.1} parent=23 // pred_check
        %p203 = pneg %p68
      $region30: #{repvgg_block_forward.1} parent=23 // pred_check_branch
        %205 = sbr.rel (%p203) target = $region32
      $region31: #{repvgg_block_forward.1} parent=23 // pred_region
        %p206 = scmp.lt.s32.totalorder %s17, 1
        %s207 = scalar_select %p206, %s17, 1
        %s208 = smul.addr %s207, 5
        %s209 = smul.addr %s208, 4
        %s210 = scalar_lea.vmem %s1, %s209
      $region32: #{repvgg_block_forward.1} parent=23 // pred_fallthru
        _
    $region24: #{repvgg_block_forward.1} parent=5 // pred_fallthru
      _
    %p211 = scmp.le.s32.totalorder 1, %s10
    %p212 = scmp.lt.s32.totalorder %s10, 3
    %p213 = pnand %p211, %p212
    %p214 = pneg %p213
    // Predicated region
    $region33: #{repvgg_block_forward.1} parent=5 // pred_check
      _
    $region34: #{repvgg_block_forward.1} parent=5 // pred_check_branch
      %216 = sbr.rel (%p213) target = $region36
    $region35: #{repvgg_block_forward.1} parent=5 // pred_region
      %s217 = ssub.s32 %s10, 1
      %s218 = smul.u32 64, %s19
      %s219 = ssub.s32 133, %s218
      %p220 = scmp.lt.s32.totalorder %s219, 64
      %s221 = scalar_select %p220, %s219, 64
      %s222 = smul.u32 64, %s221
      %p223 = scmp.lt.s32.totalorder %s218, 132
      %s224 = scalar_select %p223, %s218, 132
      %s225 = smul.addr %s224, 4
      %s226 = scalar_lea.vmem %s0, %s225
      %p227 = pneg %p48
      %p228 = pneg %p45
      %p229 = scmp.lt.s32.totalorder %s19, 1
      %s230 = scalar_select %p229, %s19, 1
      %s231 = smul.addr %s230, 5
      %s232 = smul.addr %s231, 4
      %s233 = scalar_lea.vmem %s1, %s232
      %p234 = pneg %p74
      %p235 = pneg %p71
      %p236 = scmp.lt.s32.totalorder %s20, 0
      %s237 = scalar_select %p236, %s20, 0
      %s238 = smul.addr %s237, 2
      %s239 = scalar_lea.vmem %s2, %s238
      %p240 = pneg %p100
      %p241 = pneg %p97
      %p242 = scmp.lt.s32.totalorder %s20, 0
      %s243 = scalar_select %p242, %s20, 0
      %s244 = scalar_lea.vmem %s3, %s243
      %p245 = pneg %p126
      %p246 = pneg %p123
      %p247 = pneg %p154
      %p248 = pneg %p151
      %s249 = smul.u32 64, %s19
      %p250 = scmp.lt.s32.totalorder %s249, 127
      %s251 = scalar_select %p250, %s249, 127
      %p252 = scmp.lt.s32.totalorder %s20, 0
      %s253 = scalar_select %p252, %s20, 0
      %s254 = sadd.s32 %s253, %s251
      %s255 = smul.addr %s254, 8
      %s256 = scalar_lea.vmem %s4, %s255
      %s257 = smul.u32 64, %s19
      %s258 = ssub.s32 133, %s257
      %p259 = scmp.lt.s32.totalorder %s258, 64
      %s260 = scalar_select %p259, %s258, 64
      %s261 = smul.u32 64, %s260
      %p262 = scmp.lt.s32.totalorder %s257, 132
      %s263 = scalar_select %p262, %s257, 132
      %s264 = smul.addr %s263, 4
      %s265 = scalar_lea.vmem %s0, %s264
      %s266 = smul.u32 64, %s19
      %s267 = ssub.s32 133, %s266
      %p268 = scmp.lt.s32.totalorder %s267, 64
      %s269 = scalar_select %p268, %s267, 64
      %s270 = smul.u32 64, %s269
      %p271 = scmp.lt.s32.totalorder %s19, 1
      %s272 = scalar_select %p271, %s19, 1
      %s273 = smul.addr %s272, 5
      %s274 = smul.addr %s273, 4
      %s275 = scalar_lea.vmem %s1, %s274
      %p276 = scmp.lt.s32.totalorder %s20, 0
      %s277 = scalar_select %p276, %s20, 0
      %s278 = smul.addr %s277, 2
      %s279 = scalar_lea.vmem %s2, %s278
      %p280 = scmp.lt.s32.totalorder %s20, 0
      %s281 = scalar_select %p280, %s20, 0
      %s282 = scalar_lea.vmem %s3, %s281
      %s283 = smul.u32 64, %s19
      %p284 = scmp.lt.s32.totalorder %s283, 127
      %s285 = scalar_select %p284, %s283, 127
      %p286 = scmp.lt.s32.totalorder %s20, 0
      %s287 = scalar_select %p286, %s20, 0
      %s288 = sadd.s32 %s287, %s285
      %s289 = smul.addr %s288, 8
      %s290 = scalar_lea.vmem %s4, %s289
      %s291 = smul.u32 64, %s19
      %v293 = vld [vmem:[%s265] sm:$0xf]
      %v294 = vld [vmem:[%s265 + $0x4] sm:$0xf]
      %v295 = vld [vmem:[%s265 + $0x8] sm:$0xf]
      %v296 = vld [vmem:[%s265 + $0xc] sm:$0xf]
      %v297 = vld [vmem:[%s265 + $0x10] sm:$0xf]
      %v298 = vld [vmem:[%s265 + $0x14] sm:$0xf]
      %v299 = vld [vmem:[%s265 + $0x18] sm:$0xf]
      %v300 = vld [vmem:[%s265 + $0x1c] sm:$0xf]
      %v301 = vld [vmem:[%s265 + $0x20] sm:$0xf]
      %v302 = vld [vmem:[%s265 + $0x24] sm:$0xf]
      %v303 = vld [vmem:[%s265 + $0x28] sm:$0xf]
      %v304 = vld [vmem:[%s265 + $0x2c] sm:$0xf]
      %v305 = vld [vmem:[%s265 + $0x30] sm:$0xf]
      %v306 = vld [vmem:[%s265 + $0x34] sm:$0xf]
      %v307 = vld [vmem:[%s265 + $0x38] sm:$0xf]
      %v308 = vld [vmem:[%s265 + $0x3c] sm:$0xf]
      %v309 = vld [vmem:[%s265 + $0x40] sm:$0xf]
      %v310 = vld [vmem:[%s265 + $0x44] sm:$0xf]
      %v311 = vld [vmem:[%s265 + $0x48] sm:$0xf]
      %v312 = vld [vmem:[%s265 + $0x4c] sm:$0xf]
      %v313 = vld [vmem:[%s265 + $0x50] sm:$0xf]
      %v314 = vld [vmem:[%s265 + $0x54] sm:$0xf]
      %v315 = vld [vmem:[%s265 + $0x58] sm:$0xf]
      %v316 = vld [vmem:[%s265 + $0x5c] sm:$0xf]
      %v317 = vld [vmem:[%s265 + $0x60] sm:$0xf]
      %v318 = vld [vmem:[%s265 + $0x64] sm:$0xf]
      %v319 = vld [vmem:[%s265 + $0x68] sm:$0xf]
      %v320 = vld [vmem:[%s265 + $0x6c] sm:$0xf]
      %v321 = vld [vmem:[%s265 + $0x70] sm:$0xf]
      %v322 = vld [vmem:[%s265 + $0x74] sm:$0xf]
      %v323 = vld [vmem:[%s265 + $0x78] sm:$0xf]
      %v324 = vld [vmem:[%s265 + $0x7c] sm:$0xf]
      %v325 = vld [vmem:[%s265 + $0x80] sm:$0xf]
      %v326 = vld [vmem:[%s265 + $0x84] sm:$0xf]
      %v327 = vld [vmem:[%s265 + $0x88] sm:$0xf]
      %v328 = vld [vmem:[%s265 + $0x8c] sm:$0xf]
      %v329 = vld [vmem:[%s265 + $0x90] sm:$0xf]
      %v330 = vld [vmem:[%s265 + $0x94] sm:$0xf]
      %v331 = vld [vmem:[%s265 + $0x98] sm:$0xf]
      %v332 = vld [vmem:[%s265 + $0x9c] sm:$0xf]
      %v333 = vld [vmem:[%s265 + $0xa0] sm:$0xf]
      %v334 = vld [vmem:[%s265 + $0xa4] sm:$0xf]
      %v335 = vld [vmem:[%s265 + $0xa8] sm:$0xf]
      %v336 = vld [vmem:[%s265 + $0xac] sm:$0xf]
      %v337 = vld [vmem:[%s265 + $0xb0] sm:$0xf]
      %v338 = vld [vmem:[%s265 + $0xb4] sm:$0xf]
      %v339 = vld [vmem:[%s265 + $0xb8] sm:$0xf]
      %v340 = vld [vmem:[%s265 + $0xbc] sm:$0xf]
      %v341 = vld [vmem:[%s265 + $0xc0] sm:$0xf]
      %v342 = vld [vmem:[%s265 + $0xc4] sm:$0xf]
      %v343 = vld [vmem:[%s265 + $0xc8] sm:$0xf]
      %v344 = vld [vmem:[%s265 + $0xcc] sm:$0xf]
      %v345 = vld [vmem:[%s265 + $0xd0] sm:$0xf]
      %v346 = vld [vmem:[%s265 + $0xd4] sm:$0xf]
      %v347 = vld [vmem:[%s265 + $0xd8] sm:$0xf]
      %v348 = vld [vmem:[%s265 + $0xdc] sm:$0xf]
      %v349 = vld [vmem:[%s265 + $0xe0] sm:$0xf]
      %v350 = vld [vmem:[%s265 + $0xe4] sm:$0xf]
      %v351 = vld [vmem:[%s265 + $0xe8] sm:$0xf]
      %v352 = vld [vmem:[%s265 + $0xec] sm:$0xf]
      %v353 = vld [vmem:[%s265 + $0xf0] sm:$0xf]
      %v354 = vld [vmem:[%s265 + $0xf4] sm:$0xf]
      %v355 = vld [vmem:[%s265 + $0xf8] sm:$0xf]
      %v356 = vld [vmem:[%s265 + $0xfc] sm:$0xf]
      %vm357 = vcmask 27648
      %358 = vst.msk [vmem:[#allocation2] sm:$0xf] %vm357, %v293
      %359 = vst.msk [vmem:[#allocation2 + $0x4] sm:$0xf] %vm357, %v294
      %360 = vst.msk [vmem:[#allocation2 + $0x8] sm:$0xf] %vm357, %v295
      %361 = vst.msk [vmem:[#allocation2 + $0xc] sm:$0xf] %vm357, %v296
      %362 = vst.msk [vmem:[#allocation2 + $0x10] sm:$0xf] %vm357, %v297
      %363 = vst.msk [vmem:[#allocation2 + $0x14] sm:$0xf] %vm357, %v298
      %364 = vst.msk [vmem:[#allocation2 + $0x18] sm:$0xf] %vm357, %v299
      %365 = vst.msk [vmem:[#allocation2 + $0x1c] sm:$0xf] %vm357, %v300
      %366 = vst.msk [vmem:[#allocation2 + $0x20] sm:$0xf] %vm357, %v301
      %367 = vst.msk [vmem:[#allocation2 + $0x24] sm:$0xf] %vm357, %v302
      %368 = vst.msk [vmem:[#allocation2 + $0x28] sm:$0xf] %vm357, %v303
      %369 = vst.msk [vmem:[#allocation2 + $0x2c] sm:$0xf] %vm357, %v304
      %370 = vst.msk [vmem:[#allocation2 + $0x30] sm:$0xf] %vm357, %v305
      %371 = vst.msk [vmem:[#allocation2 + $0x34] sm:$0xf] %vm357, %v306
      %372 = vst.msk [vmem:[#allocation2 + $0x38] sm:$0xf] %vm357, %v307
      %373 = vst.msk [vmem:[#allocation2 + $0x3c] sm:$0xf] %vm357, %v308
      %374 = vst.msk [vmem:[#allocation2 + $0x40] sm:$0xf] %vm357, %v309
      %375 = vst.msk [vmem:[#allocation2 + $0x44] sm:$0xf] %vm357, %v310
      %376 = vst.msk [vmem:[#allocation2 + $0x48] sm:$0xf] %vm357, %v311
      %377 = vst.msk [vmem:[#allocation2 + $0x4c] sm:$0xf] %vm357, %v312
      %378 = vst.msk [vmem:[#allocation2 + $0x50] sm:$0xf] %vm357, %v313
      %379 = vst.msk [vmem:[#allocation2 + $0x54] sm:$0xf] %vm357, %v314
      %380 = vst.msk [vmem:[#allocation2 + $0x58] sm:$0xf] %vm357, %v315
      %381 = vst.msk [vmem:[#allocation2 + $0x5c] sm:$0xf] %vm357, %v316
      %382 = vst.msk [vmem:[#allocation2 + $0x60] sm:$0xf] %vm357, %v317
      %383 = vst.msk [vmem:[#allocation2 + $0x64] sm:$0xf] %vm357, %v318
      %384 = vst.msk [vmem:[#allocation2 + $0x68] sm:$0xf] %vm357, %v319
      %385 = vst.msk [vmem:[#allocation2 + $0x6c] sm:$0xf] %vm357, %v320
      %386 = vst.msk [vmem:[#allocation2 + $0x70] sm:$0xf] %vm357, %v321
      %387 = vst.msk [vmem:[#allocation2 + $0x74] sm:$0xf] %vm357, %v322
      %388 = vst.msk [vmem:[#allocation2 + $0x78] sm:$0xf] %vm357, %v323
      %389 = vst.msk [vmem:[#allocation2 + $0x7c] sm:$0xf] %vm357, %v324
      %390 = vst.msk [vmem:[#allocation2 + $0x80] sm:$0xf] %vm357, %v325
      %391 = vst.msk [vmem:[#allocation2 + $0x84] sm:$0xf] %vm357, %v326
      %392 = vst.msk [vmem:[#allocation2 + $0x88] sm:$0xf] %vm357, %v327
      %393 = vst.msk [vmem:[#allocation2 + $0x8c] sm:$0xf] %vm357, %v328
      %394 = vst.msk [vmem:[#allocation2 + $0x90] sm:$0xf] %vm357, %v329
      %395 = vst.msk [vmem:[#allocation2 + $0x94] sm:$0xf] %vm357, %v330
      %396 = vst.msk [vmem:[#allocation2 + $0x98] sm:$0xf] %vm357, %v331
      %397 = vst.msk [vmem:[#allocation2 + $0x9c] sm:$0xf] %vm357, %v332
      %398 = vst.msk [vmem:[#allocation2 + $0xa0] sm:$0xf] %vm357, %v333
      %399 = vst.msk [vmem:[#allocation2 + $0xa4] sm:$0xf] %vm357, %v334
      %400 = vst.msk [vmem:[#allocation2 + $0xa8] sm:$0xf] %vm357, %v335
      %401 = vst.msk [vmem:[#allocation2 + $0xac] sm:$0xf] %vm357, %v336
      %402 = vst.msk [vmem:[#allocation2 + $0xb0] sm:$0xf] %vm357, %v337
      %403 = vst.msk [vmem:[#allocation2 + $0xb4] sm:$0xf] %vm357, %v338
      %404 = vst.msk [vmem:[#allocation2 + $0xb8] sm:$0xf] %vm357, %v339
      %405 = vst.msk [vmem:[#allocation2 + $0xbc] sm:$0xf] %vm357, %v340
      %406 = vst.msk [vmem:[#allocation2 + $0xc0] sm:$0xf] %vm357, %v341
      %407 = vst.msk [vmem:[#allocation2 + $0xc4] sm:$0xf] %vm357, %v342
      %408 = vst.msk [vmem:[#allocation2 + $0xc8] sm:$0xf] %vm357, %v343
      %409 = vst.msk [vmem:[#allocation2 + $0xcc] sm:$0xf] %vm357, %v344
      %410 = vst.msk [vmem:[#allocation2 + $0xd0] sm:$0xf] %vm357, %v345
      %411 = vst.msk [vmem:[#allocation2 + $0xd4] sm:$0xf] %vm357, %v346
      %412 = vst.msk [vmem:[#allocation2 + $0xd8] sm:$0xf] %vm357, %v347
      %413 = vst.msk [vmem:[#allocation2 + $0xdc] sm:$0xf] %vm357, %v348
      %414 = vst.msk [vmem:[#allocation2 + $0xe0] sm:$0xf] %vm357, %v349
      %415 = vst.msk [vmem:[#allocation2 + $0xe4] sm:$0xf] %vm357, %v350
      %416 = vst.msk [vmem:[#allocation2 + $0xe8] sm:$0xf] %vm357, %v351
      %417 = vst.msk [vmem:[#allocation2 + $0xec] sm:$0xf] %vm357, %v352
      %418 = vst.msk [vmem:[#allocation2 + $0xf0] sm:$0xf] %vm357, %v353
      %419 = vst.msk [vmem:[#allocation2 + $0xf4] sm:$0xf] %vm357, %v354
      %420 = vst.msk [vmem:[#allocation2 + $0xf8] sm:$0xf] %vm357, %v355
      %421 = vst.msk [vmem:[#allocation2 + $0xfc] sm:$0xf] %vm357, %v356
      %v422 = vld [vmem:[%s275] sm:$0xf]
      %v423 = vld [vmem:[%s275 + $0x4] sm:$0xf]
      %v424 = vld [vmem:[%s275 + $0x8] sm:$0xf]
      %v425 = vld [vmem:[%s275 + $0xc] sm:$0xf]
      %v426 = vld [vmem:[%s275 + $0x10] sm:$0x3]
      %427 = vst.msk [vmem:[#allocation2 + $0x100] sm:$0xf] %vm357, %v422
      %428 = vst.msk [vmem:[#allocation2 + $0x104] sm:$0xf] %vm357, %v423
      %429 = vst.msk [vmem:[#allocation2 + $0x108] sm:$0xf] %vm357, %v424
      %430 = vst.msk [vmem:[#allocation2 + $0x10c] sm:$0xf] %vm357, %v425
      %vm431 = vcmask 25600
      %432 = vst.msk [vmem:[#allocation2 + $0x110] sm:$0x3] %vm431, %v426
      %v433 = vld [vmem:[#allocation2] sm:$0xf]
      %v434 = vld [vmem:[#allocation2 + $0x4] sm:$0xf]
      %v435 = vld [vmem:[#allocation2 + $0x8] sm:$0xf]
      %v436 = vld [vmem:[#allocation2 + $0xc] sm:$0xf]
      %v437 = vld [vmem:[#allocation2 + $0x10] sm:$0xf]
      %v438 = vld [vmem:[#allocation2 + $0x14] sm:$0xf]
      %v439 = vld [vmem:[#allocation2 + $0x18] sm:$0xf]
      %v440 = vld [vmem:[#allocation2 + $0x1c] sm:$0xf]
      %v441 = vld [vmem:[#allocation2 + $0x20] sm:$0xf]
      %v442 = vld [vmem:[#allocation2 + $0x24] sm:$0xf]
      %v443 = vld [vmem:[#allocation2 + $0x28] sm:$0xf]
      %v444 = vld [vmem:[#allocation2 + $0x2c] sm:$0xf]
      %v445 = vld [vmem:[#allocation2 + $0x30] sm:$0xf]
      %v446 = vld [vmem:[#allocation2 + $0x34] sm:$0xf]
      %v447 = vld [vmem:[#allocation2 + $0x38] sm:$0xf]
      %v448 = vld [vmem:[#allocation2 + $0x3c] sm:$0xf]
      %v449 = vld [vmem:[#allocation2 + $0x40] sm:$0xf]
      %v450 = vld [vmem:[#allocation2 + $0x44] sm:$0xf]
      %v451 = vld [vmem:[#allocation2 + $0x48] sm:$0xf]
      %v452 = vld [vmem:[#allocation2 + $0x4c] sm:$0xf]
      %v453 = vld [vmem:[#allocation2 + $0x50] sm:$0xf]
      %v454 = vld [vmem:[#allocation2 + $0x54] sm:$0xf]
      %v455 = vld [vmem:[#allocation2 + $0x58] sm:$0xf]
      %v456 = vld [vmem:[#allocation2 + $0x5c] sm:$0xf]
      %v457 = vld [vmem:[#allocation2 + $0x60] sm:$0xf]
      %v458 = vld [vmem:[#allocation2 + $0x64] sm:$0xf]
      %v459 = vld [vmem:[#allocation2 + $0x68] sm:$0xf]
      %v460 = vld [vmem:[#allocation2 + $0x6c] sm:$0xf]
      %v461 = vld [vmem:[#allocation2 + $0x70] sm:$0xf]
      %v462 = vld [vmem:[#allocation2 + $0x74] sm:$0xf]
      %v463 = vld [vmem:[#allocation2 + $0x78] sm:$0xf]
      %v464 = vld [vmem:[#allocation2 + $0x7c] sm:$0xf]
      %v465 = vld [vmem:[#allocation2 + $0x80] sm:$0xf]
      %v466 = vld [vmem:[#allocation2 + $0x84] sm:$0xf]
      %v467 = vld [vmem:[#allocation2 + $0x88] sm:$0xf]
      %v468 = vld [vmem:[#allocation2 + $0x8c] sm:$0xf]
      %v469 = vld [vmem:[#allocation2 + $0x90] sm:$0xf]
      %v470 = vld [vmem:[#allocation2 + $0x94] sm:$0xf]
      %v471 = vld [vmem:[#allocation2 + $0x98] sm:$0xf]
      %v472 = vld [vmem:[#allocation2 + $0x9c] sm:$0xf]
      %v473 = vld [vmem:[#allocation2 + $0xa0] sm:$0xf]
      %v474 = vld [vmem:[#allocation2 + $0xa4] sm:$0xf]
      %v475 = vld [vmem:[#allocation2 + $0xa8] sm:$0xf]
      %v476 = vld [vmem:[#allocation2 + $0xac] sm:$0xf]
      %v477 = vld [vmem:[#allocation2 + $0xb0] sm:$0xf]
      %v478 = vld [vmem:[#allocation2 + $0xb4] sm:$0xf]
      %v479 = vld [vmem:[#allocation2 + $0xb8] sm:$0xf]
      %v480 = vld [vmem:[#allocation2 + $0xbc] sm:$0xf]
      %v481 = vld [vmem:[#allocation2 + $0xc0] sm:$0xf]
      %v482 = vld [vmem:[#allocation2 + $0xc4] sm:$0xf]
      %v483 = vld [vmem:[#allocation2 + $0xc8] sm:$0xf]
      %v484 = vld [vmem:[#allocation2 + $0xcc] sm:$0xf]
      %v485 = vld [vmem:[#allocation2 + $0xd0] sm:$0xf]
      %v486 = vld [vmem:[#allocation2 + $0xd4] sm:$0xf]
      %v487 = vld [vmem:[#allocation2 + $0xd8] sm:$0xf]
      %v488 = vld [vmem:[#allocation2 + $0xdc] sm:$0xf]
      %v489 = vld [vmem:[#allocation2 + $0xe0] sm:$0xf]
      %v490 = vld [vmem:[#allocation2 + $0xe4] sm:$0xf]
      %v491 = vld [vmem:[#allocation2 + $0xe8] sm:$0xf]
      %v492 = vld [vmem:[#allocation2 + $0xec] sm:$0xf]
      %v493 = vld [vmem:[#allocation2 + $0xf0] sm:$0xf]
      %v494 = vld [vmem:[#allocation2 + $0xf4] sm:$0xf]
      %v495 = vld [vmem:[#allocation2 + $0xf8] sm:$0xf]
      %v496 = vld [vmem:[#allocation2 + $0xfc] sm:$0xf]
      %v497 = vld [vmem:[%s279] sm:$0x3]
      %v498 = vld [vmem:[#allocation2 + $0x100] sm:$0x1]
      %s499 = scalar_lea.vmem %s279, 2
      %v500 = vld [vmem:[%s499] sm:$0x3]
      %v566 = vunpack.c.l.b16 %v433
      %v567 = vunpack.c.l.b16 %v434
      %v568 = vunpack.c.l.b16 %v435
      %v569 = vunpack.c.l.b16 %v436
      %v570 = vunpack.c.l.b16 %v437
      %v571 = vunpack.c.l.b16 %v438
      %v572 = vunpack.c.l.b16 %v439
      %v573 = vunpack.c.l.b16 %v440
      %v574 = vunpack.c.l.b16 %v441
      %v575 = vunpack.c.l.b16 %v442
      %v576 = vunpack.c.l.b16 %v443
      %v577 = vunpack.c.l.b16 %v444
      %v578 = vunpack.c.l.b16 %v445
      %v579 = vunpack.c.l.b16 %v446
      %v580 = vunpack.c.l.b16 %v447
      %v581 = vunpack.c.l.b16 %v448
      %v582 = vunpack.c.l.b16 %v449
      %v583 = vunpack.c.l.b16 %v450
      %v584 = vunpack.c.l.b16 %v451
      %v585 = vunpack.c.l.b16 %v452
      %v586 = vunpack.c.l.b16 %v453
      %v587 = vunpack.c.l.b16 %v454
      %v588 = vunpack.c.l.b16 %v455
      %v589 = vunpack.c.l.b16 %v456
      %v590 = vunpack.c.l.b16 %v457
      %v591 = vunpack.c.l.b16 %v458
      %v592 = vunpack.c.l.b16 %v459
      %v593 = vunpack.c.l.b16 %v460
      %v594 = vunpack.c.l.b16 %v461
      %v595 = vunpack.c.l.b16 %v462
      %v596 = vunpack.c.l.b16 %v463
      %v597 = vunpack.c.l.b16 %v464
      %v598 = vunpack.c.l.b16 %v465
      %v599 = vunpack.c.l.b16 %v466
      %v600 = vunpack.c.l.b16 %v467
      %v601 = vunpack.c.l.b16 %v468
      %v602 = vunpack.c.l.b16 %v469
      %v603 = vunpack.c.l.b16 %v470
      %v604 = vunpack.c.l.b16 %v471
      %v605 = vunpack.c.l.b16 %v472
      %v606 = vunpack.c.l.b16 %v473
      %v607 = vunpack.c.l.b16 %v474
      %v608 = vunpack.c.l.b16 %v475
      %v609 = vunpack.c.l.b16 %v476
      %v610 = vunpack.c.l.b16 %v477
      %v611 = vunpack.c.l.b16 %v478
      %v612 = vunpack.c.l.b16 %v479
      %v613 = vunpack.c.l.b16 %v480
      %v614 = vunpack.c.l.b16 %v481
      %v615 = vunpack.c.l.b16 %v482
      %v616 = vunpack.c.l.b16 %v483
      %v617 = vunpack.c.l.b16 %v484
      %v618 = vunpack.c.l.b16 %v485
      %v619 = vunpack.c.l.b16 %v486
      %v620 = vunpack.c.l.b16 %v487
      %v621 = vunpack.c.l.b16 %v488
      %v622 = vunpack.c.l.b16 %v489
      %v623 = vunpack.c.l.b16 %v490
      %v624 = vunpack.c.l.b16 %v491
      %v625 = vunpack.c.l.b16 %v492
      %v626 = vunpack.c.l.b16 %v493
      %v627 = vunpack.c.l.b16 %v494
      %v628 = vunpack.c.l.b16 %v495
      %v629 = vunpack.c.l.b16 %v496
      %v630 = vunpack.c.l.b16 %v498
      %v631 = vpack.c.b16 %v567, %v566
      %v632 = vpack.c.b16 %v569, %v568
      %v633 = vpack.c.b16 %v571, %v570
      %v634 = vpack.c.b16 %v573, %v572
      %v635 = vpack.c.b16 %v575, %v574
      %v636 = vpack.c.b16 %v577, %v576
      %v637 = vpack.c.b16 %v579, %v578
      %v638 = vpack.c.b16 %v581, %v580
      %v639 = vpack.c.b16 %v583, %v582
      %v640 = vpack.c.b16 %v585, %v584
      %v641 = vpack.c.b16 %v587, %v586
      %v642 = vpack.c.b16 %v589, %v588
      %v643 = vpack.c.b16 %v591, %v590
      %v644 = vpack.c.b16 %v593, %v592
      %v645 = vpack.c.b16 %v595, %v594
      %v646 = vpack.c.b16 %v597, %v596
      %v647 = vpack.c.b16 %v599, %v598
      %v648 = vpack.c.b16 %v601, %v600
      %v649 = vpack.c.b16 %v603, %v602
      %v650 = vpack.c.b16 %v605, %v604
      %v651 = vpack.c.b16 %v607, %v606
      %v652 = vpack.c.b16 %v609, %v608
      %v653 = vpack.c.b16 %v611, %v610
      %v654 = vpack.c.b16 %v613, %v612
      %v655 = vpack.c.b16 %v615, %v614
      %v656 = vpack.c.b16 %v617, %v616
      %v657 = vpack.c.b16 %v619, %v618
      %v658 = vpack.c.b16 %v621, %v620
      %v659 = vpack.c.b16 %v623, %v622
      %v660 = vpack.c.b16 %v625, %v624
      %v661 = vpack.c.b16 %v627, %v626
      %v662 = vpack.c.b16 %v629, %v628
      %v663 = vpack.c.b16 %v630, %v630
      %vm664 = vsmask.f32 7424
      %v666 = vshrl.u32 %v631, 16
      %v668 = vshll.u32 %v631, 16
      %v670 = vrot.slane %v668, 1
      %v671 = vor.u32 %v666, %v670
      %v673 = vshll.u32 %v632, 16
      %v675 = vrot.slane %v673, 1
      %v676 = vsel %vm664, %v671, %v675
      %v677 = vshrl.u32 %v632, 16
      %v679 = vor.u32 %v677, %v675
      %v681 = vshll.u32 %v633, 16
      %v683 = vrot.slane %v681, 1
      %v684 = vsel %vm664, %v679, %v683
      %v685 = vshrl.u32 %v633, 16
      %v687 = vor.u32 %v685, %v683
      %v689 = vshll.u32 %v634, 16
      %v691 = vrot.slane %v689, 1
      %v692 = vsel %vm664, %v687, %v691
      %v693 = vshrl.u32 %v634, 16
      %v695 = vor.u32 %v693, %v691
      %v697 = vshll.u32 %v635, 16
      %v699 = vrot.slane %v697, 1
      %v700 = vsel %vm664, %v695, %v699
      %v701 = vshrl.u32 %v635, 16
      %v703 = vor.u32 %v701, %v699
      %v705 = vshll.u32 %v636, 16
      %v707 = vrot.slane %v705, 1
      %v708 = vsel %vm664, %v703, %v707
      %v709 = vshrl.u32 %v636, 16
      %v711 = vor.u32 %v709, %v707
      %v713 = vshll.u32 %v637, 16
      %v715 = vrot.slane %v713, 1
      %v716 = vsel %vm664, %v711, %v715
      %v717 = vshrl.u32 %v637, 16
      %v719 = vor.u32 %v717, %v715
      %v721 = vshll.u32 %v638, 16
      %v723 = vrot.slane %v721, 1
      %v724 = vsel %vm664, %v719, %v723
      %v725 = vshrl.u32 %v638, 16
      %v727 = vor.u32 %v725, %v723
      %v729 = vshll.u32 %v639, 16
      %v731 = vrot.slane %v729, 1
      %v732 = vsel %vm664, %v727, %v731
      %v733 = vshrl.u32 %v639, 16
      %v735 = vor.u32 %v733, %v731
      %v737 = vshll.u32 %v640, 16
      %v739 = vrot.slane %v737, 1
      %v740 = vsel %vm664, %v735, %v739
      %v741 = vshrl.u32 %v640, 16
      %v743 = vor.u32 %v741, %v739
      %v745 = vshll.u32 %v641, 16
      %v747 = vrot.slane %v745, 1
      %v748 = vsel %vm664, %v743, %v747
      %v749 = vshrl.u32 %v641, 16
      %v751 = vor.u32 %v749, %v747
      %v753 = vshll.u32 %v642, 16
      %v755 = vrot.slane %v753, 1
      %v756 = vsel %vm664, %v751, %v755
      %v757 = vshrl.u32 %v642, 16
      %v759 = vor.u32 %v757, %v755
      %v761 = vshll.u32 %v643, 16
      %v763 = vrot.slane %v761, 1
      %v764 = vsel %vm664, %v759, %v763
      %v765 = vshrl.u32 %v643, 16
      %v767 = vor.u32 %v765, %v763
      %v769 = vshll.u32 %v644, 16
      %v771 = vrot.slane %v769, 1
      %v772 = vsel %vm664, %v767, %v771
      %v773 = vshrl.u32 %v644, 16
      %v775 = vor.u32 %v773, %v771
      %v777 = vshll.u32 %v645, 16
      %v779 = vrot.slane %v777, 1
      %v780 = vsel %vm664, %v775, %v779
      %v781 = vshrl.u32 %v645, 16
      %v783 = vor.u32 %v781, %v779
      %v785 = vshll.u32 %v646, 16
      %v787 = vrot.slane %v785, 1
      %v788 = vsel %vm664, %v783, %v787
      %v789 = vshrl.u32 %v646, 16
      %v791 = vor.u32 %v789, %v787
      %v793 = vshll.u32 %v647, 16
      %v795 = vrot.slane %v793, 1
      %v796 = vsel %vm664, %v791, %v795
      %v797 = vshrl.u32 %v647, 16
      %v799 = vor.u32 %v797, %v795
      %v801 = vshll.u32 %v648, 16
      %v803 = vrot.slane %v801, 1
      %v804 = vsel %vm664, %v799, %v803
      %v805 = vshrl.u32 %v648, 16
      %v807 = vor.u32 %v805, %v803
      %v809 = vshll.u32 %v649, 16
      %v811 = vrot.slane %v809, 1
      %v812 = vsel %vm664, %v807, %v811
      %v813 = vshrl.u32 %v649, 16
      %v815 = vor.u32 %v813, %v811
      %v817 = vshll.u32 %v650, 16
      %v819 = vrot.slane %v817, 1
      %v820 = vsel %vm664, %v815, %v819
      %v821 = vshrl.u32 %v650, 16
      %v823 = vor.u32 %v821, %v819
      %v825 = vshll.u32 %v651, 16
      %v827 = vrot.slane %v825, 1
      %v828 = vsel %vm664, %v823, %v827
      %v829 = vshrl.u32 %v651, 16
      %v831 = vor.u32 %v829, %v827
      %v833 = vshll.u32 %v652, 16
      %v835 = vrot.slane %v833, 1
      %v836 = vsel %vm664, %v831, %v835
      %v837 = vshrl.u32 %v652, 16
      %v839 = vor.u32 %v837, %v835
      %v841 = vshll.u32 %v653, 16
      %v843 = vrot.slane %v841, 1
      %v844 = vsel %vm664, %v839, %v843
      %v845 = vshrl.u32 %v653, 16
      %v847 = vor.u32 %v845, %v843
      %v849 = vshll.u32 %v654, 16
      %v851 = vrot.slane %v849, 1
      %v852 = vsel %vm664, %v847, %v851
      %v853 = vshrl.u32 %v654, 16
      %v855 = vor.u32 %v853, %v851
      %v857 = vshll.u32 %v655, 16
      %v859 = vrot.slane %v857, 1
      %v860 = vsel %vm664, %v855, %v859
      %v861 = vshrl.u32 %v655, 16
      %v863 = vor.u32 %v861, %v859
      %v865 = vshll.u32 %v656, 16
      %v867 = vrot.slane %v865, 1
      %v868 = vsel %vm664, %v863, %v867
      %v869 = vshrl.u32 %v656, 16
      %v871 = vor.u32 %v869, %v867
      %v873 = vshll.u32 %v657, 16
      %v875 = vrot.slane %v873, 1
      %v876 = vsel %vm664, %v871, %v875
      %v877 = vshrl.u32 %v657, 16
      %v879 = vor.u32 %v877, %v875
      %v881 = vshll.u32 %v658, 16
      %v883 = vrot.slane %v881, 1
      %v884 = vsel %vm664, %v879, %v883
      %v885 = vshrl.u32 %v658, 16
      %v887 = vor.u32 %v885, %v883
      %v889 = vshll.u32 %v659, 16
      %v891 = vrot.slane %v889, 1
      %v892 = vsel %vm664, %v887, %v891
      %v893 = vshrl.u32 %v659, 16
      %v895 = vor.u32 %v893, %v891
      %v897 = vshll.u32 %v660, 16
      %v899 = vrot.slane %v897, 1
      %v900 = vsel %vm664, %v895, %v899
      %v901 = vshrl.u32 %v660, 16
      %v903 = vor.u32 %v901, %v899
      %v905 = vshll.u32 %v661, 16
      %v907 = vrot.slane %v905, 1
      %v908 = vsel %vm664, %v903, %v907
      %v909 = vshrl.u32 %v661, 16
      %v911 = vor.u32 %v909, %v907
      %v913 = vshll.u32 %v662, 16
      %v915 = vrot.slane %v913, 1
      %v916 = vsel %vm664, %v911, %v915
      %v917 = vshrl.u32 %v662, 16
      %v919 = vor.u32 %v917, %v915
      %v921 = vshll.u32 %v663, 16
      %v923 = vrot.slane %v921, 1
      %v924 = vsel %vm664, %v919, %v923
      %vm925 = vcmask 31744
      %v927 = vsel %vm925, %v676, 0
      %v930 = vsel %vm925, %v684, 0
      %v933 = vsel %vm925, %v692, 0
      %v936 = vsel %vm925, %v700, 0
      %v939 = vsel %vm925, %v708, 0
      %v942 = vsel %vm925, %v716, 0
      %v945 = vsel %vm925, %v724, 0
      %v948 = vsel %vm925, %v732, 0
      %v951 = vsel %vm925, %v740, 0
      %v954 = vsel %vm925, %v748, 0
      %v957 = vsel %vm925, %v756, 0
      %v960 = vsel %vm925, %v764, 0
      %v963 = vsel %vm925, %v772, 0
      %v966 = vsel %vm925, %v780, 0
      %v969 = vsel %vm925, %v788, 0
      %v972 = vsel %vm925, %v796, 0
      %v975 = vsel %vm925, %v804, 0
      %v978 = vsel %vm925, %v812, 0
      %v981 = vsel %vm925, %v820, 0
      %v984 = vsel %vm925, %v828, 0
      %v987 = vsel %vm925, %v836, 0
      %v990 = vsel %vm925, %v844, 0
      %v993 = vsel %vm925, %v852, 0
      %v996 = vsel %vm925, %v860, 0
      %v999 = vsel %vm925, %v868, 0
      %v1002 = vsel %vm925, %v876, 0
      %v1005 = vsel %vm925, %v884, 0
      %v1008 = vsel %vm925, %v892, 0
      %v1011 = vsel %vm925, %v900, 0
      %v1014 = vsel %vm925, %v908, 0
      %v1017 = vsel %vm925, %v916, 0
      %v1020 = vsel %vm925, %v924, 0
      %vm1022 = vcmask 1041408
      %v1024 = vsel %vm1022, %v500, 0
      %1026 = vmatprep.subr.bf16.mxu0 0
      %1027 = vmatpush1.bf16.msra.mxu0 0
      %1028 = vmatprep.subr.bf16.mxu0 0
      %1029 = vmatpush1.bf16.msra.mxu0 0
      %1030 = vmatprep.subr.bf16.mxu0 0
      %1031 = vmatpush1.bf16.msra.mxu0 0
      %1032 = vmatprep.subr.bf16.mxu0 0
      %1033 = vmatpush1.bf16.msra.mxu0 0
      %1034 = vmatprep.subr.bf16.mxu0 0
      %1035 = vmatpush1.bf16.msra.mxu0 0
      %1036 = vmatprep.subr.bf16.mxu0 0
      %1037 = vmatpush1.bf16.msra.mxu0 0
      %1038 = vmatprep.subr.bf16.mxu0 0
      %1039 = vmatpush1.bf16.msra.mxu0 0
      %1040 = vmatprep.subr.bf16.mxu0 0
      %1041 = vmatpush1.bf16.msra.mxu0 %v1024
      %1042 = vmatprep.subr.bf16.mxu0 0
      %1043 = vmatpush2.bf16.msra.mxu0 0
      %1044 = vmatprep.subr.bf16.mxu0 0
      %1045 = vmatpush2.bf16.msra.mxu0 0
      %1046 = vmatprep.subr.bf16.mxu0 0
      %1047 = vmatpush2.bf16.msra.mxu0 0
      %1048 = vmatprep.subr.bf16.mxu0 0
      %1049 = vmatpush2.bf16.msra.mxu0 0
      %1050 = vmatprep.subr.bf16.mxu0 0
      %1051 = vmatpush2.bf16.msra.mxu0 0
      %1052 = vmatprep.subr.bf16.mxu0 0
      %1053 = vmatpush2.bf16.msra.mxu0 0
      %1054 = vmatprep.subr.bf16.mxu0 0
      %1055 = vmatpush2.bf16.msra.mxu0 0
      %1056 = vmatprep.subr.bf16.mxu0 0
      %1057 = vmatpush2.bf16.msra.mxu0 0
      %1058 = vmatprep.mubr.bf16.mxu0 0
      %1059 = vmatmul.mubr.bf16.gmra.mxu0 %v927
      %v1060 = vpop.f32.mrf.mxu0
      %v1061 = vadd.f32 0.0, %v1060
      %v1062 = vpop.f32.mrf.mxu0
      %v1063 = vpop.f32.mrf.mxu0
      %v1064 = vadd.f32 0.0, %v1063
      %v1065 = vpop.f32.mrf.mxu0
      %1066 = vmatprep.mubr.bf16.mxu0 0
      %1067 = vmatmul.mubr.bf16.gmra.mxu0 %v930
      %v1068 = vpop.f32.mrf.mxu0
      %v1069 = vadd.f32 0.0, %v1068
      %v1070 = vpop.f32.mrf.mxu0
      %v1071 = vpop.f32.mrf.mxu0
      %v1072 = vadd.f32 0.0, %v1071
      %v1073 = vpop.f32.mrf.mxu0
      %1074 = vmatprep.mubr.bf16.mxu0 0
      %1075 = vmatmul.mubr.bf16.gmra.mxu0 %v933
      %v1076 = vpop.f32.mrf.mxu0
      %v1077 = vadd.f32 0.0, %v1076
      %v1078 = vpop.f32.mrf.mxu0
      %v1079 = vpop.f32.mrf.mxu0
      %v1080 = vadd.f32 0.0, %v1079
      %v1081 = vpop.f32.mrf.mxu0
      %1082 = vmatprep.mubr.bf16.mxu0 0
      %1083 = vmatmul.mubr.bf16.gmra.mxu0 %v936
      %v1084 = vpop.f32.mrf.mxu0
      %v1085 = vadd.f32 0.0, %v1084
      %v1086 = vpop.f32.mrf.mxu0
      %v1087 = vpop.f32.mrf.mxu0
      %v1088 = vadd.f32 0.0, %v1087
      %v1089 = vpop.f32.mrf.mxu0
      %1090 = vmatprep.mubr.bf16.mxu0 0
      %1091 = vmatmul.mubr.bf16.gmra.mxu0 %v939
      %v1092 = vpop.f32.mrf.mxu0
      %v1093 = vadd.f32 0.0, %v1092
      %v1094 = vpop.f32.mrf.mxu0
      %v1095 = vpop.f32.mrf.mxu0
      %v1096 = vadd.f32 0.0, %v1095
      %v1097 = vpop.f32.mrf.mxu0
      %1098 = vmatprep.mubr.bf16.mxu0 0
      %1099 = vmatmul.mubr.bf16.gmra.mxu0 %v942
      %v1100 = vpop.f32.mrf.mxu0
      %v1101 = vadd.f32 0.0, %v1100
      %v1102 = vpop.f32.mrf.mxu0
      %v1103 = vpop.f32.mrf.mxu0
      %v1104 = vadd.f32 0.0, %v1103
      %v1105 = vpop.f32.mrf.mxu0
      %1106 = vmatprep.mubr.bf16.mxu0 0
      %1107 = vmatmul.mubr.bf16.gmra.mxu0 %v945
      %v1108 = vpop.f32.mrf.mxu0
      %v1109 = vadd.f32 0.0, %v1108
      %v1110 = vpop.f32.mrf.mxu0
      %v1111 = vpop.f32.mrf.mxu0
      %v1112 = vadd.f32 0.0, %v1111
      %v1113 = vpop.f32.mrf.mxu0
      %1114 = vmatprep.mubr.bf16.mxu0 0
      %1115 = vmatmul.mubr.bf16.gmra.mxu0 %v948
      %v1116 = vpop.f32.mrf.mxu0
      %v1117 = vadd.f32 0.0, %v1116
      %v1118 = vpop.f32.mrf.mxu0
      %v1119 = vpop.f32.mrf.mxu0
      %v1120 = vadd.f32 0.0, %v1119
      %v1121 = vpop.f32.mrf.mxu0
      %1122 = vmatprep.mubr.bf16.mxu0 0
      %1123 = vmatmul.mubr.bf16.gmra.mxu0 %v951
      %v1124 = vpop.f32.mrf.mxu0
      %v1125 = vadd.f32 0.0, %v1124
      %v1126 = vpop.f32.mrf.mxu0
      %v1127 = vpop.f32.mrf.mxu0
      %v1128 = vadd.f32 0.0, %v1127
      %v1129 = vpop.f32.mrf.mxu0
      %1130 = vmatprep.mubr.bf16.mxu0 0
      %1131 = vmatmul.mubr.bf16.gmra.mxu0 %v954
      %v1132 = vpop.f32.mrf.mxu0
      %v1133 = vadd.f32 0.0, %v1132
      %v1134 = vpop.f32.mrf.mxu0
      %v1135 = vpop.f32.mrf.mxu0
      %v1136 = vadd.f32 0.0, %v1135
      %v1137 = vpop.f32.mrf.mxu0
      %1138 = vmatprep.mubr.bf16.mxu0 0
      %1139 = vmatmul.mubr.bf16.gmra.mxu0 %v957
      %v1140 = vpop.f32.mrf.mxu0
      %v1141 = vadd.f32 0.0, %v1140
      %v1142 = vpop.f32.mrf.mxu0
      %v1143 = vpop.f32.mrf.mxu0
      %v1144 = vadd.f32 0.0, %v1143
      %v1145 = vpop.f32.mrf.mxu0
      %1146 = vmatprep.mubr.bf16.mxu0 0
      %1147 = vmatmul.mubr.bf16.gmra.mxu0 %v960
      %v1148 = vpop.f32.mrf.mxu0
      %v1149 = vadd.f32 0.0, %v1148
      %v1150 = vpop.f32.mrf.mxu0
      %v1151 = vpop.f32.mrf.mxu0
      %v1152 = vadd.f32 0.0, %v1151
      %v1153 = vpop.f32.mrf.mxu0
      %1154 = vmatprep.mubr.bf16.mxu0 0
      %1155 = vmatmul.mubr.bf16.gmra.mxu0 %v963
      %v1156 = vpop.f32.mrf.mxu0
      %v1157 = vadd.f32 0.0, %v1156
      %v1158 = vpop.f32.mrf.mxu0
      %v1159 = vpop.f32.mrf.mxu0
      %v1160 = vadd.f32 0.0, %v1159
      %v1161 = vpop.f32.mrf.mxu0
      %1162 = vmatprep.mubr.bf16.mxu0 0
      %1163 = vmatmul.mubr.bf16.gmra.mxu0 %v966
      %v1164 = vpop.f32.mrf.mxu0
      %v1165 = vadd.f32 0.0, %v1164
      %v1166 = vpop.f32.mrf.mxu0
      %v1167 = vpop.f32.mrf.mxu0
      %v1168 = vadd.f32 0.0, %v1167
      %v1169 = vpop.f32.mrf.mxu0
      %1170 = vmatprep.mubr.bf16.mxu0 0
      %1171 = vmatmul.mubr.bf16.gmra.mxu0 %v969
      %v1172 = vpop.f32.mrf.mxu0
      %v1173 = vadd.f32 0.0, %v1172
      %v1174 = vpop.f32.mrf.mxu0
      %v1175 = vpop.f32.mrf.mxu0
      %v1176 = vadd.f32 0.0, %v1175
      %v1177 = vpop.f32.mrf.mxu0
      %1178 = vmatprep.mubr.bf16.mxu0 0
      %1179 = vmatmul.mubr.bf16.gmra.mxu0 %v972
      %v1180 = vpop.f32.mrf.mxu0
      %v1181 = vadd.f32 0.0, %v1180
      %v1182 = vpop.f32.mrf.mxu0
      %v1183 = vpop.f32.mrf.mxu0
      %v1184 = vadd.f32 0.0, %v1183
      %v1185 = vpop.f32.mrf.mxu0
      %1186 = vmatprep.mubr.bf16.mxu0 0
      %1187 = vmatmul.mubr.bf16.gmra.mxu0 %v975
      %v1188 = vpop.f32.mrf.mxu0
      %v1189 = vadd.f32 0.0, %v1188
      %v1190 = vpop.f32.mrf.mxu0
      %v1191 = vpop.f32.mrf.mxu0
      %v1192 = vadd.f32 0.0, %v1191
      %v1193 = vpop.f32.mrf.mxu0
      %1194 = vmatprep.mubr.bf16.mxu0 0
      %1195 = vmatmul.mubr.bf16.gmra.mxu0 %v978
      %v1196 = vpop.f32.mrf.mxu0
      %v1197 = vadd.f32 0.0, %v1196
      %v1198 = vpop.f32.mrf.mxu0
      %v1199 = vpop.f32.mrf.mxu0
      %v1200 = vadd.f32 0.0, %v1199
      %v1201 = vpop.f32.mrf.mxu0
      %1202 = vmatprep.mubr.bf16.mxu0 0
      %1203 = vmatmul.mubr.bf16.gmra.mxu0 %v981
      %v1204 = vpop.f32.mrf.mxu0
      %v1205 = vadd.f32 0.0, %v1204
      %v1206 = vpop.f32.mrf.mxu0
      %v1207 = vpop.f32.mrf.mxu0
      %v1208 = vadd.f32 0.0, %v1207
      %v1209 = vpop.f32.mrf.mxu0
      %1210 = vmatprep.mubr.bf16.mxu0 0
      %1211 = vmatmul.mubr.bf16.gmra.mxu0 %v984
      %v1212 = vpop.f32.mrf.mxu0
      %v1213 = vadd.f32 0.0, %v1212
      %v1214 = vpop.f32.mrf.mxu0
      %v1215 = vpop.f32.mrf.mxu0
      %v1216 = vadd.f32 0.0, %v1215
      %v1217 = vpop.f32.mrf.mxu0
      %1218 = vmatprep.mubr.bf16.mxu0 0
      %1219 = vmatmul.mubr.bf16.gmra.mxu0 %v987
      %v1220 = vpop.f32.mrf.mxu0
      %v1221 = vadd.f32 0.0, %v1220
      %v1222 = vpop.f32.mrf.mxu0
      %v1223 = vpop.f32.mrf.mxu0
      %v1224 = vadd.f32 0.0, %v1223
      %v1225 = vpop.f32.mrf.mxu0
      %1226 = vmatprep.mubr.bf16.mxu0 0
      %1227 = vmatmul.mubr.bf16.gmra.mxu0 %v990
      %v1228 = vpop.f32.mrf.mxu0
      %v1229 = vadd.f32 0.0, %v1228
      %v1230 = vpop.f32.mrf.mxu0
      %v1231 = vpop.f32.mrf.mxu0
      %v1232 = vadd.f32 0.0, %v1231
      %v1233 = vpop.f32.mrf.mxu0
      %1234 = vmatprep.mubr.bf16.mxu0 0
      %1235 = vmatmul.mubr.bf16.gmra.mxu0 %v993
      %v1236 = vpop.f32.mrf.mxu0
      %v1237 = vadd.f32 0.0, %v1236
      %v1238 = vpop.f32.mrf.mxu0
      %v1239 = vpop.f32.mrf.mxu0
      %v1240 = vadd.f32 0.0, %v1239
      %v1241 = vpop.f32.mrf.mxu0
      %1242 = vmatprep.mubr.bf16.mxu0 0
      %1243 = vmatmul.mubr.bf16.gmra.mxu0 %v996
      %v1244 = vpop.f32.mrf.mxu0
      %v1245 = vadd.f32 0.0, %v1244
      %v1246 = vpop.f32.mrf.mxu0
      %v1247 = vpop.f32.mrf.mxu0
      %v1248 = vadd.f32 0.0, %v1247
      %v1249 = vpop.f32.mrf.mxu0
      %1250 = vmatprep.mubr.bf16.mxu0 0
      %1251 = vmatmul.mubr.bf16.gmra.mxu0 %v999
      %v1252 = vpop.f32.mrf.mxu0
      %v1253 = vadd.f32 0.0, %v1252
      %v1254 = vpop.f32.mrf.mxu0
      %v1255 = vpop.f32.mrf.mxu0
      %v1256 = vadd.f32 0.0, %v1255
      %v1257 = vpop.f32.mrf.mxu0
      %1258 = vmatprep.mubr.bf16.mxu0 0
      %1259 = vmatmul.mubr.bf16.gmra.mxu0 %v1002
      %v1260 = vpop.f32.mrf.mxu0
      %v1261 = vadd.f32 0.0, %v1260
      %v1262 = vpop.f32.mrf.mxu0
      %v1263 = vpop.f32.mrf.mxu0
      %v1264 = vadd.f32 0.0, %v1263
      %v1265 = vpop.f32.mrf.mxu0
      %1266 = vmatprep.mubr.bf16.mxu0 0
      %1267 = vmatmul.mubr.bf16.gmra.mxu0 %v1005
      %v1268 = vpop.f32.mrf.mxu0
      %v1269 = vadd.f32 0.0, %v1268
      %v1270 = vpop.f32.mrf.mxu0
      %v1271 = vpop.f32.mrf.mxu0
      %v1272 = vadd.f32 0.0, %v1271
      %v1273 = vpop.f32.mrf.mxu0
      %1274 = vmatprep.mubr.bf16.mxu0 0
      %1275 = vmatmul.mubr.bf16.gmra.mxu0 %v1008
      %v1276 = vpop.f32.mrf.mxu0
      %v1277 = vadd.f32 0.0, %v1276
      %v1278 = vpop.f32.mrf.mxu0
      %v1279 = vpop.f32.mrf.mxu0
      %v1280 = vadd.f32 0.0, %v1279
      %v1281 = vpop.f32.mrf.mxu0
      %1282 = vmatprep.mubr.bf16.mxu0 0
      %1283 = vmatmul.mubr.bf16.gmra.mxu0 %v1011
      %v1284 = vpop.f32.mrf.mxu0
      %v1285 = vadd.f32 0.0, %v1284
      %v1286 = vpop.f32.mrf.mxu0
      %v1287 = vpop.f32.mrf.mxu0
      %v1288 = vadd.f32 0.0, %v1287
      %v1289 = vpop.f32.mrf.mxu0
      %1290 = vmatprep.mubr.bf16.mxu0 0
      %1291 = vmatmul.mubr.bf16.gmra.mxu0 %v1014
      %v1292 = vpop.f32.mrf.mxu0
      %v1293 = vadd.f32 0.0, %v1292
      %v1294 = vpop.f32.mrf.mxu0
      %v1295 = vpop.f32.mrf.mxu0
      %v1296 = vadd.f32 0.0, %v1295
      %v1297 = vpop.f32.mrf.mxu0
      %1298 = vmatprep.mubr.bf16.mxu0 0
      %1299 = vmatmul.mubr.bf16.gmra.mxu0 %v1017
      %v1300 = vpop.f32.mrf.mxu0
      %v1301 = vadd.f32 0.0, %v1300
      %v1302 = vpop.f32.mrf.mxu0
      %v1303 = vpop.f32.mrf.mxu0
      %v1304 = vadd.f32 0.0, %v1303
      %v1305 = vpop.f32.mrf.mxu0
      %1306 = vmatprep.mubr.bf16.mxu0 0
      %1307 = vmatmul.mubr.bf16.gmra.mxu0 %v1020
      %v1308 = vpop.f32.mrf.mxu0
      %v1309 = vadd.f32 0.0, %v1308
      %v1310 = vpop.f32.mrf.mxu0
      %v1311 = vpop.f32.mrf.mxu0
      %v1312 = vadd.f32 0.0, %v1311
      %v1313 = vpop.f32.mrf.mxu0
      %1314 = vdwg.mxu0
      %v1315 = vsel %vm925, %v631, 0
      %v1317 = vsel %vm925, %v632, 0
      %v1319 = vsel %vm925, %v633, 0
      %v1321 = vsel %vm925, %v634, 0
      %v1323 = vsel %vm925, %v635, 0
      %v1325 = vsel %vm925, %v636, 0
      %v1327 = vsel %vm925, %v637, 0
      %v1329 = vsel %vm925, %v638, 0
      %v1331 = vsel %vm925, %v639, 0
      %v1333 = vsel %vm925, %v640, 0
      %v1335 = vsel %vm925, %v641, 0
      %v1337 = vsel %vm925, %v642, 0
      %v1339 = vsel %vm925, %v643, 0
      %v1341 = vsel %vm925, %v644, 0
      %v1343 = vsel %vm925, %v645, 0
      %v1345 = vsel %vm925, %v646, 0
      %v1347 = vsel %vm925, %v647, 0
      %v1349 = vsel %vm925, %v648, 0
      %v1351 = vsel %vm925, %v649, 0
      %v1353 = vsel %vm925, %v650, 0
      %v1355 = vsel %vm925, %v651, 0
      %v1357 = vsel %vm925, %v652, 0
      %v1359 = vsel %vm925, %v653, 0
      %v1361 = vsel %vm925, %v654, 0
      %v1363 = vsel %vm925, %v655, 0
      %v1365 = vsel %vm925, %v656, 0
      %v1367 = vsel %vm925, %v657, 0
      %v1369 = vsel %vm925, %v658, 0
      %v1371 = vsel %vm925, %v659, 0
      %v1373 = vsel %vm925, %v660, 0
      %v1375 = vsel %vm925, %v661, 0
      %v1377 = vsel %vm925, %v662, 0
      %v1380 = vsel %vm1022, %v497, 0
      %1382 = vmatprep.subr.bf16.mxu0 0
      %1383 = vmatpush1.bf16.msra.mxu0 0
      %1384 = vmatprep.subr.bf16.mxu0 0
      %1385 = vmatpush1.bf16.msra.mxu0 0
      %1386 = vmatprep.subr.bf16.mxu0 0
      %1387 = vmatpush1.bf16.msra.mxu0 0
      %1388 = vmatprep.subr.bf16.mxu0 0
      %1389 = vmatpush1.bf16.msra.mxu0 0
      %1390 = vmatprep.subr.bf16.mxu0 0
      %1391 = vmatpush1.bf16.msra.mxu0 0
      %1392 = vmatprep.subr.bf16.mxu0 0
      %1393 = vmatpush1.bf16.msra.mxu0 0
      %1394 = vmatprep.subr.bf16.mxu0 0
      %1395 = vmatpush1.bf16.msra.mxu0 0
      %1396 = vmatprep.subr.bf16.mxu0 0
      %1397 = vmatpush1.bf16.msra.mxu0 %v1380
      %1398 = vmatprep.subr.bf16.mxu0 0
      %1399 = vmatpush2.bf16.msra.mxu0 0
      %1400 = vmatprep.subr.bf16.mxu0 0
      %1401 = vmatpush2.bf16.msra.mxu0 0
      %1402 = vmatprep.subr.bf16.mxu0 0
      %1403 = vmatpush2.bf16.msra.mxu0 0
      %1404 = vmatprep.subr.bf16.mxu0 0
      %1405 = vmatpush2.bf16.msra.mxu0 0
      %1406 = vmatprep.subr.bf16.mxu0 0
      %1407 = vmatpush2.bf16.msra.mxu0 0
      %1408 = vmatprep.subr.bf16.mxu0 0
      %1409 = vmatpush2.bf16.msra.mxu0 0
      %1410 = vmatprep.subr.bf16.mxu0 0
      %1411 = vmatpush2.bf16.msra.mxu0 0
      %1412 = vmatprep.subr.bf16.mxu0 0
      %1413 = vmatpush2.bf16.msra.mxu0 0
      %1414 = vmatprep.mubr.bf16.mxu0 0
      %1415 = vmatmul.mubr.bf16.gmra.mxu0 %v1315
      %v1416 = vpop.f32.mrf.mxu0
      %v1417 = vadd.f32 %v1061, %v1416
      %v1418 = vpop.f32.mrf.mxu0
      %v1419 = vpop.f32.mrf.mxu0
      %v1420 = vadd.f32 %v1064, %v1419
      %v1421 = vpop.f32.mrf.mxu0
      %1422 = vmatprep.mubr.bf16.mxu0 0
      %1423 = vmatmul.mubr.bf16.gmra.mxu0 %v1317
      %v1424 = vpop.f32.mrf.mxu0
      %v1425 = vadd.f32 %v1069, %v1424
      %v1426 = vpop.f32.mrf.mxu0
      %v1427 = vpop.f32.mrf.mxu0
      %v1428 = vadd.f32 %v1072, %v1427
      %v1429 = vpop.f32.mrf.mxu0
      %1430 = vmatprep.mubr.bf16.mxu0 0
      %1431 = vmatmul.mubr.bf16.gmra.mxu0 %v1319
      %v1432 = vpop.f32.mrf.mxu0
      %v1433 = vadd.f32 %v1077, %v1432
      %v1434 = vpop.f32.mrf.mxu0
      %v1435 = vpop.f32.mrf.mxu0
      %v1436 = vadd.f32 %v1080, %v1435
      %v1437 = vpop.f32.mrf.mxu0
      %1438 = vmatprep.mubr.bf16.mxu0 0
      %1439 = vmatmul.mubr.bf16.gmra.mxu0 %v1321
      %v1440 = vpop.f32.mrf.mxu0
      %v1441 = vadd.f32 %v1085, %v1440
      %v1442 = vpop.f32.mrf.mxu0
      %v1443 = vpop.f32.mrf.mxu0
      %v1444 = vadd.f32 %v1088, %v1443
      %v1445 = vpop.f32.mrf.mxu0
      %1446 = vmatprep.mubr.bf16.mxu0 0
      %1447 = vmatmul.mubr.bf16.gmra.mxu0 %v1323
      %v1448 = vpop.f32.mrf.mxu0
      %v1449 = vadd.f32 %v1093, %v1448
      %v1450 = vpop.f32.mrf.mxu0
      %v1451 = vpop.f32.mrf.mxu0
      %v1452 = vadd.f32 %v1096, %v1451
      %v1453 = vpop.f32.mrf.mxu0
      %1454 = vmatprep.mubr.bf16.mxu0 0
      %1455 = vmatmul.mubr.bf16.gmra.mxu0 %v1325
      %v1456 = vpop.f32.mrf.mxu0
      %v1457 = vadd.f32 %v1101, %v1456
      %v1458 = vpop.f32.mrf.mxu0
      %v1459 = vpop.f32.mrf.mxu0
      %v1460 = vadd.f32 %v1104, %v1459
      %v1461 = vpop.f32.mrf.mxu0
      %1462 = vmatprep.mubr.bf16.mxu0 0
      %1463 = vmatmul.mubr.bf16.gmra.mxu0 %v1327
      %v1464 = vpop.f32.mrf.mxu0
      %v1465 = vadd.f32 %v1109, %v1464
      %v1466 = vpop.f32.mrf.mxu0
      %v1467 = vpop.f32.mrf.mxu0
      %v1468 = vadd.f32 %v1112, %v1467
      %v1469 = vpop.f32.mrf.mxu0
      %1470 = vmatprep.mubr.bf16.mxu0 0
      %1471 = vmatmul.mubr.bf16.gmra.mxu0 %v1329
      %v1472 = vpop.f32.mrf.mxu0
      %v1473 = vadd.f32 %v1117, %v1472
      %v1474 = vpop.f32.mrf.mxu0
      %v1475 = vpop.f32.mrf.mxu0
      %v1476 = vadd.f32 %v1120, %v1475
      %v1477 = vpop.f32.mrf.mxu0
      %1478 = vmatprep.mubr.bf16.mxu0 0
      %1479 = vmatmul.mubr.bf16.gmra.mxu0 %v1331
      %v1480 = vpop.f32.mrf.mxu0
      %v1481 = vadd.f32 %v1125, %v1480
      %v1482 = vpop.f32.mrf.mxu0
      %v1483 = vpop.f32.mrf.mxu0
      %v1484 = vadd.f32 %v1128, %v1483
      %v1485 = vpop.f32.mrf.mxu0
      %1486 = vmatprep.mubr.bf16.mxu0 0
      %1487 = vmatmul.mubr.bf16.gmra.mxu0 %v1333
      %v1488 = vpop.f32.mrf.mxu0
      %v1489 = vadd.f32 %v1133, %v1488
      %v1490 = vpop.f32.mrf.mxu0
      %v1491 = vpop.f32.mrf.mxu0
      %v1492 = vadd.f32 %v1136, %v1491
      %v1493 = vpop.f32.mrf.mxu0
      %1494 = vmatprep.mubr.bf16.mxu0 0
      %1495 = vmatmul.mubr.bf16.gmra.mxu0 %v1335
      %v1496 = vpop.f32.mrf.mxu0
      %v1497 = vadd.f32 %v1141, %v1496
      %v1498 = vpop.f32.mrf.mxu0
      %v1499 = vpop.f32.mrf.mxu0
      %v1500 = vadd.f32 %v1144, %v1499
      %v1501 = vpop.f32.mrf.mxu0
      %1502 = vmatprep.mubr.bf16.mxu0 0
      %1503 = vmatmul.mubr.bf16.gmra.mxu0 %v1337
      %v1504 = vpop.f32.mrf.mxu0
      %v1505 = vadd.f32 %v1149, %v1504
      %v1506 = vpop.f32.mrf.mxu0
      %v1507 = vpop.f32.mrf.mxu0
      %v1508 = vadd.f32 %v1152, %v1507
      %v1509 = vpop.f32.mrf.mxu0
      %1510 = vmatprep.mubr.bf16.mxu0 0
      %1511 = vmatmul.mubr.bf16.gmra.mxu0 %v1339
      %v1512 = vpop.f32.mrf.mxu0
      %v1513 = vadd.f32 %v1157, %v1512
      %v1514 = vpop.f32.mrf.mxu0
      %v1515 = vpop.f32.mrf.mxu0
      %v1516 = vadd.f32 %v1160, %v1515
      %v1517 = vpop.f32.mrf.mxu0
      %1518 = vmatprep.mubr.bf16.mxu0 0
      %1519 = vmatmul.mubr.bf16.gmra.mxu0 %v1341
      %v1520 = vpop.f32.mrf.mxu0
      %v1521 = vadd.f32 %v1165, %v1520
      %v1522 = vpop.f32.mrf.mxu0
      %v1523 = vpop.f32.mrf.mxu0
      %v1524 = vadd.f32 %v1168, %v1523
      %v1525 = vpop.f32.mrf.mxu0
      %1526 = vmatprep.mubr.bf16.mxu0 0
      %1527 = vmatmul.mubr.bf16.gmra.mxu0 %v1343
      %v1528 = vpop.f32.mrf.mxu0
      %v1529 = vadd.f32 %v1173, %v1528
      %v1530 = vpop.f32.mrf.mxu0
      %v1531 = vpop.f32.mrf.mxu0
      %v1532 = vadd.f32 %v1176, %v1531
      %v1533 = vpop.f32.mrf.mxu0
      %1534 = vmatprep.mubr.bf16.mxu0 0
      %1535 = vmatmul.mubr.bf16.gmra.mxu0 %v1345
      %v1536 = vpop.f32.mrf.mxu0
      %v1537 = vadd.f32 %v1181, %v1536
      %v1538 = vpop.f32.mrf.mxu0
      %v1539 = vpop.f32.mrf.mxu0
      %v1540 = vadd.f32 %v1184, %v1539
      %v1541 = vpop.f32.mrf.mxu0
      %1542 = vmatprep.mubr.bf16.mxu0 0
      %1543 = vmatmul.mubr.bf16.gmra.mxu0 %v1347
      %v1544 = vpop.f32.mrf.mxu0
      %v1545 = vadd.f32 %v1189, %v1544
      %v1546 = vpop.f32.mrf.mxu0
      %v1547 = vpop.f32.mrf.mxu0
      %v1548 = vadd.f32 %v1192, %v1547
      %v1549 = vpop.f32.mrf.mxu0
      %1550 = vmatprep.mubr.bf16.mxu0 0
      %1551 = vmatmul.mubr.bf16.gmra.mxu0 %v1349
      %v1552 = vpop.f32.mrf.mxu0
      %v1553 = vadd.f32 %v1197, %v1552
      %v1554 = vpop.f32.mrf.mxu0
      %v1555 = vpop.f32.mrf.mxu0
      %v1556 = vadd.f32 %v1200, %v1555
      %v1557 = vpop.f32.mrf.mxu0
      %1558 = vmatprep.mubr.bf16.mxu0 0
      %1559 = vmatmul.mubr.bf16.gmra.mxu0 %v1351
      %v1560 = vpop.f32.mrf.mxu0
      %v1561 = vadd.f32 %v1205, %v1560
      %v1562 = vpop.f32.mrf.mxu0
      %v1563 = vpop.f32.mrf.mxu0
      %v1564 = vadd.f32 %v1208, %v1563
      %v1565 = vpop.f32.mrf.mxu0
      %1566 = vmatprep.mubr.bf16.mxu0 0
      %1567 = vmatmul.mubr.bf16.gmra.mxu0 %v1353
      %v1568 = vpop.f32.mrf.mxu0
      %v1569 = vadd.f32 %v1213, %v1568
      %v1570 = vpop.f32.mrf.mxu0
      %v1571 = vpop.f32.mrf.mxu0
      %v1572 = vadd.f32 %v1216, %v1571
      %v1573 = vpop.f32.mrf.mxu0
      %1574 = vmatprep.mubr.bf16.mxu0 0
      %1575 = vmatmul.mubr.bf16.gmra.mxu0 %v1355
      %v1576 = vpop.f32.mrf.mxu0
      %v1577 = vadd.f32 %v1221, %v1576
      %v1578 = vpop.f32.mrf.mxu0
      %v1579 = vpop.f32.mrf.mxu0
      %v1580 = vadd.f32 %v1224, %v1579
      %v1581 = vpop.f32.mrf.mxu0
      %1582 = vmatprep.mubr.bf16.mxu0 0
      %1583 = vmatmul.mubr.bf16.gmra.mxu0 %v1357
      %v1584 = vpop.f32.mrf.mxu0
      %v1585 = vadd.f32 %v1229, %v1584
      %v1586 = vpop.f32.mrf.mxu0
      %v1587 = vpop.f32.mrf.mxu0
      %v1588 = vadd.f32 %v1232, %v1587
      %v1589 = vpop.f32.mrf.mxu0
      %1590 = vmatprep.mubr.bf16.mxu0 0
      %1591 = vmatmul.mubr.bf16.gmra.mxu0 %v1359
      %v1592 = vpop.f32.mrf.mxu0
      %v1593 = vadd.f32 %v1237, %v1592
      %v1594 = vpop.f32.mrf.mxu0
      %v1595 = vpop.f32.mrf.mxu0
      %v1596 = vadd.f32 %v1240, %v1595
      %v1597 = vpop.f32.mrf.mxu0
      %1598 = vmatprep.mubr.bf16.mxu0 0
      %1599 = vmatmul.mubr.bf16.gmra.mxu0 %v1361
      %v1600 = vpop.f32.mrf.mxu0
      %v1601 = vadd.f32 %v1245, %v1600
      %v1602 = vpop.f32.mrf.mxu0
      %v1603 = vpop.f32.mrf.mxu0
      %v1604 = vadd.f32 %v1248, %v1603
      %v1605 = vpop.f32.mrf.mxu0
      %1606 = vmatprep.mubr.bf16.mxu0 0
      %1607 = vmatmul.mubr.bf16.gmra.mxu0 %v1363
      %v1608 = vpop.f32.mrf.mxu0
      %v1609 = vadd.f32 %v1253, %v1608
      %v1610 = vpop.f32.mrf.mxu0
      %v1611 = vpop.f32.mrf.mxu0
      %v1612 = vadd.f32 %v1256, %v1611
      %v1613 = vpop.f32.mrf.mxu0
      %1614 = vmatprep.mubr.bf16.mxu0 0
      %1615 = vmatmul.mubr.bf16.gmra.mxu0 %v1365
      %v1616 = vpop.f32.mrf.mxu0
      %v1617 = vadd.f32 %v1261, %v1616
      %v1618 = vpop.f32.mrf.mxu0
      %v1619 = vpop.f32.mrf.mxu0
      %v1620 = vadd.f32 %v1264, %v1619
      %v1621 = vpop.f32.mrf.mxu0
      %1622 = vmatprep.mubr.bf16.mxu0 0
      %1623 = vmatmul.mubr.bf16.gmra.mxu0 %v1367
      %v1624 = vpop.f32.mrf.mxu0
      %v1625 = vadd.f32 %v1269, %v1624
      %v1626 = vpop.f32.mrf.mxu0
      %v1627 = vpop.f32.mrf.mxu0
      %v1628 = vadd.f32 %v1272, %v1627
      %v1629 = vpop.f32.mrf.mxu0
      %1630 = vmatprep.mubr.bf16.mxu0 0
      %1631 = vmatmul.mubr.bf16.gmra.mxu0 %v1369
      %v1632 = vpop.f32.mrf.mxu0
      %v1633 = vadd.f32 %v1277, %v1632
      %v1634 = vpop.f32.mrf.mxu0
      %v1635 = vpop.f32.mrf.mxu0
      %v1636 = vadd.f32 %v1280, %v1635
      %v1637 = vpop.f32.mrf.mxu0
      %1638 = vmatprep.mubr.bf16.mxu0 0
      %1639 = vmatmul.mubr.bf16.gmra.mxu0 %v1371
      %v1640 = vpop.f32.mrf.mxu0
      %v1641 = vadd.f32 %v1285, %v1640
      %v1642 = vpop.f32.mrf.mxu0
      %v1643 = vpop.f32.mrf.mxu0
      %v1644 = vadd.f32 %v1288, %v1643
      %v1645 = vpop.f32.mrf.mxu0
      %1646 = vmatprep.mubr.bf16.mxu0 0
      %1647 = vmatmul.mubr.bf16.gmra.mxu0 %v1373
      %v1648 = vpop.f32.mrf.mxu0
      %v1649 = vadd.f32 %v1293, %v1648
      %v1650 = vpop.f32.mrf.mxu0
      %v1651 = vpop.f32.mrf.mxu0
      %v1652 = vadd.f32 %v1296, %v1651
      %v1653 = vpop.f32.mrf.mxu0
      %1654 = vmatprep.mubr.bf16.mxu0 0
      %1655 = vmatmul.mubr.bf16.gmra.mxu0 %v1375
      %v1656 = vpop.f32.mrf.mxu0
      %v1657 = vadd.f32 %v1301, %v1656
      %v1658 = vpop.f32.mrf.mxu0
      %v1659 = vpop.f32.mrf.mxu0
      %v1660 = vadd.f32 %v1304, %v1659
      %v1661 = vpop.f32.mrf.mxu0
      %1662 = vmatprep.mubr.bf16.mxu0 0
      %1663 = vmatmul.mubr.bf16.gmra.mxu0 %v1377
      %v1664 = vpop.f32.mrf.mxu0
      %v1665 = vadd.f32 %v1309, %v1664
      %v1666 = vpop.f32.mrf.mxu0
      %v1667 = vpop.f32.mrf.mxu0
      %v1668 = vadd.f32 %v1312, %v1667
      %v1669 = vpop.f32.mrf.mxu0
      %1670 = vdwg.mxu0
      %v1671 = vld [vmem:[#allocation2] sm:$0xe]
      %s1672 = scalar_lea.vmem %s279, 4
      %v1673 = vld [vmem:[%s1672] sm:$0x3]
      %v1675 = vunpack.c.l.b16 %v1671
      %v1676 = vpack.c.b16 %v567, %v1675
      %vm1677 = vcmask 1046528
      %v1678 = vrot.slane %v1676, 1
      %v1679 = vrot.slane %v632, 1
      %v1680 = vsel %vm1677, %v1678, %v1679
      %v1681 = vrot.slane %v633, 1
      %v1682 = vsel %vm1677, %v1679, %v1681
      %v1683 = vrot.slane %v634, 1
      %v1684 = vsel %vm1677, %v1681, %v1683
      %v1685 = vrot.slane %v635, 1
      %v1686 = vsel %vm1677, %v1683, %v1685
      %v1687 = vrot.slane %v636, 1
      %v1688 = vsel %vm1677, %v1685, %v1687
      %v1689 = vrot.slane %v637, 1
      %v1690 = vsel %vm1677, %v1687, %v1689
      %v1691 = vrot.slane %v638, 1
      %v1692 = vsel %vm1677, %v1689, %v1691
      %v1693 = vrot.slane %v639, 1
      %v1694 = vsel %vm1677, %v1691, %v1693
      %v1695 = vrot.slane %v640, 1
      %v1696 = vsel %vm1677, %v1693, %v1695
      %v1697 = vrot.slane %v641, 1
      %v1698 = vsel %vm1677, %v1695, %v1697
      %v1699 = vrot.slane %v642, 1
      %v1700 = vsel %vm1677, %v1697, %v1699
      %v1701 = vrot.slane %v643, 1
      %v1702 = vsel %vm1677, %v1699, %v1701
      %v1703 = vrot.slane %v644, 1
      %v1704 = vsel %vm1677, %v1701, %v1703
      %v1705 = vrot.slane %v645, 1
      %v1706 = vsel %vm1677, %v1703, %v1705
      %v1707 = vrot.slane %v646, 1
      %v1708 = vsel %vm1677, %v1705, %v1707
      %v1709 = vrot.slane %v647, 1
      %v1710 = vsel %vm1677, %v1707, %v1709
      %v1711 = vrot.slane %v648, 1
      %v1712 = vsel %vm1677, %v1709, %v1711
      %v1713 = vrot.slane %v649, 1
      %v1714 = vsel %vm1677, %v1711, %v1713
      %v1715 = vrot.slane %v650, 1
      %v1716 = vsel %vm1677, %v1713, %v1715
      %v1717 = vrot.slane %v651, 1
      %v1718 = vsel %vm1677, %v1715, %v1717
      %v1719 = vrot.slane %v652, 1
      %v1720 = vsel %vm1677, %v1717, %v1719
      %v1721 = vrot.slane %v653, 1
      %v1722 = vsel %vm1677, %v1719, %v1721
      %v1723 = vrot.slane %v654, 1
      %v1724 = vsel %vm1677, %v1721, %v1723
      %v1725 = vrot.slane %v655, 1
      %v1726 = vsel %vm1677, %v1723, %v1725
      %v1727 = vrot.slane %v656, 1
      %v1728 = vsel %vm1677, %v1725, %v1727
      %v1729 = vrot.slane %v657, 1
      %v1730 = vsel %vm1677, %v1727, %v1729
      %v1731 = vrot.slane %v658, 1
      %v1732 = vsel %vm1677, %v1729, %v1731
      %v1733 = vrot.slane %v659, 1
      %v1734 = vsel %vm1677, %v1731, %v1733
      %v1735 = vrot.slane %v660, 1
      %v1736 = vsel %vm1677, %v1733, %v1735
      %v1737 = vrot.slane %v661, 1
      %v1738 = vsel %vm1677, %v1735, %v1737
      %v1739 = vrot.slane %v662, 1
      %v1740 = vsel %vm1677, %v1737, %v1739
      %v1741 = vrot.slane %v663, 1
      %v1742 = vsel %vm1677, %v1739, %v1741
      %v1744 = vsel %vm925, %v1680, 0
      %v1747 = vsel %vm925, %v1682, 0
      %v1750 = vsel %vm925, %v1684, 0
      %v1753 = vsel %vm925, %v1686, 0
      %v1756 = vsel %vm925, %v1688, 0
      %v1759 = vsel %vm925, %v1690, 0
      %v1762 = vsel %vm925, %v1692, 0
      %v1765 = vsel %vm925, %v1694, 0
      %v1768 = vsel %vm925, %v1696, 0
      %v1771 = vsel %vm925, %v1698, 0
      %v1774 = vsel %vm925, %v1700, 0
      %v1777 = vsel %vm925, %v1702, 0
      %v1780 = vsel %vm925, %v1704, 0
      %v1783 = vsel %vm925, %v1706, 0
      %v1786 = vsel %vm925, %v1708, 0
      %v1789 = vsel %vm925, %v1710, 0
      %v1792 = vsel %vm925, %v1712, 0
      %v1795 = vsel %vm925, %v1714, 0
      %v1798 = vsel %vm925, %v1716, 0
      %v1801 = vsel %vm925, %v1718, 0
      %v1804 = vsel %vm925, %v1720, 0
      %v1807 = vsel %vm925, %v1722, 0
      %v1810 = vsel %vm925, %v1724, 0
      %v1813 = vsel %vm925, %v1726, 0
      %v1816 = vsel %vm925, %v1728, 0
      %v1819 = vsel %vm925, %v1730, 0
      %v1822 = vsel %vm925, %v1732, 0
      %v1825 = vsel %vm925, %v1734, 0
      %v1828 = vsel %vm925, %v1736, 0
      %v1831 = vsel %vm925, %v1738, 0
      %v1834 = vsel %vm925, %v1740, 0
      %v1837 = vsel %vm925, %v1742, 0
      %v1840 = vsel %vm1022, %v1673, 0
      %1842 = vmatprep.subr.bf16.mxu0 0
      %1843 = vmatpush1.bf16.msra.mxu0 0
      %1844 = vmatprep.subr.bf16.mxu0 0
      %1845 = vmatpush1.bf16.msra.mxu0 0
      %1846 = vmatprep.subr.bf16.mxu0 0
      %1847 = vmatpush1.bf16.msra.mxu0 0
      %1848 = vmatprep.subr.bf16.mxu0 0
      %1849 = vmatpush1.bf16.msra.mxu0 0
      %1850 = vmatprep.subr.bf16.mxu0 0
      %1851 = vmatpush1.bf16.msra.mxu0 0
      %1852 = vmatprep.subr.bf16.mxu0 0
      %1853 = vmatpush1.bf16.msra.mxu0 0
      %1854 = vmatprep.subr.bf16.mxu0 0
      %1855 = vmatpush1.bf16.msra.mxu0 0
      %1856 = vmatprep.subr.bf16.mxu0 0
      %1857 = vmatpush1.bf16.msra.mxu0 %v1840
      %1858 = vmatprep.subr.bf16.mxu0 0
      %1859 = vmatpush2.bf16.msra.mxu0 0
      %1860 = vmatprep.subr.bf16.mxu0 0
      %1861 = vmatpush2.bf16.msra.mxu0 0
      %1862 = vmatprep.subr.bf16.mxu0 0
      %1863 = vmatpush2.bf16.msra.mxu0 0
      %1864 = vmatprep.subr.bf16.mxu0 0
      %1865 = vmatpush2.bf16.msra.mxu0 0
      %1866 = vmatprep.subr.bf16.mxu0 0
      %1867 = vmatpush2.bf16.msra.mxu0 0
      %1868 = vmatprep.subr.bf16.mxu0 0
      %1869 = vmatpush2.bf16.msra.mxu0 0
      %1870 = vmatprep.subr.bf16.mxu0 0
      %1871 = vmatpush2.bf16.msra.mxu0 0
      %1872 = vmatprep.subr.bf16.mxu0 0
      %1873 = vmatpush2.bf16.msra.mxu0 0
      %1874 = vmatprep.mubr.bf16.mxu0 0
      %1875 = vmatmul.mubr.bf16.gmra.mxu0 %v1744
      %v1876 = vpop.f32.mrf.mxu0
      %v1877 = vadd.f32 0.0, %v1876
      %v1878 = vpop.f32.mrf.mxu0
      %v1879 = vpop.f32.mrf.mxu0
      %v1880 = vadd.f32 0.0, %v1879
      %v1881 = vpop.f32.mrf.mxu0
      %1882 = vmatprep.mubr.bf16.mxu0 0
      %1883 = vmatmul.mubr.bf16.gmra.mxu0 %v1747
      %v1884 = vpop.f32.mrf.mxu0
      %v1885 = vadd.f32 0.0, %v1884
      %v1886 = vpop.f32.mrf.mxu0
      %v1887 = vpop.f32.mrf.mxu0
      %v1888 = vadd.f32 0.0, %v1887
      %v1889 = vpop.f32.mrf.mxu0
      %1890 = vmatprep.mubr.bf16.mxu0 0
      %1891 = vmatmul.mubr.bf16.gmra.mxu0 %v1750
      %v1892 = vpop.f32.mrf.mxu0
      %v1893 = vadd.f32 0.0, %v1892
      %v1894 = vpop.f32.mrf.mxu0
      %v1895 = vpop.f32.mrf.mxu0
      %v1896 = vadd.f32 0.0, %v1895
      %v1897 = vpop.f32.mrf.mxu0
      %1898 = vmatprep.mubr.bf16.mxu0 0
      %1899 = vmatmul.mubr.bf16.gmra.mxu0 %v1753
      %v1900 = vpop.f32.mrf.mxu0
      %v1901 = vadd.f32 0.0, %v1900
      %v1902 = vpop.f32.mrf.mxu0
      %v1903 = vpop.f32.mrf.mxu0
      %v1904 = vadd.f32 0.0, %v1903
      %v1905 = vpop.f32.mrf.mxu0
      %1906 = vmatprep.mubr.bf16.mxu0 0
      %1907 = vmatmul.mubr.bf16.gmra.mxu0 %v1756
      %v1908 = vpop.f32.mrf.mxu0
      %v1909 = vadd.f32 0.0, %v1908
      %v1910 = vpop.f32.mrf.mxu0
      %v1911 = vpop.f32.mrf.mxu0
      %v1912 = vadd.f32 0.0, %v1911
      %v1913 = vpop.f32.mrf.mxu0
      %1914 = vmatprep.mubr.bf16.mxu0 0
      %1915 = vmatmul.mubr.bf16.gmra.mxu0 %v1759
      %v1916 = vpop.f32.mrf.mxu0
      %v1917 = vadd.f32 0.0, %v1916
      %v1918 = vpop.f32.mrf.mxu0
      %v1919 = vpop.f32.mrf.mxu0
      %v1920 = vadd.f32 0.0, %v1919
      %v1921 = vpop.f32.mrf.mxu0
      %1922 = vmatprep.mubr.bf16.mxu0 0
      %1923 = vmatmul.mubr.bf16.gmra.mxu0 %v1762
      %v1924 = vpop.f32.mrf.mxu0
      %v1925 = vadd.f32 0.0, %v1924
      %v1926 = vpop.f32.mrf.mxu0
      %v1927 = vpop.f32.mrf.mxu0
      %v1928 = vadd.f32 0.0, %v1927
      %v1929 = vpop.f32.mrf.mxu0
      %1930 = vmatprep.mubr.bf16.mxu0 0
      %1931 = vmatmul.mubr.bf16.gmra.mxu0 %v1765
      %v1932 = vpop.f32.mrf.mxu0
      %v1933 = vadd.f32 0.0, %v1932
      %v1934 = vpop.f32.mrf.mxu0
      %v1935 = vpop.f32.mrf.mxu0
      %v1936 = vadd.f32 0.0, %v1935
      %v1937 = vpop.f32.mrf.mxu0
      %1938 = vmatprep.mubr.bf16.mxu0 0
      %1939 = vmatmul.mubr.bf16.gmra.mxu0 %v1768
      %v1940 = vpop.f32.mrf.mxu0
      %v1941 = vadd.f32 0.0, %v1940
      %v1942 = vpop.f32.mrf.mxu0
      %v1943 = vpop.f32.mrf.mxu0
      %v1944 = vadd.f32 0.0, %v1943
      %v1945 = vpop.f32.mrf.mxu0
      %1946 = vmatprep.mubr.bf16.mxu0 0
      %1947 = vmatmul.mubr.bf16.gmra.mxu0 %v1771
      %v1948 = vpop.f32.mrf.mxu0
      %v1949 = vadd.f32 0.0, %v1948
      %v1950 = vpop.f32.mrf.mxu0
      %v1951 = vpop.f32.mrf.mxu0
      %v1952 = vadd.f32 0.0, %v1951
      %v1953 = vpop.f32.mrf.mxu0
      %1954 = vmatprep.mubr.bf16.mxu0 0
      %1955 = vmatmul.mubr.bf16.gmra.mxu0 %v1774
      %v1956 = vpop.f32.mrf.mxu0
      %v1957 = vadd.f32 0.0, %v1956
      %v1958 = vpop.f32.mrf.mxu0
      %v1959 = vpop.f32.mrf.mxu0
      %v1960 = vadd.f32 0.0, %v1959
      %v1961 = vpop.f32.mrf.mxu0
      %1962 = vmatprep.mubr.bf16.mxu0 0
      %1963 = vmatmul.mubr.bf16.gmra.mxu0 %v1777
      %v1964 = vpop.f32.mrf.mxu0
      %v1965 = vadd.f32 0.0, %v1964
      %v1966 = vpop.f32.mrf.mxu0
      %v1967 = vpop.f32.mrf.mxu0
      %v1968 = vadd.f32 0.0, %v1967
      %v1969 = vpop.f32.mrf.mxu0
      %1970 = vmatprep.mubr.bf16.mxu0 0
      %1971 = vmatmul.mubr.bf16.gmra.mxu0 %v1780
      %v1972 = vpop.f32.mrf.mxu0
      %v1973 = vadd.f32 0.0, %v1972
      %v1974 = vpop.f32.mrf.mxu0
      %v1975 = vpop.f32.mrf.mxu0
      %v1976 = vadd.f32 0.0, %v1975
      %v1977 = vpop.f32.mrf.mxu0
      %1978 = vmatprep.mubr.bf16.mxu0 0
      %1979 = vmatmul.mubr.bf16.gmra.mxu0 %v1783
      %v1980 = vpop.f32.mrf.mxu0
      %v1981 = vadd.f32 0.0, %v1980
      %v1982 = vpop.f32.mrf.mxu0
      %v1983 = vpop.f32.mrf.mxu0
      %v1984 = vadd.f32 0.0, %v1983
      %v1985 = vpop.f32.mrf.mxu0
      %1986 = vmatprep.mubr.bf16.mxu0 0
      %1987 = vmatmul.mubr.bf16.gmra.mxu0 %v1786
      %v1988 = vpop.f32.mrf.mxu0
      %v1989 = vadd.f32 0.0, %v1988
      %v1990 = vpop.f32.mrf.mxu0
      %v1991 = vpop.f32.mrf.mxu0
      %v1992 = vadd.f32 0.0, %v1991
      %v1993 = vpop.f32.mrf.mxu0
      %1994 = vmatprep.mubr.bf16.mxu0 0
      %1995 = vmatmul.mubr.bf16.gmra.mxu0 %v1789
      %v1996 = vpop.f32.mrf.mxu0
      %v1997 = vadd.f32 0.0, %v1996
      %v1998 = vpop.f32.mrf.mxu0
      %v1999 = vpop.f32.mrf.mxu0
      %v2000 = vadd.f32 0.0, %v1999
      %v2001 = vpop.f32.mrf.mxu0
      %2002 = vmatprep.mubr.bf16.mxu0 0
      %2003 = vmatmul.mubr.bf16.gmra.mxu0 %v1792
      %v2004 = vpop.f32.mrf.mxu0
      %v2005 = vadd.f32 0.0, %v2004
      %v2006 = vpop.f32.mrf.mxu0
      %v2007 = vpop.f32.mrf.mxu0
      %v2008 = vadd.f32 0.0, %v2007
      %v2009 = vpop.f32.mrf.mxu0
      %2010 = vmatprep.mubr.bf16.mxu0 0
      %2011 = vmatmul.mubr.bf16.gmra.mxu0 %v1795
      %v2012 = vpop.f32.mrf.mxu0
      %v2013 = vadd.f32 0.0, %v2012
      %v2014 = vpop.f32.mrf.mxu0
      %v2015 = vpop.f32.mrf.mxu0
      %v2016 = vadd.f32 0.0, %v2015
      %v2017 = vpop.f32.mrf.mxu0
      %2018 = vmatprep.mubr.bf16.mxu0 0
      %2019 = vmatmul.mubr.bf16.gmra.mxu0 %v1798
      %v2020 = vpop.f32.mrf.mxu0
      %v2021 = vadd.f32 0.0, %v2020
      %v2022 = vpop.f32.mrf.mxu0
      %v2023 = vpop.f32.mrf.mxu0
      %v2024 = vadd.f32 0.0, %v2023
      %v2025 = vpop.f32.mrf.mxu0
      %2026 = vmatprep.mubr.bf16.mxu0 0
      %2027 = vmatmul.mubr.bf16.gmra.mxu0 %v1801
      %v2028 = vpop.f32.mrf.mxu0
      %v2029 = vadd.f32 0.0, %v2028
      %v2030 = vpop.f32.mrf.mxu0
      %v2031 = vpop.f32.mrf.mxu0
      %v2032 = vadd.f32 0.0, %v2031
      %v2033 = vpop.f32.mrf.mxu0
      %2034 = vmatprep.mubr.bf16.mxu0 0
      %2035 = vmatmul.mubr.bf16.gmra.mxu0 %v1804
      %v2036 = vpop.f32.mrf.mxu0
      %v2037 = vadd.f32 0.0, %v2036
      %v2038 = vpop.f32.mrf.mxu0
      %v2039 = vpop.f32.mrf.mxu0
      %v2040 = vadd.f32 0.0, %v2039
      %v2041 = vpop.f32.mrf.mxu0
      %2042 = vmatprep.mubr.bf16.mxu0 0
      %2043 = vmatmul.mubr.bf16.gmra.mxu0 %v1807
      %v2044 = vpop.f32.mrf.mxu0
      %v2045 = vadd.f32 0.0, %v2044
      %v2046 = vpop.f32.mrf.mxu0
      %v2047 = vpop.f32.mrf.mxu0
      %v2048 = vadd.f32 0.0, %v2047
      %v2049 = vpop.f32.mrf.mxu0
      %2050 = vmatprep.mubr.bf16.mxu0 0
      %2051 = vmatmul.mubr.bf16.gmra.mxu0 %v1810
      %v2052 = vpop.f32.mrf.mxu0
      %v2053 = vadd.f32 0.0, %v2052
      %v2054 = vpop.f32.mrf.mxu0
      %v2055 = vpop.f32.mrf.mxu0
      %v2056 = vadd.f32 0.0, %v2055
      %v2057 = vpop.f32.mrf.mxu0
      %2058 = vmatprep.mubr.bf16.mxu0 0
      %2059 = vmatmul.mubr.bf16.gmra.mxu0 %v1813
      %v2060 = vpop.f32.mrf.mxu0
      %v2061 = vadd.f32 0.0, %v2060
      %v2062 = vpop.f32.mrf.mxu0
      %v2063 = vpop.f32.mrf.mxu0
      %v2064 = vadd.f32 0.0, %v2063
      %v2065 = vpop.f32.mrf.mxu0
      %2066 = vmatprep.mubr.bf16.mxu0 0
      %2067 = vmatmul.mubr.bf16.gmra.mxu0 %v1816
      %v2068 = vpop.f32.mrf.mxu0
      %v2069 = vadd.f32 0.0, %v2068
      %v2070 = vpop.f32.mrf.mxu0
      %v2071 = vpop.f32.mrf.mxu0
      %v2072 = vadd.f32 0.0, %v2071
      %v2073 = vpop.f32.mrf.mxu0
      %2074 = vmatprep.mubr.bf16.mxu0 0
      %2075 = vmatmul.mubr.bf16.gmra.mxu0 %v1819
      %v2076 = vpop.f32.mrf.mxu0
      %v2077 = vadd.f32 0.0, %v2076
      %v2078 = vpop.f32.mrf.mxu0
      %v2079 = vpop.f32.mrf.mxu0
      %v2080 = vadd.f32 0.0, %v2079
      %v2081 = vpop.f32.mrf.mxu0
      %2082 = vmatprep.mubr.bf16.mxu0 0
      %2083 = vmatmul.mubr.bf16.gmra.mxu0 %v1822
      %v2084 = vpop.f32.mrf.mxu0
      %v2085 = vadd.f32 0.0, %v2084
      %v2086 = vpop.f32.mrf.mxu0
      %v2087 = vpop.f32.mrf.mxu0
      %v2088 = vadd.f32 0.0, %v2087
      %v2089 = vpop.f32.mrf.mxu0
      %2090 = vmatprep.mubr.bf16.mxu0 0
      %2091 = vmatmul.mubr.bf16.gmra.mxu0 %v1825
      %v2092 = vpop.f32.mrf.mxu0
      %v2093 = vadd.f32 0.0, %v2092
      %v2094 = vpop.f32.mrf.mxu0
      %v2095 = vpop.f32.mrf.mxu0
      %v2096 = vadd.f32 0.0, %v2095
      %v2097 = vpop.f32.mrf.mxu0
      %2098 = vmatprep.mubr.bf16.mxu0 0
      %2099 = vmatmul.mubr.bf16.gmra.mxu0 %v1828
      %v2100 = vpop.f32.mrf.mxu0
      %v2101 = vadd.f32 0.0, %v2100
      %v2102 = vpop.f32.mrf.mxu0
      %v2103 = vpop.f32.mrf.mxu0
      %v2104 = vadd.f32 0.0, %v2103
      %v2105 = vpop.f32.mrf.mxu0
      %2106 = vmatprep.mubr.bf16.mxu0 0
      %2107 = vmatmul.mubr.bf16.gmra.mxu0 %v1831
      %v2108 = vpop.f32.mrf.mxu0
      %v2109 = vadd.f32 0.0, %v2108
      %v2110 = vpop.f32.mrf.mxu0
      %v2111 = vpop.f32.mrf.mxu0
      %v2112 = vadd.f32 0.0, %v2111
      %v2113 = vpop.f32.mrf.mxu0
      %2114 = vmatprep.mubr.bf16.mxu0 0
      %2115 = vmatmul.mubr.bf16.gmra.mxu0 %v1834
      %v2116 = vpop.f32.mrf.mxu0
      %v2117 = vadd.f32 0.0, %v2116
      %v2118 = vpop.f32.mrf.mxu0
      %v2119 = vpop.f32.mrf.mxu0
      %v2120 = vadd.f32 0.0, %v2119
      %v2121 = vpop.f32.mrf.mxu0
      %2122 = vmatprep.mubr.bf16.mxu0 0
      %2123 = vmatmul.mubr.bf16.gmra.mxu0 %v1837
      %v2124 = vpop.f32.mrf.mxu0
      %v2125 = vadd.f32 0.0, %v2124
      %v2126 = vpop.f32.mrf.mxu0
      %v2127 = vpop.f32.mrf.mxu0
      %v2128 = vadd.f32 0.0, %v2127
      %v2129 = vpop.f32.mrf.mxu0
      %2130 = vdwg.mxu0
      %v2131 = vadd.f32 %v1417, %v1877
      %v2132 = vadd.f32 %v1420, %v1880
      %v2133 = vadd.f32 %v1425, %v1885
      %v2134 = vadd.f32 %v1428, %v1888
      %v2135 = vadd.f32 %v1433, %v1893
      %v2136 = vadd.f32 %v1436, %v1896
      %v2137 = vadd.f32 %v1441, %v1901
      %v2138 = vadd.f32 %v1444, %v1904
      %v2139 = vadd.f32 %v1449, %v1909
      %v2140 = vadd.f32 %v1452, %v1912
      %v2141 = vadd.f32 %v1457, %v1917
      %v2142 = vadd.f32 %v1460, %v1920
      %v2143 = vadd.f32 %v1465, %v1925
      %v2144 = vadd.f32 %v1468, %v1928
      %v2145 = vadd.f32 %v1473, %v1933
      %v2146 = vadd.f32 %v1476, %v1936
      %v2147 = vadd.f32 %v1481, %v1941
      %v2148 = vadd.f32 %v1484, %v1944
      %v2149 = vadd.f32 %v1489, %v1949
      %v2150 = vadd.f32 %v1492, %v1952
      %v2151 = vadd.f32 %v1497, %v1957
      %v2152 = vadd.f32 %v1500, %v1960
      %v2153 = vadd.f32 %v1505, %v1965
      %v2154 = vadd.f32 %v1508, %v1968
      %v2155 = vadd.f32 %v1513, %v1973
      %v2156 = vadd.f32 %v1516, %v1976
      %v2157 = vadd.f32 %v1521, %v1981
      %v2158 = vadd.f32 %v1524, %v1984
      %v2159 = vadd.f32 %v1529, %v1989
      %v2160 = vadd.f32 %v1532, %v1992
      %v2161 = vadd.f32 %v1537, %v1997
      %v2162 = vadd.f32 %v1540, %v2000
      %v2163 = vadd.f32 %v1545, %v2005
      %v2164 = vadd.f32 %v1548, %v2008
      %v2165 = vadd.f32 %v1553, %v2013
      %v2166 = vadd.f32 %v1556, %v2016
      %v2167 = vadd.f32 %v1561, %v2021
      %v2168 = vadd.f32 %v1564, %v2024
      %v2169 = vadd.f32 %v1569, %v2029
      %v2170 = vadd.f32 %v1572, %v2032
      %v2171 = vadd.f32 %v1577, %v2037
      %v2172 = vadd.f32 %v1580, %v2040
      %v2173 = vadd.f32 %v1585, %v2045
      %v2174 = vadd.f32 %v1588, %v2048
      %v2175 = vadd.f32 %v1593, %v2053
      %v2176 = vadd.f32 %v1596, %v2056
      %v2177 = vadd.f32 %v1601, %v2061
      %v2178 = vadd.f32 %v1604, %v2064
      %v2179 = vadd.f32 %v1609, %v2069
      %v2180 = vadd.f32 %v1612, %v2072
      %v2181 = vadd.f32 %v1617, %v2077
      %v2182 = vadd.f32 %v1620, %v2080
      %v2183 = vadd.f32 %v1625, %v2085
      %v2184 = vadd.f32 %v1628, %v2088
      %v2185 = vadd.f32 %v1633, %v2093
      %v2186 = vadd.f32 %v1636, %v2096
      %v2187 = vadd.f32 %v1641, %v2101
      %v2188 = vadd.f32 %v1644, %v2104
      %v2189 = vadd.f32 %v1649, %v2109
      %v2190 = vadd.f32 %v1652, %v2112
      %v2191 = vadd.f32 %v1657, %v2117
      %v2192 = vadd.f32 %v1660, %v2120
      %v2193 = vadd.f32 %v1665, %v2125
      %v2194 = vadd.f32 %v1668, %v2128
      %v2195 = vld [vmem:[#allocation2 + $0x8] sm:$0xf]
      %v2196 = vld [vmem:[#allocation2 + $0xc] sm:$0xf]
      %v2197 = vld [vmem:[#allocation2 + $0x10] sm:$0xf]
      %v2198 = vld [vmem:[#allocation2 + $0x14] sm:$0xf]
      %v2199 = vld [vmem:[#allocation2 + $0x18] sm:$0xf]
      %v2200 = vld [vmem:[#allocation2 + $0x1c] sm:$0xf]
      %v2201 = vld [vmem:[#allocation2 + $0x20] sm:$0xf]
      %v2202 = vld [vmem:[#allocation2 + $0x24] sm:$0xf]
      %v2203 = vld [vmem:[#allocation2 + $0x28] sm:$0xf]
      %v2204 = vld [vmem:[#allocation2 + $0x2c] sm:$0xf]
      %v2205 = vld [vmem:[#allocation2 + $0x30] sm:$0xf]
      %v2206 = vld [vmem:[#allocation2 + $0x34] sm:$0xf]
      %v2207 = vld [vmem:[#allocation2 + $0x38] sm:$0xf]
      %v2208 = vld [vmem:[#allocation2 + $0x3c] sm:$0xf]
      %v2209 = vld [vmem:[#allocation2 + $0x40] sm:$0xf]
      %v2210 = vld [vmem:[#allocation2 + $0x44] sm:$0xf]
      %v2211 = vld [vmem:[#allocation2 + $0x48] sm:$0xf]
      %v2212 = vld [vmem:[#allocation2 + $0x4c] sm:$0xf]
      %v2213 = vld [vmem:[#allocation2 + $0x50] sm:$0xf]
      %v2214 = vld [vmem:[#allocation2 + $0x54] sm:$0xf]
      %v2215 = vld [vmem:[#allocation2 + $0x58] sm:$0xf]
      %v2216 = vld [vmem:[#allocation2 + $0x5c] sm:$0xf]
      %v2217 = vld [vmem:[#allocation2 + $0x60] sm:$0xf]
      %v2218 = vld [vmem:[#allocation2 + $0x64] sm:$0xf]
      %v2219 = vld [vmem:[#allocation2 + $0x68] sm:$0xf]
      %v2220 = vld [vmem:[#allocation2 + $0x6c] sm:$0xf]
      %v2221 = vld [vmem:[#allocation2 + $0x70] sm:$0xf]
      %v2222 = vld [vmem:[#allocation2 + $0x74] sm:$0xf]
      %v2223 = vld [vmem:[#allocation2 + $0x78] sm:$0xf]
      %v2224 = vld [vmem:[#allocation2 + $0x7c] sm:$0xf]
      %v2225 = vld [vmem:[#allocation2 + $0x80] sm:$0xf]
      %v2226 = vld [vmem:[#allocation2 + $0x84] sm:$0xf]
      %v2227 = vld [vmem:[#allocation2 + $0x88] sm:$0xf]
      %v2228 = vld [vmem:[#allocation2 + $0x8c] sm:$0xf]
      %v2229 = vld [vmem:[#allocation2 + $0x90] sm:$0xf]
      %v2230 = vld [vmem:[#allocation2 + $0x94] sm:$0xf]
      %v2231 = vld [vmem:[#allocation2 + $0x98] sm:$0xf]
      %v2232 = vld [vmem:[#allocation2 + $0x9c] sm:$0xf]
      %v2233 = vld [vmem:[#allocation2 + $0xa0] sm:$0xf]
      %v2234 = vld [vmem:[#allocation2 + $0xa4] sm:$0xf]
      %v2235 = vld [vmem:[#allocation2 + $0xa8] sm:$0xf]
      %v2236 = vld [vmem:[#allocation2 + $0xac] sm:$0xf]
      %v2237 = vld [vmem:[#allocation2 + $0xb0] sm:$0xf]
      %v2238 = vld [vmem:[#allocation2 + $0xb4] sm:$0xf]
      %v2239 = vld [vmem:[#allocation2 + $0xb8] sm:$0xf]
      %v2240 = vld [vmem:[#allocation2 + $0xbc] sm:$0xf]
      %v2241 = vld [vmem:[#allocation2 + $0xc0] sm:$0xf]
      %v2242 = vld [vmem:[#allocation2 + $0xc4] sm:$0xf]
      %v2243 = vld [vmem:[#allocation2 + $0xc8] sm:$0xf]
      %v2244 = vld [vmem:[#allocation2 + $0xcc] sm:$0xf]
      %v2245 = vld [vmem:[#allocation2 + $0xd0] sm:$0xf]
      %v2246 = vld [vmem:[#allocation2 + $0xd4] sm:$0xf]
      %v2247 = vld [vmem:[#allocation2 + $0xd8] sm:$0xf]
      %v2248 = vld [vmem:[#allocation2 + $0xdc] sm:$0xf]
      %v2249 = vld [vmem:[#allocation2 + $0xe0] sm:$0xf]
      %v2250 = vld [vmem:[#allocation2 + $0xe4] sm:$0xf]
      %v2251 = vld [vmem:[#allocation2 + $0xe8] sm:$0xf]
      %v2252 = vld [vmem:[#allocation2 + $0xec] sm:$0xf]
      %v2253 = vld [vmem:[#allocation2 + $0xf0] sm:$0xf]
      %v2254 = vld [vmem:[#allocation2 + $0xf4] sm:$0xf]
      %v2255 = vld [vmem:[#allocation2 + $0xf8] sm:$0xf]
      %v2256 = vld [vmem:[#allocation2 + $0xfc] sm:$0xf]
      %v2257 = vld [vmem:[#allocation2 + $0x100] sm:$0xf]
      %v2258 = vld [vmem:[#allocation2 + $0x104] sm:$0xf]
      %v2259 = vld [vmem:[#allocation2 + $0x108] sm:$0x1]
      %s2260 = scalar_lea.vmem %s279, 6
      %v2261 = vld [vmem:[%s2260] sm:$0x3]
      %v2327 = vunpack.c.l.b16 %v2195
      %v2328 = vunpack.c.l.b16 %v2196
      %v2329 = vunpack.c.l.b16 %v2197
      %v2330 = vunpack.c.l.b16 %v2198
      %v2331 = vunpack.c.l.b16 %v2199
      %v2332 = vunpack.c.l.b16 %v2200
      %v2333 = vunpack.c.l.b16 %v2201
      %v2334 = vunpack.c.l.b16 %v2202
      %v2335 = vunpack.c.l.b16 %v2203
      %v2336 = vunpack.c.l.b16 %v2204
      %v2337 = vunpack.c.l.b16 %v2205
      %v2338 = vunpack.c.l.b16 %v2206
      %v2339 = vunpack.c.l.b16 %v2207
      %v2340 = vunpack.c.l.b16 %v2208
      %v2341 = vunpack.c.l.b16 %v2209
      %v2342 = vunpack.c.l.b16 %v2210
      %v2343 = vunpack.c.l.b16 %v2211
      %v2344 = vunpack.c.l.b16 %v2212
      %v2345 = vunpack.c.l.b16 %v2213
      %v2346 = vunpack.c.l.b16 %v2214
      %v2347 = vunpack.c.l.b16 %v2215
      %v2348 = vunpack.c.l.b16 %v2216
      %v2349 = vunpack.c.l.b16 %v2217
      %v2350 = vunpack.c.l.b16 %v2218
      %v2351 = vunpack.c.l.b16 %v2219
      %v2352 = vunpack.c.l.b16 %v2220
      %v2353 = vunpack.c.l.b16 %v2221
      %v2354 = vunpack.c.l.b16 %v2222
      %v2355 = vunpack.c.l.b16 %v2223
      %v2356 = vunpack.c.l.b16 %v2224
      %v2357 = vunpack.c.l.b16 %v2225
      %v2358 = vunpack.c.l.b16 %v2226
      %v2359 = vunpack.c.l.b16 %v2227
      %v2360 = vunpack.c.l.b16 %v2228
      %v2361 = vunpack.c.l.b16 %v2229
      %v2362 = vunpack.c.l.b16 %v2230
      %v2363 = vunpack.c.l.b16 %v2231
      %v2364 = vunpack.c.l.b16 %v2232
      %v2365 = vunpack.c.l.b16 %v2233
      %v2366 = vunpack.c.l.b16 %v2234
      %v2367 = vunpack.c.l.b16 %v2235
      %v2368 = vunpack.c.l.b16 %v2236
      %v2369 = vunpack.c.l.b16 %v2237
      %v2370 = vunpack.c.l.b16 %v2238
      %v2371 = vunpack.c.l.b16 %v2239
      %v2372 = vunpack.c.l.b16 %v2240
      %v2373 = vunpack.c.l.b16 %v2241
      %v2374 = vunpack.c.l.b16 %v2242
      %v2375 = vunpack.c.l.b16 %v2243
      %v2376 = vunpack.c.l.b16 %v2244
      %v2377 = vunpack.c.l.b16 %v2245
      %v2378 = vunpack.c.l.b16 %v2246
      %v2379 = vunpack.c.l.b16 %v2247
      %v2380 = vunpack.c.l.b16 %v2248
      %v2381 = vunpack.c.l.b16 %v2249
      %v2382 = vunpack.c.l.b16 %v2250
      %v2383 = vunpack.c.l.b16 %v2251
      %v2384 = vunpack.c.l.b16 %v2252
      %v2385 = vunpack.c.l.b16 %v2253
      %v2386 = vunpack.c.l.b16 %v2254
      %v2387 = vunpack.c.l.b16 %v2255
      %v2388 = vunpack.c.l.b16 %v2256
      %v2389 = vunpack.c.l.b16 %v2257
      %v2390 = vunpack.c.l.b16 %v2258
      %v2391 = vunpack.c.l.b16 %v2259
      %v2392 = vpack.c.b16 %v2328, %v2327
      %v2393 = vpack.c.b16 %v2330, %v2329
      %v2394 = vpack.c.b16 %v2332, %v2331
      %v2395 = vpack.c.b16 %v2334, %v2333
      %v2396 = vpack.c.b16 %v2336, %v2335
      %v2397 = vpack.c.b16 %v2338, %v2337
      %v2398 = vpack.c.b16 %v2340, %v2339
      %v2399 = vpack.c.b16 %v2342, %v2341
      %v2400 = vpack.c.b16 %v2344, %v2343
      %v2401 = vpack.c.b16 %v2346, %v2345
      %v2402 = vpack.c.b16 %v2348, %v2347
      %v2403 = vpack.c.b16 %v2350, %v2349
      %v2404 = vpack.c.b16 %v2352, %v2351
      %v2405 = vpack.c.b16 %v2354, %v2353
      %v2406 = vpack.c.b16 %v2356, %v2355
      %v2407 = vpack.c.b16 %v2358, %v2357
      %v2408 = vpack.c.b16 %v2360, %v2359
      %v2409 = vpack.c.b16 %v2362, %v2361
      %v2410 = vpack.c.b16 %v2364, %v2363
      %v2411 = vpack.c.b16 %v2366, %v2365
      %v2412 = vpack.c.b16 %v2368, %v2367
      %v2413 = vpack.c.b16 %v2370, %v2369
      %v2414 = vpack.c.b16 %v2372, %v2371
      %v2415 = vpack.c.b16 %v2374, %v2373
      %v2416 = vpack.c.b16 %v2376, %v2375
      %v2417 = vpack.c.b16 %v2378, %v2377
      %v2418 = vpack.c.b16 %v2380, %v2379
      %v2419 = vpack.c.b16 %v2382, %v2381
      %v2420 = vpack.c.b16 %v2384, %v2383
      %v2421 = vpack.c.b16 %v2386, %v2385
      %v2422 = vpack.c.b16 %v2388, %v2387
      %v2423 = vpack.c.b16 %v2390, %v2389
      %v2424 = vpack.c.b16 %v2391, %v2391
      %v2426 = vshrl.u32 %v2392, 16
      %v2428 = vshll.u32 %v2392, 16
      %v2430 = vrot.slane %v2428, 1
      %v2431 = vor.u32 %v2426, %v2430
      %v2433 = vshll.u32 %v2393, 16
      %v2435 = vrot.slane %v2433, 1
      %v2436 = vsel %vm664, %v2431, %v2435
      %v2437 = vshrl.u32 %v2393, 16
      %v2439 = vor.u32 %v2437, %v2435
      %v2441 = vshll.u32 %v2394, 16
      %v2443 = vrot.slane %v2441, 1
      %v2444 = vsel %vm664, %v2439, %v2443
      %v2445 = vshrl.u32 %v2394, 16
      %v2447 = vor.u32 %v2445, %v2443
      %v2449 = vshll.u32 %v2395, 16
      %v2451 = vrot.slane %v2449, 1
      %v2452 = vsel %vm664, %v2447, %v2451
      %v2453 = vshrl.u32 %v2395, 16
      %v2455 = vor.u32 %v2453, %v2451
      %v2457 = vshll.u32 %v2396, 16
      %v2459 = vrot.slane %v2457, 1
      %v2460 = vsel %vm664, %v2455, %v2459
      %v2461 = vshrl.u32 %v2396, 16
      %v2463 = vor.u32 %v2461, %v2459
      %v2465 = vshll.u32 %v2397, 16
      %v2467 = vrot.slane %v2465, 1
      %v2468 = vsel %vm664, %v2463, %v2467
      %v2469 = vshrl.u32 %v2397, 16
      %v2471 = vor.u32 %v2469, %v2467
      %v2473 = vshll.u32 %v2398, 16
      %v2475 = vrot.slane %v2473, 1
      %v2476 = vsel %vm664, %v2471, %v2475
      %v2477 = vshrl.u32 %v2398, 16
      %v2479 = vor.u32 %v2477, %v2475
      %v2481 = vshll.u32 %v2399, 16
      %v2483 = vrot.slane %v2481, 1
      %v2484 = vsel %vm664, %v2479, %v2483
      %v2485 = vshrl.u32 %v2399, 16
      %v2487 = vor.u32 %v2485, %v2483
      %v2489 = vshll.u32 %v2400, 16
      %v2491 = vrot.slane %v2489, 1
      %v2492 = vsel %vm664, %v2487, %v2491
      %v2493 = vshrl.u32 %v2400, 16
      %v2495 = vor.u32 %v2493, %v2491
      %v2497 = vshll.u32 %v2401, 16
      %v2499 = vrot.slane %v2497, 1
      %v2500 = vsel %vm664, %v2495, %v2499
      %v2501 = vshrl.u32 %v2401, 16
      %v2503 = vor.u32 %v2501, %v2499
      %v2505 = vshll.u32 %v2402, 16
      %v2507 = vrot.slane %v2505, 1
      %v2508 = vsel %vm664, %v2503, %v2507
      %v2509 = vshrl.u32 %v2402, 16
      %v2511 = vor.u32 %v2509, %v2507
      %v2513 = vshll.u32 %v2403, 16
      %v2515 = vrot.slane %v2513, 1
      %v2516 = vsel %vm664, %v2511, %v2515
      %v2517 = vshrl.u32 %v2403, 16
      %v2519 = vor.u32 %v2517, %v2515
      %v2521 = vshll.u32 %v2404, 16
      %v2523 = vrot.slane %v2521, 1
      %v2524 = vsel %vm664, %v2519, %v2523
      %v2525 = vshrl.u32 %v2404, 16
      %v2527 = vor.u32 %v2525, %v2523
      %v2529 = vshll.u32 %v2405, 16
      %v2531 = vrot.slane %v2529, 1
      %v2532 = vsel %vm664, %v2527, %v2531
      %v2533 = vshrl.u32 %v2405, 16
      %v2535 = vor.u32 %v2533, %v2531
      %v2537 = vshll.u32 %v2406, 16
      %v2539 = vrot.slane %v2537, 1
      %v2540 = vsel %vm664, %v2535, %v2539
      %v2541 = vshrl.u32 %v2406, 16
      %v2543 = vor.u32 %v2541, %v2539
      %v2545 = vshll.u32 %v2407, 16
      %v2547 = vrot.slane %v2545, 1
      %v2548 = vsel %vm664, %v2543, %v2547
      %v2549 = vshrl.u32 %v2407, 16
      %v2551 = vor.u32 %v2549, %v2547
      %v2553 = vshll.u32 %v2408, 16
      %v2555 = vrot.slane %v2553, 1
      %v2556 = vsel %vm664, %v2551, %v2555
      %v2557 = vshrl.u32 %v2408, 16
      %v2559 = vor.u32 %v2557, %v2555
      %v2561 = vshll.u32 %v2409, 16
      %v2563 = vrot.slane %v2561, 1
      %v2564 = vsel %vm664, %v2559, %v2563
      %v2565 = vshrl.u32 %v2409, 16
      %v2567 = vor.u32 %v2565, %v2563
      %v2569 = vshll.u32 %v2410, 16
      %v2571 = vrot.slane %v2569, 1
      %v2572 = vsel %vm664, %v2567, %v2571
      %v2573 = vshrl.u32 %v2410, 16
      %v2575 = vor.u32 %v2573, %v2571
      %v2577 = vshll.u32 %v2411, 16
      %v2579 = vrot.slane %v2577, 1
      %v2580 = vsel %vm664, %v2575, %v2579
      %v2581 = vshrl.u32 %v2411, 16
      %v2583 = vor.u32 %v2581, %v2579
      %v2585 = vshll.u32 %v2412, 16
      %v2587 = vrot.slane %v2585, 1
      %v2588 = vsel %vm664, %v2583, %v2587
      %v2589 = vshrl.u32 %v2412, 16
      %v2591 = vor.u32 %v2589, %v2587
      %v2593 = vshll.u32 %v2413, 16
      %v2595 = vrot.slane %v2593, 1
      %v2596 = vsel %vm664, %v2591, %v2595
      %v2597 = vshrl.u32 %v2413, 16
      %v2599 = vor.u32 %v2597, %v2595
      %v2601 = vshll.u32 %v2414, 16
      %v2603 = vrot.slane %v2601, 1
      %v2604 = vsel %vm664, %v2599, %v2603
      %v2605 = vshrl.u32 %v2414, 16
      %v2607 = vor.u32 %v2605, %v2603
      %v2609 = vshll.u32 %v2415, 16
      %v2611 = vrot.slane %v2609, 1
      %v2612 = vsel %vm664, %v2607, %v2611
      %v2613 = vshrl.u32 %v2415, 16
      %v2615 = vor.u32 %v2613, %v2611
      %v2617 = vshll.u32 %v2416, 16
      %v2619 = vrot.slane %v2617, 1
      %v2620 = vsel %vm664, %v2615, %v2619
      %v2621 = vshrl.u32 %v2416, 16
      %v2623 = vor.u32 %v2621, %v2619
      %v2625 = vshll.u32 %v2417, 16
      %v2627 = vrot.slane %v2625, 1
      %v2628 = vsel %vm664, %v2623, %v2627
      %v2629 = vshrl.u32 %v2417, 16
      %v2631 = vor.u32 %v2629, %v2627
      %v2633 = vshll.u32 %v2418, 16
      %v2635 = vrot.slane %v2633, 1
      %v2636 = vsel %vm664, %v2631, %v2635
      %v2637 = vshrl.u32 %v2418, 16
      %v2639 = vor.u32 %v2637, %v2635
      %v2641 = vshll.u32 %v2419, 16
      %v2643 = vrot.slane %v2641, 1
      %v2644 = vsel %vm664, %v2639, %v2643
      %v2645 = vshrl.u32 %v2419, 16
      %v2647 = vor.u32 %v2645, %v2643
      %v2649 = vshll.u32 %v2420, 16
      %v2651 = vrot.slane %v2649, 1
      %v2652 = vsel %vm664, %v2647, %v2651
      %v2653 = vshrl.u32 %v2420, 16
      %v2655 = vor.u32 %v2653, %v2651
      %v2657 = vshll.u32 %v2421, 16
      %v2659 = vrot.slane %v2657, 1
      %v2660 = vsel %vm664, %v2655, %v2659
      %v2661 = vshrl.u32 %v2421, 16
      %v2663 = vor.u32 %v2661, %v2659
      %v2665 = vshll.u32 %v2422, 16
      %v2667 = vrot.slane %v2665, 1
      %v2668 = vsel %vm664, %v2663, %v2667
      %v2669 = vshrl.u32 %v2422, 16
      %v2671 = vor.u32 %v2669, %v2667
      %v2673 = vshll.u32 %v2423, 16
      %v2675 = vrot.slane %v2673, 1
      %v2676 = vsel %vm664, %v2671, %v2675
      %v2677 = vshrl.u32 %v2423, 16
      %v2679 = vor.u32 %v2677, %v2675
      %v2681 = vshll.u32 %v2424, 16
      %v2683 = vrot.slane %v2681, 1
      %v2684 = vsel %vm664, %v2679, %v2683
      %v2686 = vsel %vm925, %v2436, 0
      %v2689 = vsel %vm925, %v2444, 0
      %v2692 = vsel %vm925, %v2452, 0
      %v2695 = vsel %vm925, %v2460, 0
      %v2698 = vsel %vm925, %v2468, 0
      %v2701 = vsel %vm925, %v2476, 0
      %v2704 = vsel %vm925, %v2484, 0
      %v2707 = vsel %vm925, %v2492, 0
      %v2710 = vsel %vm925, %v2500, 0
      %v2713 = vsel %vm925, %v2508, 0
      %v2716 = vsel %vm925, %v2516, 0
      %v2719 = vsel %vm925, %v2524, 0
      %v2722 = vsel %vm925, %v2532, 0
      %v2725 = vsel %vm925, %v2540, 0
      %v2728 = vsel %vm925, %v2548, 0
      %v2731 = vsel %vm925, %v2556, 0
      %v2734 = vsel %vm925, %v2564, 0
      %v2737 = vsel %vm925, %v2572, 0
      %v2740 = vsel %vm925, %v2580, 0
      %v2743 = vsel %vm925, %v2588, 0
      %v2746 = vsel %vm925, %v2596, 0
      %v2749 = vsel %vm925, %v2604, 0
      %v2752 = vsel %vm925, %v2612, 0
      %v2755 = vsel %vm925, %v2620, 0
      %v2758 = vsel %vm925, %v2628, 0
      %v2761 = vsel %vm925, %v2636, 0
      %v2764 = vsel %vm925, %v2644, 0
      %v2767 = vsel %vm925, %v2652, 0
      %v2770 = vsel %vm925, %v2660, 0
      %v2773 = vsel %vm925, %v2668, 0
      %v2776 = vsel %vm925, %v2676, 0
      %v2779 = vsel %vm925, %v2684, 0
      %v2782 = vsel %vm1022, %v2261, 0
      %2784 = vmatprep.subr.bf16.mxu0 0
      %2785 = vmatpush1.bf16.msra.mxu0 0
      %2786 = vmatprep.subr.bf16.mxu0 0
      %2787 = vmatpush1.bf16.msra.mxu0 0
      %2788 = vmatprep.subr.bf16.mxu0 0
      %2789 = vmatpush1.bf16.msra.mxu0 0
      %2790 = vmatprep.subr.bf16.mxu0 0
      %2791 = vmatpush1.bf16.msra.mxu0 0
      %2792 = vmatprep.subr.bf16.mxu0 0
      %2793 = vmatpush1.bf16.msra.mxu0 0
      %2794 = vmatprep.subr.bf16.mxu0 0
      %2795 = vmatpush1.bf16.msra.mxu0 0
      %2796 = vmatprep.subr.bf16.mxu0 0
      %2797 = vmatpush1.bf16.msra.mxu0 0
      %2798 = vmatprep.subr.bf16.mxu0 0
      %2799 = vmatpush1.bf16.msra.mxu0 %v2782
      %2800 = vmatprep.subr.bf16.mxu0 0
      %2801 = vmatpush2.bf16.msra.mxu0 0
      %2802 = vmatprep.subr.bf16.mxu0 0
      %2803 = vmatpush2.bf16.msra.mxu0 0
      %2804 = vmatprep.subr.bf16.mxu0 0
      %2805 = vmatpush2.bf16.msra.mxu0 0
      %2806 = vmatprep.subr.bf16.mxu0 0
      %2807 = vmatpush2.bf16.msra.mxu0 0
      %2808 = vmatprep.subr.bf16.mxu0 0
      %2809 = vmatpush2.bf16.msra.mxu0 0
      %2810 = vmatprep.subr.bf16.mxu0 0
      %2811 = vmatpush2.bf16.msra.mxu0 0
      %2812 = vmatprep.subr.bf16.mxu0 0
      %2813 = vmatpush2.bf16.msra.mxu0 0
      %2814 = vmatprep.subr.bf16.mxu0 0
      %2815 = vmatpush2.bf16.msra.mxu0 0
      %2816 = vmatprep.mubr.bf16.mxu0 0
      %2817 = vmatmul.mubr.bf16.gmra.mxu0 %v2686
      %v2818 = vpop.f32.mrf.mxu0
      %v2819 = vadd.f32 0.0, %v2818
      %v2820 = vpop.f32.mrf.mxu0
      %v2821 = vpop.f32.mrf.mxu0
      %v2822 = vadd.f32 0.0, %v2821
      %v2823 = vpop.f32.mrf.mxu0
      %2824 = vmatprep.mubr.bf16.mxu0 0
      %2825 = vmatmul.mubr.bf16.gmra.mxu0 %v2689
      %v2826 = vpop.f32.mrf.mxu0
      %v2827 = vadd.f32 0.0, %v2826
      %v2828 = vpop.f32.mrf.mxu0
      %v2829 = vpop.f32.mrf.mxu0
      %v2830 = vadd.f32 0.0, %v2829
      %v2831 = vpop.f32.mrf.mxu0
      %2832 = vmatprep.mubr.bf16.mxu0 0
      %2833 = vmatmul.mubr.bf16.gmra.mxu0 %v2692
      %v2834 = vpop.f32.mrf.mxu0
      %v2835 = vadd.f32 0.0, %v2834
      %v2836 = vpop.f32.mrf.mxu0
      %v2837 = vpop.f32.mrf.mxu0
      %v2838 = vadd.f32 0.0, %v2837
      %v2839 = vpop.f32.mrf.mxu0
      %2840 = vmatprep.mubr.bf16.mxu0 0
      %2841 = vmatmul.mubr.bf16.gmra.mxu0 %v2695
      %v2842 = vpop.f32.mrf.mxu0
      %v2843 = vadd.f32 0.0, %v2842
      %v2844 = vpop.f32.mrf.mxu0
      %v2845 = vpop.f32.mrf.mxu0
      %v2846 = vadd.f32 0.0, %v2845
      %v2847 = vpop.f32.mrf.mxu0
      %2848 = vmatprep.mubr.bf16.mxu0 0
      %2849 = vmatmul.mubr.bf16.gmra.mxu0 %v2698
      %v2850 = vpop.f32.mrf.mxu0
      %v2851 = vadd.f32 0.0, %v2850
      %v2852 = vpop.f32.mrf.mxu0
      %v2853 = vpop.f32.mrf.mxu0
      %v2854 = vadd.f32 0.0, %v2853
      %v2855 = vpop.f32.mrf.mxu0
      %2856 = vmatprep.mubr.bf16.mxu0 0
      %2857 = vmatmul.mubr.bf16.gmra.mxu0 %v2701
      %v2858 = vpop.f32.mrf.mxu0
      %v2859 = vadd.f32 0.0, %v2858
      %v2860 = vpop.f32.mrf.mxu0
      %v2861 = vpop.f32.mrf.mxu0
      %v2862 = vadd.f32 0.0, %v2861
      %v2863 = vpop.f32.mrf.mxu0
      %2864 = vmatprep.mubr.bf16.mxu0 0
      %2865 = vmatmul.mubr.bf16.gmra.mxu0 %v2704
      %v2866 = vpop.f32.mrf.mxu0
      %v2867 = vadd.f32 0.0, %v2866
      %v2868 = vpop.f32.mrf.mxu0
      %v2869 = vpop.f32.mrf.mxu0
      %v2870 = vadd.f32 0.0, %v2869
      %v2871 = vpop.f32.mrf.mxu0
      %2872 = vmatprep.mubr.bf16.mxu0 0
      %2873 = vmatmul.mubr.bf16.gmra.mxu0 %v2707
      %v2874 = vpop.f32.mrf.mxu0
      %v2875 = vadd.f32 0.0, %v2874
      %v2876 = vpop.f32.mrf.mxu0
      %v2877 = vpop.f32.mrf.mxu0
      %v2878 = vadd.f32 0.0, %v2877
      %v2879 = vpop.f32.mrf.mxu0
      %2880 = vmatprep.mubr.bf16.mxu0 0
      %2881 = vmatmul.mubr.bf16.gmra.mxu0 %v2710
      %v2882 = vpop.f32.mrf.mxu0
      %v2883 = vadd.f32 0.0, %v2882
      %v2884 = vpop.f32.mrf.mxu0
      %v2885 = vpop.f32.mrf.mxu0
      %v2886 = vadd.f32 0.0, %v2885
      %v2887 = vpop.f32.mrf.mxu0
      %2888 = vmatprep.mubr.bf16.mxu0 0
      %2889 = vmatmul.mubr.bf16.gmra.mxu0 %v2713
      %v2890 = vpop.f32.mrf.mxu0
      %v2891 = vadd.f32 0.0, %v2890
      %v2892 = vpop.f32.mrf.mxu0
      %v2893 = vpop.f32.mrf.mxu0
      %v2894 = vadd.f32 0.0, %v2893
      %v2895 = vpop.f32.mrf.mxu0
      %2896 = vmatprep.mubr.bf16.mxu0 0
      %2897 = vmatmul.mubr.bf16.gmra.mxu0 %v2716
      %v2898 = vpop.f32.mrf.mxu0
      %v2899 = vadd.f32 0.0, %v2898
      %v2900 = vpop.f32.mrf.mxu0
      %v2901 = vpop.f32.mrf.mxu0
      %v2902 = vadd.f32 0.0, %v2901
      %v2903 = vpop.f32.mrf.mxu0
      %2904 = vmatprep.mubr.bf16.mxu0 0
      %2905 = vmatmul.mubr.bf16.gmra.mxu0 %v2719
      %v2906 = vpop.f32.mrf.mxu0
      %v2907 = vadd.f32 0.0, %v2906
      %v2908 = vpop.f32.mrf.mxu0
      %v2909 = vpop.f32.mrf.mxu0
      %v2910 = vadd.f32 0.0, %v2909
      %v2911 = vpop.f32.mrf.mxu0
      %2912 = vmatprep.mubr.bf16.mxu0 0
      %2913 = vmatmul.mubr.bf16.gmra.mxu0 %v2722
      %v2914 = vpop.f32.mrf.mxu0
      %v2915 = vadd.f32 0.0, %v2914
      %v2916 = vpop.f32.mrf.mxu0
      %v2917 = vpop.f32.mrf.mxu0
      %v2918 = vadd.f32 0.0, %v2917
      %v2919 = vpop.f32.mrf.mxu0
      %2920 = vmatprep.mubr.bf16.mxu0 0
      %2921 = vmatmul.mubr.bf16.gmra.mxu0 %v2725
      %v2922 = vpop.f32.mrf.mxu0
      %v2923 = vadd.f32 0.0, %v2922
      %v2924 = vpop.f32.mrf.mxu0
      %v2925 = vpop.f32.mrf.mxu0
      %v2926 = vadd.f32 0.0, %v2925
      %v2927 = vpop.f32.mrf.mxu0
      %2928 = vmatprep.mubr.bf16.mxu0 0
      %2929 = vmatmul.mubr.bf16.gmra.mxu0 %v2728
      %v2930 = vpop.f32.mrf.mxu0
      %v2931 = vadd.f32 0.0, %v2930
      %v2932 = vpop.f32.mrf.mxu0
      %v2933 = vpop.f32.mrf.mxu0
      %v2934 = vadd.f32 0.0, %v2933
      %v2935 = vpop.f32.mrf.mxu0
      %2936 = vmatprep.mubr.bf16.mxu0 0
      %2937 = vmatmul.mubr.bf16.gmra.mxu0 %v2731
      %v2938 = vpop.f32.mrf.mxu0
      %v2939 = vadd.f32 0.0, %v2938
      %v2940 = vpop.f32.mrf.mxu0
      %v2941 = vpop.f32.mrf.mxu0
      %v2942 = vadd.f32 0.0, %v2941
      %v2943 = vpop.f32.mrf.mxu0
      %2944 = vmatprep.mubr.bf16.mxu0 0
      %2945 = vmatmul.mubr.bf16.gmra.mxu0 %v2734
      %v2946 = vpop.f32.mrf.mxu0
      %v2947 = vadd.f32 0.0, %v2946
      %v2948 = vpop.f32.mrf.mxu0
      %v2949 = vpop.f32.mrf.mxu0
      %v2950 = vadd.f32 0.0, %v2949
      %v2951 = vpop.f32.mrf.mxu0
      %2952 = vmatprep.mubr.bf16.mxu0 0
      %2953 = vmatmul.mubr.bf16.gmra.mxu0 %v2737
      %v2954 = vpop.f32.mrf.mxu0
      %v2955 = vadd.f32 0.0, %v2954
      %v2956 = vpop.f32.mrf.mxu0
      %v2957 = vpop.f32.mrf.mxu0
      %v2958 = vadd.f32 0.0, %v2957
      %v2959 = vpop.f32.mrf.mxu0
      %2960 = vmatprep.mubr.bf16.mxu0 0
      %2961 = vmatmul.mubr.bf16.gmra.mxu0 %v2740
      %v2962 = vpop.f32.mrf.mxu0
      %v2963 = vadd.f32 0.0, %v2962
      %v2964 = vpop.f32.mrf.mxu0
      %v2965 = vpop.f32.mrf.mxu0
      %v2966 = vadd.f32 0.0, %v2965
      %v2967 = vpop.f32.mrf.mxu0
      %2968 = vmatprep.mubr.bf16.mxu0 0
      %2969 = vmatmul.mubr.bf16.gmra.mxu0 %v2743
      %v2970 = vpop.f32.mrf.mxu0
      %v2971 = vadd.f32 0.0, %v2970
      %v2972 = vpop.f32.mrf.mxu0
      %v2973 = vpop.f32.mrf.mxu0
      %v2974 = vadd.f32 0.0, %v2973
      %v2975 = vpop.f32.mrf.mxu0
      %2976 = vmatprep.mubr.bf16.mxu0 0
      %2977 = vmatmul.mubr.bf16.gmra.mxu0 %v2746
      %v2978 = vpop.f32.mrf.mxu0
      %v2979 = vadd.f32 0.0, %v2978
      %v2980 = vpop.f32.mrf.mxu0
      %v2981 = vpop.f32.mrf.mxu0
      %v2982 = vadd.f32 0.0, %v2981
      %v2983 = vpop.f32.mrf.mxu0
      %2984 = vmatprep.mubr.bf16.mxu0 0
      %2985 = vmatmul.mubr.bf16.gmra.mxu0 %v2749
      %v2986 = vpop.f32.mrf.mxu0
      %v2987 = vadd.f32 0.0, %v2986
      %v2988 = vpop.f32.mrf.mxu0
      %v2989 = vpop.f32.mrf.mxu0
      %v2990 = vadd.f32 0.0, %v2989
      %v2991 = vpop.f32.mrf.mxu0
      %2992 = vmatprep.mubr.bf16.mxu0 0
      %2993 = vmatmul.mubr.bf16.gmra.mxu0 %v2752
      %v2994 = vpop.f32.mrf.mxu0
      %v2995 = vadd.f32 0.0, %v2994
      %v2996 = vpop.f32.mrf.mxu0
      %v2997 = vpop.f32.mrf.mxu0
      %v2998 = vadd.f32 0.0, %v2997
      %v2999 = vpop.f32.mrf.mxu0
      %3000 = vmatprep.mubr.bf16.mxu0 0
      %3001 = vmatmul.mubr.bf16.gmra.mxu0 %v2755
      %v3002 = vpop.f32.mrf.mxu0
      %v3003 = vadd.f32 0.0, %v3002
      %v3004 = vpop.f32.mrf.mxu0
      %v3005 = vpop.f32.mrf.mxu0
      %v3006 = vadd.f32 0.0, %v3005
      %v3007 = vpop.f32.mrf.mxu0
      %3008 = vmatprep.mubr.bf16.mxu0 0
      %3009 = vmatmul.mubr.bf16.gmra.mxu0 %v2758
      %v3010 = vpop.f32.mrf.mxu0
      %v3011 = vadd.f32 0.0, %v3010
      %v3012 = vpop.f32.mrf.mxu0
      %v3013 = vpop.f32.mrf.mxu0
      %v3014 = vadd.f32 0.0, %v3013
      %v3015 = vpop.f32.mrf.mxu0
      %3016 = vmatprep.mubr.bf16.mxu0 0
      %3017 = vmatmul.mubr.bf16.gmra.mxu0 %v2761
      %v3018 = vpop.f32.mrf.mxu0
      %v3019 = vadd.f32 0.0, %v3018
      %v3020 = vpop.f32.mrf.mxu0
      %v3021 = vpop.f32.mrf.mxu0
      %v3022 = vadd.f32 0.0, %v3021
      %v3023 = vpop.f32.mrf.mxu0
      %3024 = vmatprep.mubr.bf16.mxu0 0
      %3025 = vmatmul.mubr.bf16.gmra.mxu0 %v2764
      %v3026 = vpop.f32.mrf.mxu0
      %v3027 = vadd.f32 0.0, %v3026
      %v3028 = vpop.f32.mrf.mxu0
      %v3029 = vpop.f32.mrf.mxu0
      %v3030 = vadd.f32 0.0, %v3029
      %v3031 = vpop.f32.mrf.mxu0
      %3032 = vmatprep.mubr.bf16.mxu0 0
      %3033 = vmatmul.mubr.bf16.gmra.mxu0 %v2767
      %v3034 = vpop.f32.mrf.mxu0
      %v3035 = vadd.f32 0.0, %v3034
      %v3036 = vpop.f32.mrf.mxu0
      %v3037 = vpop.f32.mrf.mxu0
      %v3038 = vadd.f32 0.0, %v3037
      %v3039 = vpop.f32.mrf.mxu0
      %3040 = vmatprep.mubr.bf16.mxu0 0
      %3041 = vmatmul.mubr.bf16.gmra.mxu0 %v2770
      %v3042 = vpop.f32.mrf.mxu0
      %v3043 = vadd.f32 0.0, %v3042
      %v3044 = vpop.f32.mrf.mxu0
      %v3045 = vpop.f32.mrf.mxu0
      %v3046 = vadd.f32 0.0, %v3045
      %v3047 = vpop.f32.mrf.mxu0
      %3048 = vmatprep.mubr.bf16.mxu0 0
      %3049 = vmatmul.mubr.bf16.gmra.mxu0 %v2773
      %v3050 = vpop.f32.mrf.mxu0
      %v3051 = vadd.f32 0.0, %v3050
      %v3052 = vpop.f32.mrf.mxu0
      %v3053 = vpop.f32.mrf.mxu0
      %v3054 = vadd.f32 0.0, %v3053
      %v3055 = vpop.f32.mrf.mxu0
      %3056 = vmatprep.mubr.bf16.mxu0 0
      %3057 = vmatmul.mubr.bf16.gmra.mxu0 %v2776
      %v3058 = vpop.f32.mrf.mxu0
      %v3059 = vadd.f32 0.0, %v3058
      %v3060 = vpop.f32.mrf.mxu0
      %v3061 = vpop.f32.mrf.mxu0
      %v3062 = vadd.f32 0.0, %v3061
      %v3063 = vpop.f32.mrf.mxu0
      %3064 = vmatprep.mubr.bf16.mxu0 0
      %3065 = vmatmul.mubr.bf16.gmra.mxu0 %v2779
      %v3066 = vpop.f32.mrf.mxu0
      %v3067 = vadd.f32 0.0, %v3066
      %v3068 = vpop.f32.mrf.mxu0
      %v3069 = vpop.f32.mrf.mxu0
      %v3070 = vadd.f32 0.0, %v3069
      %v3071 = vpop.f32.mrf.mxu0
      %3072 = vdwg.mxu0
      %v3073 = vadd.f32 %v2131, %v2819
      %v3074 = vadd.f32 %v2132, %v2822
      %v3075 = vadd.f32 %v2133, %v2827
      %v3076 = vadd.f32 %v2134, %v2830
      %v3077 = vadd.f32 %v2135, %v2835
      %v3078 = vadd.f32 %v2136, %v2838
      %v3079 = vadd.f32 %v2137, %v2843
      %v3080 = vadd.f32 %v2138, %v2846
      %v3081 = vadd.f32 %v2139, %v2851
      %v3082 = vadd.f32 %v2140, %v2854
      %v3083 = vadd.f32 %v2141, %v2859
      %v3084 = vadd.f32 %v2142, %v2862
      %v3085 = vadd.f32 %v2143, %v2867
      %v3086 = vadd.f32 %v2144, %v2870
      %v3087 = vadd.f32 %v2145, %v2875
      %v3088 = vadd.f32 %v2146, %v2878
      %v3089 = vadd.f32 %v2147, %v2883
      %v3090 = vadd.f32 %v2148, %v2886
      %v3091 = vadd.f32 %v2149, %v2891
      %v3092 = vadd.f32 %v2150, %v2894
      %v3093 = vadd.f32 %v2151, %v2899
      %v3094 = vadd.f32 %v2152, %v2902
      %v3095 = vadd.f32 %v2153, %v2907
      %v3096 = vadd.f32 %v2154, %v2910
      %v3097 = vadd.f32 %v2155, %v2915
      %v3098 = vadd.f32 %v2156, %v2918
      %v3099 = vadd.f32 %v2157, %v2923
      %v3100 = vadd.f32 %v2158, %v2926
      %v3101 = vadd.f32 %v2159, %v2931
      %v3102 = vadd.f32 %v2160, %v2934
      %v3103 = vadd.f32 %v2161, %v2939
      %v3104 = vadd.f32 %v2162, %v2942
      %v3105 = vadd.f32 %v2163, %v2947
      %v3106 = vadd.f32 %v2164, %v2950
      %v3107 = vadd.f32 %v2165, %v2955
      %v3108 = vadd.f32 %v2166, %v2958
      %v3109 = vadd.f32 %v2167, %v2963
      %v3110 = vadd.f32 %v2168, %v2966
      %v3111 = vadd.f32 %v2169, %v2971
      %v3112 = vadd.f32 %v2170, %v2974
      %v3113 = vadd.f32 %v2171, %v2979
      %v3114 = vadd.f32 %v2172, %v2982
      %v3115 = vadd.f32 %v2173, %v2987
      %v3116 = vadd.f32 %v2174, %v2990
      %v3117 = vadd.f32 %v2175, %v2995
      %v3118 = vadd.f32 %v2176, %v2998
      %v3119 = vadd.f32 %v2177, %v3003
      %v3120 = vadd.f32 %v2178, %v3006
      %v3121 = vadd.f32 %v2179, %v3011
      %v3122 = vadd.f32 %v2180, %v3014
      %v3123 = vadd.f32 %v2181, %v3019
      %v3124 = vadd.f32 %v2182, %v3022
      %v3125 = vadd.f32 %v2183, %v3027
      %v3126 = vadd.f32 %v2184, %v3030
      %v3127 = vadd.f32 %v2185, %v3035
      %v3128 = vadd.f32 %v2186, %v3038
      %v3129 = vadd.f32 %v2187, %v3043
      %v3130 = vadd.f32 %v2188, %v3046
      %v3131 = vadd.f32 %v2189, %v3051
      %v3132 = vadd.f32 %v2190, %v3054
      %v3133 = vadd.f32 %v2191, %v3059
      %v3134 = vadd.f32 %v2192, %v3062
      %v3135 = vadd.f32 %v2193, %v3067
      %v3136 = vadd.f32 %v2194, %v3070
      %v3137 = vld [vmem:[#allocation2 + $0x8] sm:$0xe]
      %s3138 = scalar_lea.vmem %s279, 8
      %v3139 = vld [vmem:[%s3138] sm:$0x3]
      %v3141 = vunpack.c.l.b16 %v3137
      %v3142 = vpack.c.b16 %v2328, %v3141
      %v3143 = vrot.slane %v3142, 1
      %v3144 = vrot.slane %v2393, 1
      %v3145 = vsel %vm1677, %v3143, %v3144
      %v3146 = vrot.slane %v2394, 1
      %v3147 = vsel %vm1677, %v3144, %v3146
      %v3148 = vrot.slane %v2395, 1
      %v3149 = vsel %vm1677, %v3146, %v3148
      %v3150 = vrot.slane %v2396, 1
      %v3151 = vsel %vm1677, %v3148, %v3150
      %v3152 = vrot.slane %v2397, 1
      %v3153 = vsel %vm1677, %v3150, %v3152
      %v3154 = vrot.slane %v2398, 1
      %v3155 = vsel %vm1677, %v3152, %v3154
      %v3156 = vrot.slane %v2399, 1
      %v3157 = vsel %vm1677, %v3154, %v3156
      %v3158 = vrot.slane %v2400, 1
      %v3159 = vsel %vm1677, %v3156, %v3158
      %v3160 = vrot.slane %v2401, 1
      %v3161 = vsel %vm1677, %v3158, %v3160
      %v3162 = vrot.slane %v2402, 1
      %v3163 = vsel %vm1677, %v3160, %v3162
      %v3164 = vrot.slane %v2403, 1
      %v3165 = vsel %vm1677, %v3162, %v3164
      %v3166 = vrot.slane %v2404, 1
      %v3167 = vsel %vm1677, %v3164, %v3166
      %v3168 = vrot.slane %v2405, 1
      %v3169 = vsel %vm1677, %v3166, %v3168
      %v3170 = vrot.slane %v2406, 1
      %v3171 = vsel %vm1677, %v3168, %v3170
      %v3172 = vrot.slane %v2407, 1
      %v3173 = vsel %vm1677, %v3170, %v3172
      %v3174 = vrot.slane %v2408, 1
      %v3175 = vsel %vm1677, %v3172, %v3174
      %v3176 = vrot.slane %v2409, 1
      %v3177 = vsel %vm1677, %v3174, %v3176
      %v3178 = vrot.slane %v2410, 1
      %v3179 = vsel %vm1677, %v3176, %v3178
      %v3180 = vrot.slane %v2411, 1
      %v3181 = vsel %vm1677, %v3178, %v3180
      %v3182 = vrot.slane %v2412, 1
      %v3183 = vsel %vm1677, %v3180, %v3182
      %v3184 = vrot.slane %v2413, 1
      %v3185 = vsel %vm1677, %v3182, %v3184
      %v3186 = vrot.slane %v2414, 1
      %v3187 = vsel %vm1677, %v3184, %v3186
      %v3188 = vrot.slane %v2415, 1
      %v3189 = vsel %vm1677, %v3186, %v3188
      %v3190 = vrot.slane %v2416, 1
      %v3191 = vsel %vm1677, %v3188, %v3190
      %v3192 = vrot.slane %v2417, 1
      %v3193 = vsel %vm1677, %v3190, %v3192
      %v3194 = vrot.slane %v2418, 1
      %v3195 = vsel %vm1677, %v3192, %v3194
      %v3196 = vrot.slane %v2419, 1
      %v3197 = vsel %vm1677, %v3194, %v3196
      %v3198 = vrot.slane %v2420, 1
      %v3199 = vsel %vm1677, %v3196, %v3198
      %v3200 = vrot.slane %v2421, 1
      %v3201 = vsel %vm1677, %v3198, %v3200
      %v3202 = vrot.slane %v2422, 1
      %v3203 = vsel %vm1677, %v3200, %v3202
      %v3204 = vrot.slane %v2423, 1
      %v3205 = vsel %vm1677, %v3202, %v3204
      %v3206 = vrot.slane %v2424, 1
      %v3207 = vsel %vm1677, %v3204, %v3206
      %v3209 = vsel %vm925, %v3145, 0
      %v3212 = vsel %vm925, %v3147, 0
      %v3215 = vsel %vm925, %v3149, 0
      %v3218 = vsel %vm925, %v3151, 0
      %v3221 = vsel %vm925, %v3153, 0
      %v3224 = vsel %vm925, %v3155, 0
      %v3227 = vsel %vm925, %v3157, 0
      %v3230 = vsel %vm925, %v3159, 0
      %v3233 = vsel %vm925, %v3161, 0
      %v3236 = vsel %vm925, %v3163, 0
      %v3239 = vsel %vm925, %v3165, 0
      %v3242 = vsel %vm925, %v3167, 0
      %v3245 = vsel %vm925, %v3169, 0
      %v3248 = vsel %vm925, %v3171, 0
      %v3251 = vsel %vm925, %v3173, 0
      %v3254 = vsel %vm925, %v3175, 0
      %v3257 = vsel %vm925, %v3177, 0
      %v3260 = vsel %vm925, %v3179, 0
      %v3263 = vsel %vm925, %v3181, 0
      %v3266 = vsel %vm925, %v3183, 0
      %v3269 = vsel %vm925, %v3185, 0
      %v3272 = vsel %vm925, %v3187, 0
      %v3275 = vsel %vm925, %v3189, 0
      %v3278 = vsel %vm925, %v3191, 0
      %v3281 = vsel %vm925, %v3193, 0
      %v3284 = vsel %vm925, %v3195, 0
      %v3287 = vsel %vm925, %v3197, 0
      %v3290 = vsel %vm925, %v3199, 0
      %v3293 = vsel %vm925, %v3201, 0
      %v3296 = vsel %vm925, %v3203, 0
      %v3299 = vsel %vm925, %v3205, 0
      %v3302 = vsel %vm925, %v3207, 0
      %v3305 = vsel %vm1022, %v3139, 0
      %3307 = vmatprep.subr.bf16.mxu0 0
      %3308 = vmatpush1.bf16.msra.mxu0 0
      %3309 = vmatprep.subr.bf16.mxu0 0
      %3310 = vmatpush1.bf16.msra.mxu0 0
      %3311 = vmatprep.subr.bf16.mxu0 0
      %3312 = vmatpush1.bf16.msra.mxu0 0
      %3313 = vmatprep.subr.bf16.mxu0 0
      %3314 = vmatpush1.bf16.msra.mxu0 0
      %3315 = vmatprep.subr.bf16.mxu0 0
      %3316 = vmatpush1.bf16.msra.mxu0 0
      %3317 = vmatprep.subr.bf16.mxu0 0
      %3318 = vmatpush1.bf16.msra.mxu0 0
      %3319 = vmatprep.subr.bf16.mxu0 0
      %3320 = vmatpush1.bf16.msra.mxu0 0
      %3321 = vmatprep.subr.bf16.mxu0 0
      %3322 = vmatpush1.bf16.msra.mxu0 %v3305
      %3323 = vmatprep.subr.bf16.mxu0 0
      %3324 = vmatpush2.bf16.msra.mxu0 0
      %3325 = vmatprep.subr.bf16.mxu0 0
      %3326 = vmatpush2.bf16.msra.mxu0 0
      %3327 = vmatprep.subr.bf16.mxu0 0
      %3328 = vmatpush2.bf16.msra.mxu0 0
      %3329 = vmatprep.subr.bf16.mxu0 0
      %3330 = vmatpush2.bf16.msra.mxu0 0
      %3331 = vmatprep.subr.bf16.mxu0 0
      %3332 = vmatpush2.bf16.msra.mxu0 0
      %3333 = vmatprep.subr.bf16.mxu0 0
      %3334 = vmatpush2.bf16.msra.mxu0 0
      %3335 = vmatprep.subr.bf16.mxu0 0
      %3336 = vmatpush2.bf16.msra.mxu0 0
      %3337 = vmatprep.subr.bf16.mxu0 0
      %3338 = vmatpush2.bf16.msra.mxu0 0
      %3339 = vmatprep.mubr.bf16.mxu0 0
      %3340 = vmatmul.mubr.bf16.gmra.mxu0 %v3209
      %v3341 = vpop.f32.mrf.mxu0
      %v3342 = vadd.f32 0.0, %v3341
      %v3343 = vpop.f32.mrf.mxu0
      %v3344 = vpop.f32.mrf.mxu0
      %v3345 = vadd.f32 0.0, %v3344
      %v3346 = vpop.f32.mrf.mxu0
      %3347 = vmatprep.mubr.bf16.mxu0 0
      %3348 = vmatmul.mubr.bf16.gmra.mxu0 %v3212
      %v3349 = vpop.f32.mrf.mxu0
      %v3350 = vadd.f32 0.0, %v3349
      %v3351 = vpop.f32.mrf.mxu0
      %v3352 = vpop.f32.mrf.mxu0
      %v3353 = vadd.f32 0.0, %v3352
      %v3354 = vpop.f32.mrf.mxu0
      %3355 = vmatprep.mubr.bf16.mxu0 0
      %3356 = vmatmul.mubr.bf16.gmra.mxu0 %v3215
      %v3357 = vpop.f32.mrf.mxu0
      %v3358 = vadd.f32 0.0, %v3357
      %v3359 = vpop.f32.mrf.mxu0
      %v3360 = vpop.f32.mrf.mxu0
      %v3361 = vadd.f32 0.0, %v3360
      %v3362 = vpop.f32.mrf.mxu0
      %3363 = vmatprep.mubr.bf16.mxu0 0
      %3364 = vmatmul.mubr.bf16.gmra.mxu0 %v3218
      %v3365 = vpop.f32.mrf.mxu0
      %v3366 = vadd.f32 0.0, %v3365
      %v3367 = vpop.f32.mrf.mxu0
      %v3368 = vpop.f32.mrf.mxu0
      %v3369 = vadd.f32 0.0, %v3368
      %v3370 = vpop.f32.mrf.mxu0
      %3371 = vmatprep.mubr.bf16.mxu0 0
      %3372 = vmatmul.mubr.bf16.gmra.mxu0 %v3221
      %v3373 = vpop.f32.mrf.mxu0
      %v3374 = vadd.f32 0.0, %v3373
      %v3375 = vpop.f32.mrf.mxu0
      %v3376 = vpop.f32.mrf.mxu0
      %v3377 = vadd.f32 0.0, %v3376
      %v3378 = vpop.f32.mrf.mxu0
      %3379 = vmatprep.mubr.bf16.mxu0 0
      %3380 = vmatmul.mubr.bf16.gmra.mxu0 %v3224
      %v3381 = vpop.f32.mrf.mxu0
      %v3382 = vadd.f32 0.0, %v3381
      %v3383 = vpop.f32.mrf.mxu0
      %v3384 = vpop.f32.mrf.mxu0
      %v3385 = vadd.f32 0.0, %v3384
      %v3386 = vpop.f32.mrf.mxu0
      %3387 = vmatprep.mubr.bf16.mxu0 0
      %3388 = vmatmul.mubr.bf16.gmra.mxu0 %v3227
      %v3389 = vpop.f32.mrf.mxu0
      %v3390 = vadd.f32 0.0, %v3389
      %v3391 = vpop.f32.mrf.mxu0
      %v3392 = vpop.f32.mrf.mxu0
      %v3393 = vadd.f32 0.0, %v3392
      %v3394 = vpop.f32.mrf.mxu0
      %3395 = vmatprep.mubr.bf16.mxu0 0
      %3396 = vmatmul.mubr.bf16.gmra.mxu0 %v3230
      %v3397 = vpop.f32.mrf.mxu0
      %v3398 = vadd.f32 0.0, %v3397
      %v3399 = vpop.f32.mrf.mxu0
      %v3400 = vpop.f32.mrf.mxu0
      %v3401 = vadd.f32 0.0, %v3400
      %v3402 = vpop.f32.mrf.mxu0
      %3403 = vmatprep.mubr.bf16.mxu0 0
      %3404 = vmatmul.mubr.bf16.gmra.mxu0 %v3233
      %v3405 = vpop.f32.mrf.mxu0
      %v3406 = vadd.f32 0.0, %v3405
      %v3407 = vpop.f32.mrf.mxu0
      %v3408 = vpop.f32.mrf.mxu0
      %v3409 = vadd.f32 0.0, %v3408
      %v3410 = vpop.f32.mrf.mxu0
      %3411 = vmatprep.mubr.bf16.mxu0 0
      %3412 = vmatmul.mubr.bf16.gmra.mxu0 %v3236
      %v3413 = vpop.f32.mrf.mxu0
      %v3414 = vadd.f32 0.0, %v3413
      %v3415 = vpop.f32.mrf.mxu0
      %v3416 = vpop.f32.mrf.mxu0
      %v3417 = vadd.f32 0.0, %v3416
      %v3418 = vpop.f32.mrf.mxu0
      %3419 = vmatprep.mubr.bf16.mxu0 0
      %3420 = vmatmul.mubr.bf16.gmra.mxu0 %v3239
      %v3421 = vpop.f32.mrf.mxu0
      %v3422 = vadd.f32 0.0, %v3421
      %v3423 = vpop.f32.mrf.mxu0
      %v3424 = vpop.f32.mrf.mxu0
      %v3425 = vadd.f32 0.0, %v3424
      %v3426 = vpop.f32.mrf.mxu0
      %3427 = vmatprep.mubr.bf16.mxu0 0
      %3428 = vmatmul.mubr.bf16.gmra.mxu0 %v3242
      %v3429 = vpop.f32.mrf.mxu0
      %v3430 = vadd.f32 0.0, %v3429
      %v3431 = vpop.f32.mrf.mxu0
      %v3432 = vpop.f32.mrf.mxu0
      %v3433 = vadd.f32 0.0, %v3432
      %v3434 = vpop.f32.mrf.mxu0
      %3435 = vmatprep.mubr.bf16.mxu0 0
      %3436 = vmatmul.mubr.bf16.gmra.mxu0 %v3245
      %v3437 = vpop.f32.mrf.mxu0
      %v3438 = vadd.f32 0.0, %v3437
      %v3439 = vpop.f32.mrf.mxu0
      %v3440 = vpop.f32.mrf.mxu0
      %v3441 = vadd.f32 0.0, %v3440
      %v3442 = vpop.f32.mrf.mxu0
      %3443 = vmatprep.mubr.bf16.mxu0 0
      %3444 = vmatmul.mubr.bf16.gmra.mxu0 %v3248
      %v3445 = vpop.f32.mrf.mxu0
      %v3446 = vadd.f32 0.0, %v3445
      %v3447 = vpop.f32.mrf.mxu0
      %v3448 = vpop.f32.mrf.mxu0
      %v3449 = vadd.f32 0.0, %v3448
      %v3450 = vpop.f32.mrf.mxu0
      %3451 = vmatprep.mubr.bf16.mxu0 0
      %3452 = vmatmul.mubr.bf16.gmra.mxu0 %v3251
      %v3453 = vpop.f32.mrf.mxu0
      %v3454 = vadd.f32 0.0, %v3453
      %v3455 = vpop.f32.mrf.mxu0
      %v3456 = vpop.f32.mrf.mxu0
      %v3457 = vadd.f32 0.0, %v3456
      %v3458 = vpop.f32.mrf.mxu0
      %3459 = vmatprep.mubr.bf16.mxu0 0
      %3460 = vmatmul.mubr.bf16.gmra.mxu0 %v3254
      %v3461 = vpop.f32.mrf.mxu0
      %v3462 = vadd.f32 0.0, %v3461
      %v3463 = vpop.f32.mrf.mxu0
      %v3464 = vpop.f32.mrf.mxu0
      %v3465 = vadd.f32 0.0, %v3464
      %v3466 = vpop.f32.mrf.mxu0
      %3467 = vmatprep.mubr.bf16.mxu0 0
      %3468 = vmatmul.mubr.bf16.gmra.mxu0 %v3257
      %v3469 = vpop.f32.mrf.mxu0
      %v3470 = vadd.f32 0.0, %v3469
      %v3471 = vpop.f32.mrf.mxu0
      %v3472 = vpop.f32.mrf.mxu0
      %v3473 = vadd.f32 0.0, %v3472
      %v3474 = vpop.f32.mrf.mxu0
      %3475 = vmatprep.mubr.bf16.mxu0 0
      %3476 = vmatmul.mubr.bf16.gmra.mxu0 %v3260
      %v3477 = vpop.f32.mrf.mxu0
      %v3478 = vadd.f32 0.0, %v3477
      %v3479 = vpop.f32.mrf.mxu0
      %v3480 = vpop.f32.mrf.mxu0
      %v3481 = vadd.f32 0.0, %v3480
      %v3482 = vpop.f32.mrf.mxu0
      %3483 = vmatprep.mubr.bf16.mxu0 0
      %3484 = vmatmul.mubr.bf16.gmra.mxu0 %v3263
      %v3485 = vpop.f32.mrf.mxu0
      %v3486 = vadd.f32 0.0, %v3485
      %v3487 = vpop.f32.mrf.mxu0
      %v3488 = vpop.f32.mrf.mxu0
      %v3489 = vadd.f32 0.0, %v3488
      %v3490 = vpop.f32.mrf.mxu0
      %3491 = vmatprep.mubr.bf16.mxu0 0
      %3492 = vmatmul.mubr.bf16.gmra.mxu0 %v3266
      %v3493 = vpop.f32.mrf.mxu0
      %v3494 = vadd.f32 0.0, %v3493
      %v3495 = vpop.f32.mrf.mxu0
      %v3496 = vpop.f32.mrf.mxu0
      %v3497 = vadd.f32 0.0, %v3496
      %v3498 = vpop.f32.mrf.mxu0
      %3499 = vmatprep.mubr.bf16.mxu0 0
      %3500 = vmatmul.mubr.bf16.gmra.mxu0 %v3269
      %v3501 = vpop.f32.mrf.mxu0
      %v3502 = vadd.f32 0.0, %v3501
      %v3503 = vpop.f32.mrf.mxu0
      %v3504 = vpop.f32.mrf.mxu0
      %v3505 = vadd.f32 0.0, %v3504
      %v3506 = vpop.f32.mrf.mxu0
      %3507 = vmatprep.mubr.bf16.mxu0 0
      %3508 = vmatmul.mubr.bf16.gmra.mxu0 %v3272
      %v3509 = vpop.f32.mrf.mxu0
      %v3510 = vadd.f32 0.0, %v3509
      %v3511 = vpop.f32.mrf.mxu0
      %v3512 = vpop.f32.mrf.mxu0
      %v3513 = vadd.f32 0.0, %v3512
      %v3514 = vpop.f32.mrf.mxu0
      %3515 = vmatprep.mubr.bf16.mxu0 0
      %3516 = vmatmul.mubr.bf16.gmra.mxu0 %v3275
      %v3517 = vpop.f32.mrf.mxu0
      %v3518 = vadd.f32 0.0, %v3517
      %v3519 = vpop.f32.mrf.mxu0
      %v3520 = vpop.f32.mrf.mxu0
      %v3521 = vadd.f32 0.0, %v3520
      %v3522 = vpop.f32.mrf.mxu0
      %3523 = vmatprep.mubr.bf16.mxu0 0
      %3524 = vmatmul.mubr.bf16.gmra.mxu0 %v3278
      %v3525 = vpop.f32.mrf.mxu0
      %v3526 = vadd.f32 0.0, %v3525
      %v3527 = vpop.f32.mrf.mxu0
      %v3528 = vpop.f32.mrf.mxu0
      %v3529 = vadd.f32 0.0, %v3528
      %v3530 = vpop.f32.mrf.mxu0
      %3531 = vmatprep.mubr.bf16.mxu0 0
      %3532 = vmatmul.mubr.bf16.gmra.mxu0 %v3281
      %v3533 = vpop.f32.mrf.mxu0
      %v3534 = vadd.f32 0.0, %v3533
      %v3535 = vpop.f32.mrf.mxu0
      %v3536 = vpop.f32.mrf.mxu0
      %v3537 = vadd.f32 0.0, %v3536
      %v3538 = vpop.f32.mrf.mxu0
      %3539 = vmatprep.mubr.bf16.mxu0 0
      %3540 = vmatmul.mubr.bf16.gmra.mxu0 %v3284
      %v3541 = vpop.f32.mrf.mxu0
      %v3542 = vadd.f32 0.0, %v3541
      %v3543 = vpop.f32.mrf.mxu0
      %v3544 = vpop.f32.mrf.mxu0
      %v3545 = vadd.f32 0.0, %v3544
      %v3546 = vpop.f32.mrf.mxu0
      %3547 = vmatprep.mubr.bf16.mxu0 0
      %3548 = vmatmul.mubr.bf16.gmra.mxu0 %v3287
      %v3549 = vpop.f32.mrf.mxu0
      %v3550 = vadd.f32 0.0, %v3549
      %v3551 = vpop.f32.mrf.mxu0
      %v3552 = vpop.f32.mrf.mxu0
      %v3553 = vadd.f32 0.0, %v3552
      %v3554 = vpop.f32.mrf.mxu0
      %3555 = vmatprep.mubr.bf16.mxu0 0
      %3556 = vmatmul.mubr.bf16.gmra.mxu0 %v3290
      %v3557 = vpop.f32.mrf.mxu0
      %v3558 = vadd.f32 0.0, %v3557
      %v3559 = vpop.f32.mrf.mxu0
      %v3560 = vpop.f32.mrf.mxu0
      %v3561 = vadd.f32 0.0, %v3560
      %v3562 = vpop.f32.mrf.mxu0
      %3563 = vmatprep.mubr.bf16.mxu0 0
      %3564 = vmatmul.mubr.bf16.gmra.mxu0 %v3293
      %v3565 = vpop.f32.mrf.mxu0
      %v3566 = vadd.f32 0.0, %v3565
      %v3567 = vpop.f32.mrf.mxu0
      %v3568 = vpop.f32.mrf.mxu0
      %v3569 = vadd.f32 0.0, %v3568
      %v3570 = vpop.f32.mrf.mxu0
      %3571 = vmatprep.mubr.bf16.mxu0 0
      %3572 = vmatmul.mubr.bf16.gmra.mxu0 %v3296
      %v3573 = vpop.f32.mrf.mxu0
      %v3574 = vadd.f32 0.0, %v3573
      %v3575 = vpop.f32.mrf.mxu0
      %v3576 = vpop.f32.mrf.mxu0
      %v3577 = vadd.f32 0.0, %v3576
      %v3578 = vpop.f32.mrf.mxu0
      %3579 = vmatprep.mubr.bf16.mxu0 0
      %3580 = vmatmul.mubr.bf16.gmra.mxu0 %v3299
      %v3581 = vpop.f32.mrf.mxu0
      %v3582 = vadd.f32 0.0, %v3581
      %v3583 = vpop.f32.mrf.mxu0
      %v3584 = vpop.f32.mrf.mxu0
      %v3585 = vadd.f32 0.0, %v3584
      %v3586 = vpop.f32.mrf.mxu0
      %3587 = vmatprep.mubr.bf16.mxu0 0
      %3588 = vmatmul.mubr.bf16.gmra.mxu0 %v3302
      %v3589 = vpop.f32.mrf.mxu0
      %v3590 = vadd.f32 0.0, %v3589
      %v3591 = vpop.f32.mrf.mxu0
      %v3592 = vpop.f32.mrf.mxu0
      %v3593 = vadd.f32 0.0, %v3592
      %v3594 = vpop.f32.mrf.mxu0
      %3595 = vdwg.mxu0
      %v3596 = vadd.f32 %v3073, %v3342
      %v3597 = vadd.f32 %v3074, %v3345
      %v3598 = vadd.f32 %v3075, %v3350
      %v3599 = vadd.f32 %v3076, %v3353
      %v3600 = vadd.f32 %v3077, %v3358
      %v3601 = vadd.f32 %v3078, %v3361
      %v3602 = vadd.f32 %v3079, %v3366
      %v3603 = vadd.f32 %v3080, %v3369
      %v3604 = vadd.f32 %v3081, %v3374
      %v3605 = vadd.f32 %v3082, %v3377
      %v3606 = vadd.f32 %v3083, %v3382
      %v3607 = vadd.f32 %v3084, %v3385
      %v3608 = vadd.f32 %v3085, %v3390
      %v3609 = vadd.f32 %v3086, %v3393
      %v3610 = vadd.f32 %v3087, %v3398
      %v3611 = vadd.f32 %v3088, %v3401
      %v3612 = vadd.f32 %v3089, %v3406
      %v3613 = vadd.f32 %v3090, %v3409
      %v3614 = vadd.f32 %v3091, %v3414
      %v3615 = vadd.f32 %v3092, %v3417
      %v3616 = vadd.f32 %v3093, %v3422
      %v3617 = vadd.f32 %v3094, %v3425
      %v3618 = vadd.f32 %v3095, %v3430
      %v3619 = vadd.f32 %v3096, %v3433
      %v3620 = vadd.f32 %v3097, %v3438
      %v3621 = vadd.f32 %v3098, %v3441
      %v3622 = vadd.f32 %v3099, %v3446
      %v3623 = vadd.f32 %v3100, %v3449
      %v3624 = vadd.f32 %v3101, %v3454
      %v3625 = vadd.f32 %v3102, %v3457
      %v3626 = vadd.f32 %v3103, %v3462
      %v3627 = vadd.f32 %v3104, %v3465
      %v3628 = vadd.f32 %v3105, %v3470
      %v3629 = vadd.f32 %v3106, %v3473
      %v3630 = vadd.f32 %v3107, %v3478
      %v3631 = vadd.f32 %v3108, %v3481
      %v3632 = vadd.f32 %v3109, %v3486
      %v3633 = vadd.f32 %v3110, %v3489
      %v3634 = vadd.f32 %v3111, %v3494
      %v3635 = vadd.f32 %v3112, %v3497
      %v3636 = vadd.f32 %v3113, %v3502
      %v3637 = vadd.f32 %v3114, %v3505
      %v3638 = vadd.f32 %v3115, %v3510
      %v3639 = vadd.f32 %v3116, %v3513
      %v3640 = vadd.f32 %v3117, %v3518
      %v3641 = vadd.f32 %v3118, %v3521
      %v3642 = vadd.f32 %v3119, %v3526
      %v3643 = vadd.f32 %v3120, %v3529
      %v3644 = vadd.f32 %v3121, %v3534
      %v3645 = vadd.f32 %v3122, %v3537
      %v3646 = vadd.f32 %v3123, %v3542
      %v3647 = vadd.f32 %v3124, %v3545
      %v3648 = vadd.f32 %v3125, %v3550
      %v3649 = vadd.f32 %v3126, %v3553
      %v3650 = vadd.f32 %v3127, %v3558
      %v3651 = vadd.f32 %v3128, %v3561
      %v3652 = vadd.f32 %v3129, %v3566
      %v3653 = vadd.f32 %v3130, %v3569
      %v3654 = vadd.f32 %v3131, %v3574
      %v3655 = vadd.f32 %v3132, %v3577
      %v3656 = vadd.f32 %v3133, %v3582
      %v3657 = vadd.f32 %v3134, %v3585
      %v3658 = vadd.f32 %v3135, %v3590
      %v3659 = vadd.f32 %v3136, %v3593
      %v3660 = vld [vmem:[#allocation2 + $0x108] sm:$0x3]
      %s3661 = scalar_lea.vmem %s279, 10
      %v3662 = vld [vmem:[%s3661] sm:$0x3]
      %v3664 = vunpack.c.l.b16 %v3660
      %v3665 = vpack.c.b16 %v3664, %v3664
      %vm3666 = vsmask.f32 6400
      %v3668 = vshrl.u32 %v3142, 16
      %v3670 = vrot.slane %v3668, 1
      %v3671 = vshll.u32 %v3142, 16
      %v3673 = vrot.slane %v3671, 2
      %v3674 = vor.u32 %v3670, %v3673
      %v3675 = vrot.slane %v2437, 1
      %v3676 = vrot.slane %v2433, 2
      %v3677 = vor.u32 %v3675, %v3676
      %v3678 = vsel %vm3666, %v3674, %v3677
      %v3679 = vrot.slane %v2445, 1
      %v3680 = vrot.slane %v2441, 2
      %v3681 = vor.u32 %v3679, %v3680
      %v3682 = vsel %vm3666, %v3677, %v3681
      %v3683 = vrot.slane %v2453, 1
      %v3684 = vrot.slane %v2449, 2
      %v3685 = vor.u32 %v3683, %v3684
      %v3686 = vsel %vm3666, %v3681, %v3685
      %v3687 = vrot.slane %v2461, 1
      %v3688 = vrot.slane %v2457, 2
      %v3689 = vor.u32 %v3687, %v3688
      %v3690 = vsel %vm3666, %v3685, %v3689
      %v3691 = vrot.slane %v2469, 1
      %v3692 = vrot.slane %v2465, 2
      %v3693 = vor.u32 %v3691, %v3692
      %v3694 = vsel %vm3666, %v3689, %v3693
      %v3695 = vrot.slane %v2477, 1
      %v3696 = vrot.slane %v2473, 2
      %v3697 = vor.u32 %v3695, %v3696
      %v3698 = vsel %vm3666, %v3693, %v3697
      %v3699 = vrot.slane %v2485, 1
      %v3700 = vrot.slane %v2481, 2
      %v3701 = vor.u32 %v3699, %v3700
      %v3702 = vsel %vm3666, %v3697, %v3701
      %v3703 = vrot.slane %v2493, 1
      %v3704 = vrot.slane %v2489, 2
      %v3705 = vor.u32 %v3703, %v3704
      %v3706 = vsel %vm3666, %v3701, %v3705
      %v3707 = vrot.slane %v2501, 1
      %v3708 = vrot.slane %v2497, 2
      %v3709 = vor.u32 %v3707, %v3708
      %v3710 = vsel %vm3666, %v3705, %v3709
      %v3711 = vrot.slane %v2509, 1
      %v3712 = vrot.slane %v2505, 2
      %v3713 = vor.u32 %v3711, %v3712
      %v3714 = vsel %vm3666, %v3709, %v3713
      %v3715 = vrot.slane %v2517, 1
      %v3716 = vrot.slane %v2513, 2
      %v3717 = vor.u32 %v3715, %v3716
      %v3718 = vsel %vm3666, %v3713, %v3717
      %v3719 = vrot.slane %v2525, 1
      %v3720 = vrot.slane %v2521, 2
      %v3721 = vor.u32 %v3719, %v3720
      %v3722 = vsel %vm3666, %v3717, %v3721
      %v3723 = vrot.slane %v2533, 1
      %v3724 = vrot.slane %v2529, 2
      %v3725 = vor.u32 %v3723, %v3724
      %v3726 = vsel %vm3666, %v3721, %v3725
      %v3727 = vrot.slane %v2541, 1
      %v3728 = vrot.slane %v2537, 2
      %v3729 = vor.u32 %v3727, %v3728
      %v3730 = vsel %vm3666, %v3725, %v3729
      %v3731 = vrot.slane %v2549, 1
      %v3732 = vrot.slane %v2545, 2
      %v3733 = vor.u32 %v3731, %v3732
      %v3734 = vsel %vm3666, %v3729, %v3733
      %v3735 = vrot.slane %v2557, 1
      %v3736 = vrot.slane %v2553, 2
      %v3737 = vor.u32 %v3735, %v3736
      %v3738 = vsel %vm3666, %v3733, %v3737
      %v3739 = vrot.slane %v2565, 1
      %v3740 = vrot.slane %v2561, 2
      %v3741 = vor.u32 %v3739, %v3740
      %v3742 = vsel %vm3666, %v3737, %v3741
      %v3743 = vrot.slane %v2573, 1
      %v3744 = vrot.slane %v2569, 2
      %v3745 = vor.u32 %v3743, %v3744
      %v3746 = vsel %vm3666, %v3741, %v3745
      %v3747 = vrot.slane %v2581, 1
      %v3748 = vrot.slane %v2577, 2
      %v3749 = vor.u32 %v3747, %v3748
      %v3750 = vsel %vm3666, %v3745, %v3749
      %v3751 = vrot.slane %v2589, 1
      %v3752 = vrot.slane %v2585, 2
      %v3753 = vor.u32 %v3751, %v3752
      %v3754 = vsel %vm3666, %v3749, %v3753
      %v3755 = vrot.slane %v2597, 1
      %v3756 = vrot.slane %v2593, 2
      %v3757 = vor.u32 %v3755, %v3756
      %v3758 = vsel %vm3666, %v3753, %v3757
      %v3759 = vrot.slane %v2605, 1
      %v3760 = vrot.slane %v2601, 2
      %v3761 = vor.u32 %v3759, %v3760
      %v3762 = vsel %vm3666, %v3757, %v3761
      %v3763 = vrot.slane %v2613, 1
      %v3764 = vrot.slane %v2609, 2
      %v3765 = vor.u32 %v3763, %v3764
      %v3766 = vsel %vm3666, %v3761, %v3765
      %v3767 = vrot.slane %v2621, 1
      %v3768 = vrot.slane %v2617, 2
      %v3769 = vor.u32 %v3767, %v3768
      %v3770 = vsel %vm3666, %v3765, %v3769
      %v3771 = vrot.slane %v2629, 1
      %v3772 = vrot.slane %v2625, 2
      %v3773 = vor.u32 %v3771, %v3772
      %v3774 = vsel %vm3666, %v3769, %v3773
      %v3775 = vrot.slane %v2637, 1
      %v3776 = vrot.slane %v2633, 2
      %v3777 = vor.u32 %v3775, %v3776
      %v3778 = vsel %vm3666, %v3773, %v3777
      %v3779 = vrot.slane %v2645, 1
      %v3780 = vrot.slane %v2641, 2
      %v3781 = vor.u32 %v3779, %v3780
      %v3782 = vsel %vm3666, %v3777, %v3781
      %v3783 = vrot.slane %v2653, 1
      %v3784 = vrot.slane %v2649, 2
      %v3785 = vor.u32 %v3783, %v3784
      %v3786 = vsel %vm3666, %v3781, %v3785
      %v3787 = vrot.slane %v2661, 1
      %v3788 = vrot.slane %v2657, 2
      %v3789 = vor.u32 %v3787, %v3788
      %v3790 = vsel %vm3666, %v3785, %v3789
      %v3791 = vrot.slane %v2669, 1
      %v3792 = vrot.slane %v2665, 2
      %v3793 = vor.u32 %v3791, %v3792
      %v3794 = vsel %vm3666, %v3789, %v3793
      %v3795 = vrot.slane %v2677, 1
      %v3796 = vrot.slane %v2673, 2
      %v3797 = vor.u32 %v3795, %v3796
      %v3798 = vsel %vm3666, %v3793, %v3797
      %v3800 = vshrl.u32 %v3665, 16
      %v3802 = vrot.slane %v3800, 1
      %v3803 = vshll.u32 %v3665, 16
      %v3805 = vrot.slane %v3803, 2
      %v3806 = vor.u32 %v3802, %v3805
      %v3807 = vsel %vm3666, %v3797, %v3806
      %v3809 = vsel %vm925, %v3678, 0
      %v3812 = vsel %vm925, %v3682, 0
      %v3815 = vsel %vm925, %v3686, 0
      %v3818 = vsel %vm925, %v3690, 0
      %v3821 = vsel %vm925, %v3694, 0
      %v3824 = vsel %vm925, %v3698, 0
      %v3827 = vsel %vm925, %v3702, 0
      %v3830 = vsel %vm925, %v3706, 0
      %v3833 = vsel %vm925, %v3710, 0
      %v3836 = vsel %vm925, %v3714, 0
      %v3839 = vsel %vm925, %v3718, 0
      %v3842 = vsel %vm925, %v3722, 0
      %v3845 = vsel %vm925, %v3726, 0
      %v3848 = vsel %vm925, %v3730, 0
      %v3851 = vsel %vm925, %v3734, 0
      %v3854 = vsel %vm925, %v3738, 0
      %v3857 = vsel %vm925, %v3742, 0
      %v3860 = vsel %vm925, %v3746, 0
      %v3863 = vsel %vm925, %v3750, 0
      %v3866 = vsel %vm925, %v3754, 0
      %v3869 = vsel %vm925, %v3758, 0
      %v3872 = vsel %vm925, %v3762, 0
      %v3875 = vsel %vm925, %v3766, 0
      %v3878 = vsel %vm925, %v3770, 0
      %v3881 = vsel %vm925, %v3774, 0
      %v3884 = vsel %vm925, %v3778, 0
      %v3887 = vsel %vm925, %v3782, 0
      %v3890 = vsel %vm925, %v3786, 0
      %v3893 = vsel %vm925, %v3790, 0
      %v3896 = vsel %vm925, %v3794, 0
      %v3899 = vsel %vm925, %v3798, 0
      %v3902 = vsel %vm925, %v3807, 0
      %v3905 = vsel %vm1022, %v3662, 0
      %3907 = vmatprep.subr.bf16.mxu0 0
      %3908 = vmatpush1.bf16.msra.mxu0 0
      %3909 = vmatprep.subr.bf16.mxu0 0
      %3910 = vmatpush1.bf16.msra.mxu0 0
      %3911 = vmatprep.subr.bf16.mxu0 0
      %3912 = vmatpush1.bf16.msra.mxu0 0
      %3913 = vmatprep.subr.bf16.mxu0 0
      %3914 = vmatpush1.bf16.msra.mxu0 0
      %3915 = vmatprep.subr.bf16.mxu0 0
      %3916 = vmatpush1.bf16.msra.mxu0 0
      %3917 = vmatprep.subr.bf16.mxu0 0
      %3918 = vmatpush1.bf16.msra.mxu0 0
      %3919 = vmatprep.subr.bf16.mxu0 0
      %3920 = vmatpush1.bf16.msra.mxu0 0
      %3921 = vmatprep.subr.bf16.mxu0 0
      %3922 = vmatpush1.bf16.msra.mxu0 %v3905
      %3923 = vmatprep.subr.bf16.mxu0 0
      %3924 = vmatpush2.bf16.msra.mxu0 0
      %3925 = vmatprep.subr.bf16.mxu0 0
      %3926 = vmatpush2.bf16.msra.mxu0 0
      %3927 = vmatprep.subr.bf16.mxu0 0
      %3928 = vmatpush2.bf16.msra.mxu0 0
      %3929 = vmatprep.subr.bf16.mxu0 0
      %3930 = vmatpush2.bf16.msra.mxu0 0
      %3931 = vmatprep.subr.bf16.mxu0 0
      %3932 = vmatpush2.bf16.msra.mxu0 0
      %3933 = vmatprep.subr.bf16.mxu0 0
      %3934 = vmatpush2.bf16.msra.mxu0 0
      %3935 = vmatprep.subr.bf16.mxu0 0
      %3936 = vmatpush2.bf16.msra.mxu0 0
      %3937 = vmatprep.subr.bf16.mxu0 0
      %3938 = vmatpush2.bf16.msra.mxu0 0
      %3939 = vmatprep.mubr.bf16.mxu0 0
      %3940 = vmatmul.mubr.bf16.gmra.mxu0 %v3809
      %v3941 = vpop.f32.mrf.mxu0
      %v3942 = vadd.f32 0.0, %v3941
      %v3943 = vpop.f32.mrf.mxu0
      %v3944 = vpop.f32.mrf.mxu0
      %v3945 = vadd.f32 0.0, %v3944
      %v3946 = vpop.f32.mrf.mxu0
      %3947 = vmatprep.mubr.bf16.mxu0 0
      %3948 = vmatmul.mubr.bf16.gmra.mxu0 %v3812
      %v3949 = vpop.f32.mrf.mxu0
      %v3950 = vadd.f32 0.0, %v3949
      %v3951 = vpop.f32.mrf.mxu0
      %v3952 = vpop.f32.mrf.mxu0
      %v3953 = vadd.f32 0.0, %v3952
      %v3954 = vpop.f32.mrf.mxu0
      %3955 = vmatprep.mubr.bf16.mxu0 0
      %3956 = vmatmul.mubr.bf16.gmra.mxu0 %v3815
      %v3957 = vpop.f32.mrf.mxu0
      %v3958 = vadd.f32 0.0, %v3957
      %v3959 = vpop.f32.mrf.mxu0
      %v3960 = vpop.f32.mrf.mxu0
      %v3961 = vadd.f32 0.0, %v3960
      %v3962 = vpop.f32.mrf.mxu0
      %3963 = vmatprep.mubr.bf16.mxu0 0
      %3964 = vmatmul.mubr.bf16.gmra.mxu0 %v3818
      %v3965 = vpop.f32.mrf.mxu0
      %v3966 = vadd.f32 0.0, %v3965
      %v3967 = vpop.f32.mrf.mxu0
      %v3968 = vpop.f32.mrf.mxu0
      %v3969 = vadd.f32 0.0, %v3968
      %v3970 = vpop.f32.mrf.mxu0
      %3971 = vmatprep.mubr.bf16.mxu0 0
      %3972 = vmatmul.mubr.bf16.gmra.mxu0 %v3821
      %v3973 = vpop.f32.mrf.mxu0
      %v3974 = vadd.f32 0.0, %v3973
      %v3975 = vpop.f32.mrf.mxu0
      %v3976 = vpop.f32.mrf.mxu0
      %v3977 = vadd.f32 0.0, %v3976
      %v3978 = vpop.f32.mrf.mxu0
      %3979 = vmatprep.mubr.bf16.mxu0 0
      %3980 = vmatmul.mubr.bf16.gmra.mxu0 %v3824
      %v3981 = vpop.f32.mrf.mxu0
      %v3982 = vadd.f32 0.0, %v3981
      %v3983 = vpop.f32.mrf.mxu0
      %v3984 = vpop.f32.mrf.mxu0
      %v3985 = vadd.f32 0.0, %v3984
      %v3986 = vpop.f32.mrf.mxu0
      %3987 = vmatprep.mubr.bf16.mxu0 0
      %3988 = vmatmul.mubr.bf16.gmra.mxu0 %v3827
      %v3989 = vpop.f32.mrf.mxu0
      %v3990 = vadd.f32 0.0, %v3989
      %v3991 = vpop.f32.mrf.mxu0
      %v3992 = vpop.f32.mrf.mxu0
      %v3993 = vadd.f32 0.0, %v3992
      %v3994 = vpop.f32.mrf.mxu0
      %3995 = vmatprep.mubr.bf16.mxu0 0
      %3996 = vmatmul.mubr.bf16.gmra.mxu0 %v3830
      %v3997 = vpop.f32.mrf.mxu0
      %v3998 = vadd.f32 0.0, %v3997
      %v3999 = vpop.f32.mrf.mxu0
      %v4000 = vpop.f32.mrf.mxu0
      %v4001 = vadd.f32 0.0, %v4000
      %v4002 = vpop.f32.mrf.mxu0
      %4003 = vmatprep.mubr.bf16.mxu0 0
      %4004 = vmatmul.mubr.bf16.gmra.mxu0 %v3833
      %v4005 = vpop.f32.mrf.mxu0
      %v4006 = vadd.f32 0.0, %v4005
      %v4007 = vpop.f32.mrf.mxu0
      %v4008 = vpop.f32.mrf.mxu0
      %v4009 = vadd.f32 0.0, %v4008
      %v4010 = vpop.f32.mrf.mxu0
      %4011 = vmatprep.mubr.bf16.mxu0 0
      %4012 = vmatmul.mubr.bf16.gmra.mxu0 %v3836
      %v4013 = vpop.f32.mrf.mxu0
      %v4014 = vadd.f32 0.0, %v4013
      %v4015 = vpop.f32.mrf.mxu0
      %v4016 = vpop.f32.mrf.mxu0
      %v4017 = vadd.f32 0.0, %v4016
      %v4018 = vpop.f32.mrf.mxu0
      %4019 = vmatprep.mubr.bf16.mxu0 0
      %4020 = vmatmul.mubr.bf16.gmra.mxu0 %v3839
      %v4021 = vpop.f32.mrf.mxu0
      %v4022 = vadd.f32 0.0, %v4021
      %v4023 = vpop.f32.mrf.mxu0
      %v4024 = vpop.f32.mrf.mxu0
      %v4025 = vadd.f32 0.0, %v4024
      %v4026 = vpop.f32.mrf.mxu0
      %4027 = vmatprep.mubr.bf16.mxu0 0
      %4028 = vmatmul.mubr.bf16.gmra.mxu0 %v3842
      %v4029 = vpop.f32.mrf.mxu0
      %v4030 = vadd.f32 0.0, %v4029
      %v4031 = vpop.f32.mrf.mxu0
      %v4032 = vpop.f32.mrf.mxu0
      %v4033 = vadd.f32 0.0, %v4032
      %v4034 = vpop.f32.mrf.mxu0
      %4035 = vmatprep.mubr.bf16.mxu0 0
      %4036 = vmatmul.mubr.bf16.gmra.mxu0 %v3845
      %v4037 = vpop.f32.mrf.mxu0
      %v4038 = vadd.f32 0.0, %v4037
      %v4039 = vpop.f32.mrf.mxu0
      %v4040 = vpop.f32.mrf.mxu0
      %v4041 = vadd.f32 0.0, %v4040
      %v4042 = vpop.f32.mrf.mxu0
      %4043 = vmatprep.mubr.bf16.mxu0 0
      %4044 = vmatmul.mubr.bf16.gmra.mxu0 %v3848
      %v4045 = vpop.f32.mrf.mxu0
      %v4046 = vadd.f32 0.0, %v4045
      %v4047 = vpop.f32.mrf.mxu0
      %v4048 = vpop.f32.mrf.mxu0
      %v4049 = vadd.f32 0.0, %v4048
      %v4050 = vpop.f32.mrf.mxu0
      %4051 = vmatprep.mubr.bf16.mxu0 0
      %4052 = vmatmul.mubr.bf16.gmra.mxu0 %v3851
      %v4053 = vpop.f32.mrf.mxu0
      %v4054 = vadd.f32 0.0, %v4053
      %v4055 = vpop.f32.mrf.mxu0
      %v4056 = vpop.f32.mrf.mxu0
      %v4057 = vadd.f32 0.0, %v4056
      %v4058 = vpop.f32.mrf.mxu0
      %4059 = vmatprep.mubr.bf16.mxu0 0
      %4060 = vmatmul.mubr.bf16.gmra.mxu0 %v3854
      %v4061 = vpop.f32.mrf.mxu0
      %v4062 = vadd.f32 0.0, %v4061
      %v4063 = vpop.f32.mrf.mxu0
      %v4064 = vpop.f32.mrf.mxu0
      %v4065 = vadd.f32 0.0, %v4064
      %v4066 = vpop.f32.mrf.mxu0
      %4067 = vmatprep.mubr.bf16.mxu0 0
      %4068 = vmatmul.mubr.bf16.gmra.mxu0 %v3857
      %v4069 = vpop.f32.mrf.mxu0
      %v4070 = vadd.f32 0.0, %v4069
      %v4071 = vpop.f32.mrf.mxu0
      %v4072 = vpop.f32.mrf.mxu0
      %v4073 = vadd.f32 0.0, %v4072
      %v4074 = vpop.f32.mrf.mxu0
      %4075 = vmatprep.mubr.bf16.mxu0 0
      %4076 = vmatmul.mubr.bf16.gmra.mxu0 %v3860
      %v4077 = vpop.f32.mrf.mxu0
      %v4078 = vadd.f32 0.0, %v4077
      %v4079 = vpop.f32.mrf.mxu0
      %v4080 = vpop.f32.mrf.mxu0
      %v4081 = vadd.f32 0.0, %v4080
      %v4082 = vpop.f32.mrf.mxu0
      %4083 = vmatprep.mubr.bf16.mxu0 0
      %4084 = vmatmul.mubr.bf16.gmra.mxu0 %v3863
      %v4085 = vpop.f32.mrf.mxu0
      %v4086 = vadd.f32 0.0, %v4085
      %v4087 = vpop.f32.mrf.mxu0
      %v4088 = vpop.f32.mrf.mxu0
      %v4089 = vadd.f32 0.0, %v4088
      %v4090 = vpop.f32.mrf.mxu0
      %4091 = vmatprep.mubr.bf16.mxu0 0
      %4092 = vmatmul.mubr.bf16.gmra.mxu0 %v3866
      %v4093 = vpop.f32.mrf.mxu0
      %v4094 = vadd.f32 0.0, %v4093
      %v4095 = vpop.f32.mrf.mxu0
      %v4096 = vpop.f32.mrf.mxu0
      %v4097 = vadd.f32 0.0, %v4096
      %v4098 = vpop.f32.mrf.mxu0
      %4099 = vmatprep.mubr.bf16.mxu0 0
      %4100 = vmatmul.mubr.bf16.gmra.mxu0 %v3869
      %v4101 = vpop.f32.mrf.mxu0
      %v4102 = vadd.f32 0.0, %v4101
      %v4103 = vpop.f32.mrf.mxu0
      %v4104 = vpop.f32.mrf.mxu0
      %v4105 = vadd.f32 0.0, %v4104
      %v4106 = vpop.f32.mrf.mxu0
      %4107 = vmatprep.mubr.bf16.mxu0 0
      %4108 = vmatmul.mubr.bf16.gmra.mxu0 %v3872
      %v4109 = vpop.f32.mrf.mxu0
      %v4110 = vadd.f32 0.0, %v4109
      %v4111 = vpop.f32.mrf.mxu0
      %v4112 = vpop.f32.mrf.mxu0
      %v4113 = vadd.f32 0.0, %v4112
      %v4114 = vpop.f32.mrf.mxu0
      %4115 = vmatprep.mubr.bf16.mxu0 0
      %4116 = vmatmul.mubr.bf16.gmra.mxu0 %v3875
      %v4117 = vpop.f32.mrf.mxu0
      %v4118 = vadd.f32 0.0, %v4117
      %v4119 = vpop.f32.mrf.mxu0
      %v4120 = vpop.f32.mrf.mxu0
      %v4121 = vadd.f32 0.0, %v4120
      %v4122 = vpop.f32.mrf.mxu0
      %4123 = vmatprep.mubr.bf16.mxu0 0
      %4124 = vmatmul.mubr.bf16.gmra.mxu0 %v3878
      %v4125 = vpop.f32.mrf.mxu0
      %v4126 = vadd.f32 0.0, %v4125
      %v4127 = vpop.f32.mrf.mxu0
      %v4128 = vpop.f32.mrf.mxu0
      %v4129 = vadd.f32 0.0, %v4128
      %v4130 = vpop.f32.mrf.mxu0
      %4131 = vmatprep.mubr.bf16.mxu0 0
      %4132 = vmatmul.mubr.bf16.gmra.mxu0 %v3881
      %v4133 = vpop.f32.mrf.mxu0
      %v4134 = vadd.f32 0.0, %v4133
      %v4135 = vpop.f32.mrf.mxu0
      %v4136 = vpop.f32.mrf.mxu0
      %v4137 = vadd.f32 0.0, %v4136
      %v4138 = vpop.f32.mrf.mxu0
      %4139 = vmatprep.mubr.bf16.mxu0 0
      %4140 = vmatmul.mubr.bf16.gmra.mxu0 %v3884
      %v4141 = vpop.f32.mrf.mxu0
      %v4142 = vadd.f32 0.0, %v4141
      %v4143 = vpop.f32.mrf.mxu0
      %v4144 = vpop.f32.mrf.mxu0
      %v4145 = vadd.f32 0.0, %v4144
      %v4146 = vpop.f32.mrf.mxu0
      %4147 = vmatprep.mubr.bf16.mxu0 0
      %4148 = vmatmul.mubr.bf16.gmra.mxu0 %v3887
      %v4149 = vpop.f32.mrf.mxu0
      %v4150 = vadd.f32 0.0, %v4149
      %v4151 = vpop.f32.mrf.mxu0
      %v4152 = vpop.f32.mrf.mxu0
      %v4153 = vadd.f32 0.0, %v4152
      %v4154 = vpop.f32.mrf.mxu0
      %4155 = vmatprep.mubr.bf16.mxu0 0
      %4156 = vmatmul.mubr.bf16.gmra.mxu0 %v3890
      %v4157 = vpop.f32.mrf.mxu0
      %v4158 = vadd.f32 0.0, %v4157
      %v4159 = vpop.f32.mrf.mxu0
      %v4160 = vpop.f32.mrf.mxu0
      %v4161 = vadd.f32 0.0, %v4160
      %v4162 = vpop.f32.mrf.mxu0
      %4163 = vmatprep.mubr.bf16.mxu0 0
      %4164 = vmatmul.mubr.bf16.gmra.mxu0 %v3893
      %v4165 = vpop.f32.mrf.mxu0
      %v4166 = vadd.f32 0.0, %v4165
      %v4167 = vpop.f32.mrf.mxu0
      %v4168 = vpop.f32.mrf.mxu0
      %v4169 = vadd.f32 0.0, %v4168
      %v4170 = vpop.f32.mrf.mxu0
      %4171 = vmatprep.mubr.bf16.mxu0 0
      %4172 = vmatmul.mubr.bf16.gmra.mxu0 %v3896
      %v4173 = vpop.f32.mrf.mxu0
      %v4174 = vadd.f32 0.0, %v4173
      %v4175 = vpop.f32.mrf.mxu0
      %v4176 = vpop.f32.mrf.mxu0
      %v4177 = vadd.f32 0.0, %v4176
      %v4178 = vpop.f32.mrf.mxu0
      %4179 = vmatprep.mubr.bf16.mxu0 0
      %4180 = vmatmul.mubr.bf16.gmra.mxu0 %v3899
      %v4181 = vpop.f32.mrf.mxu0
      %v4182 = vadd.f32 0.0, %v4181
      %v4183 = vpop.f32.mrf.mxu0
      %v4184 = vpop.f32.mrf.mxu0
      %v4185 = vadd.f32 0.0, %v4184
      %v4186 = vpop.f32.mrf.mxu0
      %4187 = vmatprep.mubr.bf16.mxu0 0
      %4188 = vmatmul.mubr.bf16.gmra.mxu0 %v3902
      %v4189 = vpop.f32.mrf.mxu0
      %v4190 = vadd.f32 0.0, %v4189
      %v4191 = vpop.f32.mrf.mxu0
      %v4192 = vpop.f32.mrf.mxu0
      %v4193 = vadd.f32 0.0, %v4192
      %v4194 = vpop.f32.mrf.mxu0
      %4195 = vdwg.mxu0
      %v4196 = vadd.f32 %v3596, %v3942
      %v4197 = vadd.f32 %v3597, %v3945
      %v4198 = vadd.f32 %v3598, %v3950
      %v4199 = vadd.f32 %v3599, %v3953
      %v4200 = vadd.f32 %v3600, %v3958
      %v4201 = vadd.f32 %v3601, %v3961
      %v4202 = vadd.f32 %v3602, %v3966
      %v4203 = vadd.f32 %v3603, %v3969
      %v4204 = vadd.f32 %v3604, %v3974
      %v4205 = vadd.f32 %v3605, %v3977
      %v4206 = vadd.f32 %v3606, %v3982
      %v4207 = vadd.f32 %v3607, %v3985
      %v4208 = vadd.f32 %v3608, %v3990
      %v4209 = vadd.f32 %v3609, %v3993
      %v4210 = vadd.f32 %v3610, %v3998
      %v4211 = vadd.f32 %v3611, %v4001
      %v4212 = vadd.f32 %v3612, %v4006
      %v4213 = vadd.f32 %v3613, %v4009
      %v4214 = vadd.f32 %v3614, %v4014
      %v4215 = vadd.f32 %v3615, %v4017
      %v4216 = vadd.f32 %v3616, %v4022
      %v4217 = vadd.f32 %v3617, %v4025
      %v4218 = vadd.f32 %v3618, %v4030
      %v4219 = vadd.f32 %v3619, %v4033
      %v4220 = vadd.f32 %v3620, %v4038
      %v4221 = vadd.f32 %v3621, %v4041
      %v4222 = vadd.f32 %v3622, %v4046
      %v4223 = vadd.f32 %v3623, %v4049
      %v4224 = vadd.f32 %v3624, %v4054
      %v4225 = vadd.f32 %v3625, %v4057
      %v4226 = vadd.f32 %v3626, %v4062
      %v4227 = vadd.f32 %v3627, %v4065
      %v4228 = vadd.f32 %v3628, %v4070
      %v4229 = vadd.f32 %v3629, %v4073
      %v4230 = vadd.f32 %v3630, %v4078
      %v4231 = vadd.f32 %v3631, %v4081
      %v4232 = vadd.f32 %v3632, %v4086
      %v4233 = vadd.f32 %v3633, %v4089
      %v4234 = vadd.f32 %v3634, %v4094
      %v4235 = vadd.f32 %v3635, %v4097
      %v4236 = vadd.f32 %v3636, %v4102
      %v4237 = vadd.f32 %v3637, %v4105
      %v4238 = vadd.f32 %v3638, %v4110
      %v4239 = vadd.f32 %v3639, %v4113
      %v4240 = vadd.f32 %v3640, %v4118
      %v4241 = vadd.f32 %v3641, %v4121
      %v4242 = vadd.f32 %v3642, %v4126
      %v4243 = vadd.f32 %v3643, %v4129
      %v4244 = vadd.f32 %v3644, %v4134
      %v4245 = vadd.f32 %v3645, %v4137
      %v4246 = vadd.f32 %v3646, %v4142
      %v4247 = vadd.f32 %v3647, %v4145
      %v4248 = vadd.f32 %v3648, %v4150
      %v4249 = vadd.f32 %v3649, %v4153
      %v4250 = vadd.f32 %v3650, %v4158
      %v4251 = vadd.f32 %v3651, %v4161
      %v4252 = vadd.f32 %v3652, %v4166
      %v4253 = vadd.f32 %v3653, %v4169
      %v4254 = vadd.f32 %v3654, %v4174
      %v4255 = vadd.f32 %v3655, %v4177
      %v4256 = vadd.f32 %v3656, %v4182
      %v4257 = vadd.f32 %v3657, %v4185
      %v4258 = vadd.f32 %v3658, %v4190
      %v4259 = vadd.f32 %v3659, %v4193
      %v4260 = vld [vmem:[#allocation2 + $0x10] sm:$0xe]
      %v4261 = vld [vmem:[#allocation2 + $0x14] sm:$0xf]
      %v4262 = vld [vmem:[#allocation2 + $0x18] sm:$0xf]
      %v4263 = vld [vmem:[#allocation2 + $0x1c] sm:$0xf]
      %v4264 = vld [vmem:[#allocation2 + $0x20] sm:$0xf]
      %v4265 = vld [vmem:[#allocation2 + $0x24] sm:$0xf]
      %v4266 = vld [vmem:[#allocation2 + $0x28] sm:$0xf]
      %v4267 = vld [vmem:[#allocation2 + $0x2c] sm:$0xf]
      %v4268 = vld [vmem:[#allocation2 + $0x30] sm:$0xf]
      %v4269 = vld [vmem:[#allocation2 + $0x34] sm:$0xf]
      %v4270 = vld [vmem:[#allocation2 + $0x38] sm:$0xf]
      %v4271 = vld [vmem:[#allocation2 + $0x3c] sm:$0xf]
      %v4272 = vld [vmem:[#allocation2 + $0x40] sm:$0xf]
      %v4273 = vld [vmem:[#allocation2 + $0x44] sm:$0xf]
      %v4274 = vld [vmem:[#allocation2 + $0x48] sm:$0xf]
      %v4275 = vld [vmem:[#allocation2 + $0x4c] sm:$0xf]
      %v4276 = vld [vmem:[#allocation2 + $0x50] sm:$0xf]
      %v4277 = vld [vmem:[#allocation2 + $0x54] sm:$0xf]
      %v4278 = vld [vmem:[#allocation2 + $0x58] sm:$0xf]
      %v4279 = vld [vmem:[#allocation2 + $0x5c] sm:$0xf]
      %v4280 = vld [vmem:[#allocation2 + $0x60] sm:$0xf]
      %v4281 = vld [vmem:[#allocation2 + $0x64] sm:$0xf]
      %v4282 = vld [vmem:[#allocation2 + $0x68] sm:$0xf]
      %v4283 = vld [vmem:[#allocation2 + $0x6c] sm:$0xf]
      %v4284 = vld [vmem:[#allocation2 + $0x70] sm:$0xf]
      %v4285 = vld [vmem:[#allocation2 + $0x74] sm:$0xf]
      %v4286 = vld [vmem:[#allocation2 + $0x78] sm:$0xf]
      %v4287 = vld [vmem:[#allocation2 + $0x7c] sm:$0xf]
      %v4288 = vld [vmem:[#allocation2 + $0x80] sm:$0xf]
      %v4289 = vld [vmem:[#allocation2 + $0x84] sm:$0xf]
      %v4290 = vld [vmem:[#allocation2 + $0x88] sm:$0xf]
      %v4291 = vld [vmem:[#allocation2 + $0x8c] sm:$0xf]
      %v4292 = vld [vmem:[#allocation2 + $0x90] sm:$0xf]
      %v4293 = vld [vmem:[#allocation2 + $0x94] sm:$0xf]
      %v4294 = vld [vmem:[#allocation2 + $0x98] sm:$0xf]
      %v4295 = vld [vmem:[#allocation2 + $0x9c] sm:$0xf]
      %v4296 = vld [vmem:[#allocation2 + $0xa0] sm:$0xf]
      %v4297 = vld [vmem:[#allocation2 + $0xa4] sm:$0xf]
      %v4298 = vld [vmem:[#allocation2 + $0xa8] sm:$0xf]
      %v4299 = vld [vmem:[#allocation2 + $0xac] sm:$0xf]
      %v4300 = vld [vmem:[#allocation2 + $0xb0] sm:$0xf]
      %v4301 = vld [vmem:[#allocation2 + $0xb4] sm:$0xf]
      %v4302 = vld [vmem:[#allocation2 + $0xb8] sm:$0xf]
      %v4303 = vld [vmem:[#allocation2 + $0xbc] sm:$0xf]
      %v4304 = vld [vmem:[#allocation2 + $0xc0] sm:$0xf]
      %v4305 = vld [vmem:[#allocation2 + $0xc4] sm:$0xf]
      %v4306 = vld [vmem:[#allocation2 + $0xc8] sm:$0xf]
      %v4307 = vld [vmem:[#allocation2 + $0xcc] sm:$0xf]
      %v4308 = vld [vmem:[#allocation2 + $0xd0] sm:$0xf]
      %v4309 = vld [vmem:[#allocation2 + $0xd4] sm:$0xf]
      %v4310 = vld [vmem:[#allocation2 + $0xd8] sm:$0xf]
      %v4311 = vld [vmem:[#allocation2 + $0xdc] sm:$0xf]
      %v4312 = vld [vmem:[#allocation2 + $0xe0] sm:$0xf]
      %v4313 = vld [vmem:[#allocation2 + $0xe4] sm:$0xf]
      %v4314 = vld [vmem:[#allocation2 + $0xe8] sm:$0xf]
      %v4315 = vld [vmem:[#allocation2 + $0xec] sm:$0xf]
      %v4316 = vld [vmem:[#allocation2 + $0xf0] sm:$0xf]
      %v4317 = vld [vmem:[#allocation2 + $0xf4] sm:$0xf]
      %v4318 = vld [vmem:[#allocation2 + $0xf8] sm:$0xf]
      %v4319 = vld [vmem:[#allocation2 + $0xfc] sm:$0xf]
      %v4320 = vld [vmem:[#allocation2 + $0x100] sm:$0xf]
      %v4321 = vld [vmem:[#allocation2 + $0x104] sm:$0xf]
      %v4322 = vld [vmem:[#allocation2 + $0x108] sm:$0xf]
      %v4323 = vld [vmem:[#allocation2 + $0x10c] sm:$0xf]
      %v4324 = vld [vmem:[#allocation2 + $0x110] sm:$0x1]
      %s4325 = scalar_lea.vmem %s279, 12
      %v4326 = vld [vmem:[%s4325] sm:$0x3]
      %v4392 = vunpack.c.l.b16 %v4260
      %v4393 = vunpack.c.l.b16 %v4261
      %v4394 = vunpack.c.l.b16 %v4262
      %v4395 = vunpack.c.l.b16 %v4263
      %v4396 = vunpack.c.l.b16 %v4264
      %v4397 = vunpack.c.l.b16 %v4265
      %v4398 = vunpack.c.l.b16 %v4266
      %v4399 = vunpack.c.l.b16 %v4267
      %v4400 = vunpack.c.l.b16 %v4268
      %v4401 = vunpack.c.l.b16 %v4269
      %v4402 = vunpack.c.l.b16 %v4270
      %v4403 = vunpack.c.l.b16 %v4271
      %v4404 = vunpack.c.l.b16 %v4272
      %v4405 = vunpack.c.l.b16 %v4273
      %v4406 = vunpack.c.l.b16 %v4274
      %v4407 = vunpack.c.l.b16 %v4275
      %v4408 = vunpack.c.l.b16 %v4276
      %v4409 = vunpack.c.l.b16 %v4277
      %v4410 = vunpack.c.l.b16 %v4278
      %v4411 = vunpack.c.l.b16 %v4279
      %v4412 = vunpack.c.l.b16 %v4280
      %v4413 = vunpack.c.l.b16 %v4281
      %v4414 = vunpack.c.l.b16 %v4282
      %v4415 = vunpack.c.l.b16 %v4283
      %v4416 = vunpack.c.l.b16 %v4284
      %v4417 = vunpack.c.l.b16 %v4285
      %v4418 = vunpack.c.l.b16 %v4286
      %v4419 = vunpack.c.l.b16 %v4287
      %v4420 = vunpack.c.l.b16 %v4288
      %v4421 = vunpack.c.l.b16 %v4289
      %v4422 = vunpack.c.l.b16 %v4290
      %v4423 = vunpack.c.l.b16 %v4291
      %v4424 = vunpack.c.l.b16 %v4292
      %v4425 = vunpack.c.l.b16 %v4293
      %v4426 = vunpack.c.l.b16 %v4294
      %v4427 = vunpack.c.l.b16 %v4295
      %v4428 = vunpack.c.l.b16 %v4296
      %v4429 = vunpack.c.l.b16 %v4297
      %v4430 = vunpack.c.l.b16 %v4298
      %v4431 = vunpack.c.l.b16 %v4299
      %v4432 = vunpack.c.l.b16 %v4300
      %v4433 = vunpack.c.l.b16 %v4301
      %v4434 = vunpack.c.l.b16 %v4302
      %v4435 = vunpack.c.l.b16 %v4303
      %v4436 = vunpack.c.l.b16 %v4304
      %v4437 = vunpack.c.l.b16 %v4305
      %v4438 = vunpack.c.l.b16 %v4306
      %v4439 = vunpack.c.l.b16 %v4307
      %v4440 = vunpack.c.l.b16 %v4308
      %v4441 = vunpack.c.l.b16 %v4309
      %v4442 = vunpack.c.l.b16 %v4310
      %v4443 = vunpack.c.l.b16 %v4311
      %v4444 = vunpack.c.l.b16 %v4312
      %v4445 = vunpack.c.l.b16 %v4313
      %v4446 = vunpack.c.l.b16 %v4314
      %v4447 = vunpack.c.l.b16 %v4315
      %v4448 = vunpack.c.l.b16 %v4316
      %v4449 = vunpack.c.l.b16 %v4317
      %v4450 = vunpack.c.l.b16 %v4318
      %v4451 = vunpack.c.l.b16 %v4319
      %v4452 = vunpack.c.l.b16 %v4320
      %v4453 = vunpack.c.l.b16 %v4321
      %v4454 = vunpack.c.l.b16 %v4322
      %v4455 = vunpack.c.l.b16 %v4323
      %v4456 = vunpack.c.l.b16 %v4324
      %v4457 = vpack.c.b16 %v4393, %v4392
      %v4458 = vpack.c.b16 %v4395, %v4394
      %v4459 = vpack.c.b16 %v4397, %v4396
      %v4460 = vpack.c.b16 %v4399, %v4398
      %v4461 = vpack.c.b16 %v4401, %v4400
      %v4462 = vpack.c.b16 %v4403, %v4402
      %v4463 = vpack.c.b16 %v4405, %v4404
      %v4464 = vpack.c.b16 %v4407, %v4406
      %v4465 = vpack.c.b16 %v4409, %v4408
      %v4466 = vpack.c.b16 %v4411, %v4410
      %v4467 = vpack.c.b16 %v4413, %v4412
      %v4468 = vpack.c.b16 %v4415, %v4414
      %v4469 = vpack.c.b16 %v4417, %v4416
      %v4470 = vpack.c.b16 %v4419, %v4418
      %v4471 = vpack.c.b16 %v4421, %v4420
      %v4472 = vpack.c.b16 %v4423, %v4422
      %v4473 = vpack.c.b16 %v4425, %v4424
      %v4474 = vpack.c.b16 %v4427, %v4426
      %v4475 = vpack.c.b16 %v4429, %v4428
      %v4476 = vpack.c.b16 %v4431, %v4430
      %v4477 = vpack.c.b16 %v4433, %v4432
      %v4478 = vpack.c.b16 %v4435, %v4434
      %v4479 = vpack.c.b16 %v4437, %v4436
      %v4480 = vpack.c.b16 %v4439, %v4438
      %v4481 = vpack.c.b16 %v4441, %v4440
      %v4482 = vpack.c.b16 %v4443, %v4442
      %v4483 = vpack.c.b16 %v4445, %v4444
      %v4484 = vpack.c.b16 %v4447, %v4446
      %v4485 = vpack.c.b16 %v4449, %v4448
      %v4486 = vpack.c.b16 %v4451, %v4450
      %v4487 = vpack.c.b16 %v4453, %v4452
      %v4488 = vpack.c.b16 %v4455, %v4454
      %v4489 = vpack.c.b16 %v4456, %v4456
      %v4490 = vrot.slane %v4457, 1
      %v4491 = vrot.slane %v4458, 1
      %v4492 = vsel %vm1677, %v4490, %v4491
      %v4493 = vrot.slane %v4459, 1
      %v4494 = vsel %vm1677, %v4491, %v4493
      %v4495 = vrot.slane %v4460, 1
      %v4496 = vsel %vm1677, %v4493, %v4495
      %v4497 = vrot.slane %v4461, 1
      %v4498 = vsel %vm1677, %v4495, %v4497
      %v4499 = vrot.slane %v4462, 1
      %v4500 = vsel %vm1677, %v4497, %v4499
      %v4501 = vrot.slane %v4463, 1
      %v4502 = vsel %vm1677, %v4499, %v4501
      %v4503 = vrot.slane %v4464, 1
      %v4504 = vsel %vm1677, %v4501, %v4503
      %v4505 = vrot.slane %v4465, 1
      %v4506 = vsel %vm1677, %v4503, %v4505
      %v4507 = vrot.slane %v4466, 1
      %v4508 = vsel %vm1677, %v4505, %v4507
      %v4509 = vrot.slane %v4467, 1
      %v4510 = vsel %vm1677, %v4507, %v4509
      %v4511 = vrot.slane %v4468, 1
      %v4512 = vsel %vm1677, %v4509, %v4511
      %v4513 = vrot.slane %v4469, 1
      %v4514 = vsel %vm1677, %v4511, %v4513
      %v4515 = vrot.slane %v4470, 1
      %v4516 = vsel %vm1677, %v4513, %v4515
      %v4517 = vrot.slane %v4471, 1
      %v4518 = vsel %vm1677, %v4515, %v4517
      %v4519 = vrot.slane %v4472, 1
      %v4520 = vsel %vm1677, %v4517, %v4519
      %v4521 = vrot.slane %v4473, 1
      %v4522 = vsel %vm1677, %v4519, %v4521
      %v4523 = vrot.slane %v4474, 1
      %v4524 = vsel %vm1677, %v4521, %v4523
      %v4525 = vrot.slane %v4475, 1
      %v4526 = vsel %vm1677, %v4523, %v4525
      %v4527 = vrot.slane %v4476, 1
      %v4528 = vsel %vm1677, %v4525, %v4527
      %v4529 = vrot.slane %v4477, 1
      %v4530 = vsel %vm1677, %v4527, %v4529
      %v4531 = vrot.slane %v4478, 1
      %v4532 = vsel %vm1677, %v4529, %v4531
      %v4533 = vrot.slane %v4479, 1
      %v4534 = vsel %vm1677, %v4531, %v4533
      %v4535 = vrot.slane %v4480, 1
      %v4536 = vsel %vm1677, %v4533, %v4535
      %v4537 = vrot.slane %v4481, 1
      %v4538 = vsel %vm1677, %v4535, %v4537
      %v4539 = vrot.slane %v4482, 1
      %v4540 = vsel %vm1677, %v4537, %v4539
      %v4541 = vrot.slane %v4483, 1
      %v4542 = vsel %vm1677, %v4539, %v4541
      %v4543 = vrot.slane %v4484, 1
      %v4544 = vsel %vm1677, %v4541, %v4543
      %v4545 = vrot.slane %v4485, 1
      %v4546 = vsel %vm1677, %v4543, %v4545
      %v4547 = vrot.slane %v4486, 1
      %v4548 = vsel %vm1677, %v4545, %v4547
      %v4549 = vrot.slane %v4487, 1
      %v4550 = vsel %vm1677, %v4547, %v4549
      %v4551 = vrot.slane %v4488, 1
      %v4552 = vsel %vm1677, %v4549, %v4551
      %v4553 = vrot.slane %v4489, 1
      %v4554 = vsel %vm1677, %v4551, %v4553
      %v4556 = vsel %vm925, %v4492, 0
      %v4559 = vsel %vm925, %v4494, 0
      %v4562 = vsel %vm925, %v4496, 0
      %v4565 = vsel %vm925, %v4498, 0
      %v4568 = vsel %vm925, %v4500, 0
      %v4571 = vsel %vm925, %v4502, 0
      %v4574 = vsel %vm925, %v4504, 0
      %v4577 = vsel %vm925, %v4506, 0
      %v4580 = vsel %vm925, %v4508, 0
      %v4583 = vsel %vm925, %v4510, 0
      %v4586 = vsel %vm925, %v4512, 0
      %v4589 = vsel %vm925, %v4514, 0
      %v4592 = vsel %vm925, %v4516, 0
      %v4595 = vsel %vm925, %v4518, 0
      %v4598 = vsel %vm925, %v4520, 0
      %v4601 = vsel %vm925, %v4522, 0
      %v4604 = vsel %vm925, %v4524, 0
      %v4607 = vsel %vm925, %v4526, 0
      %v4610 = vsel %vm925, %v4528, 0
      %v4613 = vsel %vm925, %v4530, 0
      %v4616 = vsel %vm925, %v4532, 0
      %v4619 = vsel %vm925, %v4534, 0
      %v4622 = vsel %vm925, %v4536, 0
      %v4625 = vsel %vm925, %v4538, 0
      %v4628 = vsel %vm925, %v4540, 0
      %v4631 = vsel %vm925, %v4542, 0
      %v4634 = vsel %vm925, %v4544, 0
      %v4637 = vsel %vm925, %v4546, 0
      %v4640 = vsel %vm925, %v4548, 0
      %v4643 = vsel %vm925, %v4550, 0
      %v4646 = vsel %vm925, %v4552, 0
      %v4649 = vsel %vm925, %v4554, 0
      %v4652 = vsel %vm1022, %v4326, 0
      %4654 = vmatprep.subr.bf16.mxu0 0
      %4655 = vmatpush1.bf16.msra.mxu0 0
      %4656 = vmatprep.subr.bf16.mxu0 0
      %4657 = vmatpush1.bf16.msra.mxu0 0
      %4658 = vmatprep.subr.bf16.mxu0 0
      %4659 = vmatpush1.bf16.msra.mxu0 0
      %4660 = vmatprep.subr.bf16.mxu0 0
      %4661 = vmatpush1.bf16.msra.mxu0 0
      %4662 = vmatprep.subr.bf16.mxu0 0
      %4663 = vmatpush1.bf16.msra.mxu0 0
      %4664 = vmatprep.subr.bf16.mxu0 0
      %4665 = vmatpush1.bf16.msra.mxu0 0
      %4666 = vmatprep.subr.bf16.mxu0 0
      %4667 = vmatpush1.bf16.msra.mxu0 0
      %4668 = vmatprep.subr.bf16.mxu0 0
      %4669 = vmatpush1.bf16.msra.mxu0 %v4652
      %4670 = vmatprep.subr.bf16.mxu0 0
      %4671 = vmatpush2.bf16.msra.mxu0 0
      %4672 = vmatprep.subr.bf16.mxu0 0
      %4673 = vmatpush2.bf16.msra.mxu0 0
      %4674 = vmatprep.subr.bf16.mxu0 0
      %4675 = vmatpush2.bf16.msra.mxu0 0
      %4676 = vmatprep.subr.bf16.mxu0 0
      %4677 = vmatpush2.bf16.msra.mxu0 0
      %4678 = vmatprep.subr.bf16.mxu0 0
      %4679 = vmatpush2.bf16.msra.mxu0 0
      %4680 = vmatprep.subr.bf16.mxu0 0
      %4681 = vmatpush2.bf16.msra.mxu0 0
      %4682 = vmatprep.subr.bf16.mxu0 0
      %4683 = vmatpush2.bf16.msra.mxu0 0
      %4684 = vmatprep.subr.bf16.mxu0 0
      %4685 = vmatpush2.bf16.msra.mxu0 0
      %4686 = vmatprep.mubr.bf16.mxu0 0
      %4687 = vmatmul.mubr.bf16.gmra.mxu0 %v4556
      %v4688 = vpop.f32.mrf.mxu0
      %v4689 = vadd.f32 0.0, %v4688
      %v4690 = vpop.f32.mrf.mxu0
      %v4691 = vpop.f32.mrf.mxu0
      %v4692 = vadd.f32 0.0, %v4691
      %v4693 = vpop.f32.mrf.mxu0
      %4694 = vmatprep.mubr.bf16.mxu0 0
      %4695 = vmatmul.mubr.bf16.gmra.mxu0 %v4559
      %v4696 = vpop.f32.mrf.mxu0
      %v4697 = vadd.f32 0.0, %v4696
      %v4698 = vpop.f32.mrf.mxu0
      %v4699 = vpop.f32.mrf.mxu0
      %v4700 = vadd.f32 0.0, %v4699
      %v4701 = vpop.f32.mrf.mxu0
      %4702 = vmatprep.mubr.bf16.mxu0 0
      %4703 = vmatmul.mubr.bf16.gmra.mxu0 %v4562
      %v4704 = vpop.f32.mrf.mxu0
      %v4705 = vadd.f32 0.0, %v4704
      %v4706 = vpop.f32.mrf.mxu0
      %v4707 = vpop.f32.mrf.mxu0
      %v4708 = vadd.f32 0.0, %v4707
      %v4709 = vpop.f32.mrf.mxu0
      %4710 = vmatprep.mubr.bf16.mxu0 0
      %4711 = vmatmul.mubr.bf16.gmra.mxu0 %v4565
      %v4712 = vpop.f32.mrf.mxu0
      %v4713 = vadd.f32 0.0, %v4712
      %v4714 = vpop.f32.mrf.mxu0
      %v4715 = vpop.f32.mrf.mxu0
      %v4716 = vadd.f32 0.0, %v4715
      %v4717 = vpop.f32.mrf.mxu0
      %4718 = vmatprep.mubr.bf16.mxu0 0
      %4719 = vmatmul.mubr.bf16.gmra.mxu0 %v4568
      %v4720 = vpop.f32.mrf.mxu0
      %v4721 = vadd.f32 0.0, %v4720
      %v4722 = vpop.f32.mrf.mxu0
      %v4723 = vpop.f32.mrf.mxu0
      %v4724 = vadd.f32 0.0, %v4723
      %v4725 = vpop.f32.mrf.mxu0
      %4726 = vmatprep.mubr.bf16.mxu0 0
      %4727 = vmatmul.mubr.bf16.gmra.mxu0 %v4571
      %v4728 = vpop.f32.mrf.mxu0
      %v4729 = vadd.f32 0.0, %v4728
      %v4730 = vpop.f32.mrf.mxu0
      %v4731 = vpop.f32.mrf.mxu0
      %v4732 = vadd.f32 0.0, %v4731
      %v4733 = vpop.f32.mrf.mxu0
      %4734 = vmatprep.mubr.bf16.mxu0 0
      %4735 = vmatmul.mubr.bf16.gmra.mxu0 %v4574
      %v4736 = vpop.f32.mrf.mxu0
      %v4737 = vadd.f32 0.0, %v4736
      %v4738 = vpop.f32.mrf.mxu0
      %v4739 = vpop.f32.mrf.mxu0
      %v4740 = vadd.f32 0.0, %v4739
      %v4741 = vpop.f32.mrf.mxu0
      %4742 = vmatprep.mubr.bf16.mxu0 0
      %4743 = vmatmul.mubr.bf16.gmra.mxu0 %v4577
      %v4744 = vpop.f32.mrf.mxu0
      %v4745 = vadd.f32 0.0, %v4744
      %v4746 = vpop.f32.mrf.mxu0
      %v4747 = vpop.f32.mrf.mxu0
      %v4748 = vadd.f32 0.0, %v4747
      %v4749 = vpop.f32.mrf.mxu0
      %4750 = vmatprep.mubr.bf16.mxu0 0
      %4751 = vmatmul.mubr.bf16.gmra.mxu0 %v4580
      %v4752 = vpop.f32.mrf.mxu0
      %v4753 = vadd.f32 0.0, %v4752
      %v4754 = vpop.f32.mrf.mxu0
      %v4755 = vpop.f32.mrf.mxu0
      %v4756 = vadd.f32 0.0, %v4755
      %v4757 = vpop.f32.mrf.mxu0
      %4758 = vmatprep.mubr.bf16.mxu0 0
      %4759 = vmatmul.mubr.bf16.gmra.mxu0 %v4583
      %v4760 = vpop.f32.mrf.mxu0
      %v4761 = vadd.f32 0.0, %v4760
      %v4762 = vpop.f32.mrf.mxu0
      %v4763 = vpop.f32.mrf.mxu0
      %v4764 = vadd.f32 0.0, %v4763
      %v4765 = vpop.f32.mrf.mxu0
      %4766 = vmatprep.mubr.bf16.mxu0 0
      %4767 = vmatmul.mubr.bf16.gmra.mxu0 %v4586
      %v4768 = vpop.f32.mrf.mxu0
      %v4769 = vadd.f32 0.0, %v4768
      %v4770 = vpop.f32.mrf.mxu0
      %v4771 = vpop.f32.mrf.mxu0
      %v4772 = vadd.f32 0.0, %v4771
      %v4773 = vpop.f32.mrf.mxu0
      %4774 = vmatprep.mubr.bf16.mxu0 0
      %4775 = vmatmul.mubr.bf16.gmra.mxu0 %v4589
      %v4776 = vpop.f32.mrf.mxu0
      %v4777 = vadd.f32 0.0, %v4776
      %v4778 = vpop.f32.mrf.mxu0
      %v4779 = vpop.f32.mrf.mxu0
      %v4780 = vadd.f32 0.0, %v4779
      %v4781 = vpop.f32.mrf.mxu0
      %4782 = vmatprep.mubr.bf16.mxu0 0
      %4783 = vmatmul.mubr.bf16.gmra.mxu0 %v4592
      %v4784 = vpop.f32.mrf.mxu0
      %v4785 = vadd.f32 0.0, %v4784
      %v4786 = vpop.f32.mrf.mxu0
      %v4787 = vpop.f32.mrf.mxu0
      %v4788 = vadd.f32 0.0, %v4787
      %v4789 = vpop.f32.mrf.mxu0
      %4790 = vmatprep.mubr.bf16.mxu0 0
      %4791 = vmatmul.mubr.bf16.gmra.mxu0 %v4595
      %v4792 = vpop.f32.mrf.mxu0
      %v4793 = vadd.f32 0.0, %v4792
      %v4794 = vpop.f32.mrf.mxu0
      %v4795 = vpop.f32.mrf.mxu0
      %v4796 = vadd.f32 0.0, %v4795
      %v4797 = vpop.f32.mrf.mxu0
      %4798 = vmatprep.mubr.bf16.mxu0 0
      %4799 = vmatmul.mubr.bf16.gmra.mxu0 %v4598
      %v4800 = vpop.f32.mrf.mxu0
      %v4801 = vadd.f32 0.0, %v4800
      %v4802 = vpop.f32.mrf.mxu0
      %v4803 = vpop.f32.mrf.mxu0
      %v4804 = vadd.f32 0.0, %v4803
      %v4805 = vpop.f32.mrf.mxu0
      %4806 = vmatprep.mubr.bf16.mxu0 0
      %4807 = vmatmul.mubr.bf16.gmra.mxu0 %v4601
      %v4808 = vpop.f32.mrf.mxu0
      %v4809 = vadd.f32 0.0, %v4808
      %v4810 = vpop.f32.mrf.mxu0
      %v4811 = vpop.f32.mrf.mxu0
      %v4812 = vadd.f32 0.0, %v4811
      %v4813 = vpop.f32.mrf.mxu0
      %4814 = vmatprep.mubr.bf16.mxu0 0
      %4815 = vmatmul.mubr.bf16.gmra.mxu0 %v4604
      %v4816 = vpop.f32.mrf.mxu0
      %v4817 = vadd.f32 0.0, %v4816
      %v4818 = vpop.f32.mrf.mxu0
      %v4819 = vpop.f32.mrf.mxu0
      %v4820 = vadd.f32 0.0, %v4819
      %v4821 = vpop.f32.mrf.mxu0
      %4822 = vmatprep.mubr.bf16.mxu0 0
      %4823 = vmatmul.mubr.bf16.gmra.mxu0 %v4607
      %v4824 = vpop.f32.mrf.mxu0
      %v4825 = vadd.f32 0.0, %v4824
      %v4826 = vpop.f32.mrf.mxu0
      %v4827 = vpop.f32.mrf.mxu0
      %v4828 = vadd.f32 0.0, %v4827
      %v4829 = vpop.f32.mrf.mxu0
      %4830 = vmatprep.mubr.bf16.mxu0 0
      %4831 = vmatmul.mubr.bf16.gmra.mxu0 %v4610
      %v4832 = vpop.f32.mrf.mxu0
      %v4833 = vadd.f32 0.0, %v4832
      %v4834 = vpop.f32.mrf.mxu0
      %v4835 = vpop.f32.mrf.mxu0
      %v4836 = vadd.f32 0.0, %v4835
      %v4837 = vpop.f32.mrf.mxu0
      %4838 = vmatprep.mubr.bf16.mxu0 0
      %4839 = vmatmul.mubr.bf16.gmra.mxu0 %v4613
      %v4840 = vpop.f32.mrf.mxu0
      %v4841 = vadd.f32 0.0, %v4840
      %v4842 = vpop.f32.mrf.mxu0
      %v4843 = vpop.f32.mrf.mxu0
      %v4844 = vadd.f32 0.0, %v4843
      %v4845 = vpop.f32.mrf.mxu0
      %4846 = vmatprep.mubr.bf16.mxu0 0
      %4847 = vmatmul.mubr.bf16.gmra.mxu0 %v4616
      %v4848 = vpop.f32.mrf.mxu0
      %v4849 = vadd.f32 0.0, %v4848
      %v4850 = vpop.f32.mrf.mxu0
      %v4851 = vpop.f32.mrf.mxu0
      %v4852 = vadd.f32 0.0, %v4851
      %v4853 = vpop.f32.mrf.mxu0
      %4854 = vmatprep.mubr.bf16.mxu0 0
      %4855 = vmatmul.mubr.bf16.gmra.mxu0 %v4619
      %v4856 = vpop.f32.mrf.mxu0
      %v4857 = vadd.f32 0.0, %v4856
      %v4858 = vpop.f32.mrf.mxu0
      %v4859 = vpop.f32.mrf.mxu0
      %v4860 = vadd.f32 0.0, %v4859
      %v4861 = vpop.f32.mrf.mxu0
      %4862 = vmatprep.mubr.bf16.mxu0 0
      %4863 = vmatmul.mubr.bf16.gmra.mxu0 %v4622
      %v4864 = vpop.f32.mrf.mxu0
      %v4865 = vadd.f32 0.0, %v4864
      %v4866 = vpop.f32.mrf.mxu0
      %v4867 = vpop.f32.mrf.mxu0
      %v4868 = vadd.f32 0.0, %v4867
      %v4869 = vpop.f32.mrf.mxu0
      %4870 = vmatprep.mubr.bf16.mxu0 0
      %4871 = vmatmul.mubr.bf16.gmra.mxu0 %v4625
      %v4872 = vpop.f32.mrf.mxu0
      %v4873 = vadd.f32 0.0, %v4872
      %v4874 = vpop.f32.mrf.mxu0
      %v4875 = vpop.f32.mrf.mxu0
      %v4876 = vadd.f32 0.0, %v4875
      %v4877 = vpop.f32.mrf.mxu0
      %4878 = vmatprep.mubr.bf16.mxu0 0
      %4879 = vmatmul.mubr.bf16.gmra.mxu0 %v4628
      %v4880 = vpop.f32.mrf.mxu0
      %v4881 = vadd.f32 0.0, %v4880
      %v4882 = vpop.f32.mrf.mxu0
      %v4883 = vpop.f32.mrf.mxu0
      %v4884 = vadd.f32 0.0, %v4883
      %v4885 = vpop.f32.mrf.mxu0
      %4886 = vmatprep.mubr.bf16.mxu0 0
      %4887 = vmatmul.mubr.bf16.gmra.mxu0 %v4631
      %v4888 = vpop.f32.mrf.mxu0
      %v4889 = vadd.f32 0.0, %v4888
      %v4890 = vpop.f32.mrf.mxu0
      %v4891 = vpop.f32.mrf.mxu0
      %v4892 = vadd.f32 0.0, %v4891
      %v4893 = vpop.f32.mrf.mxu0
      %4894 = vmatprep.mubr.bf16.mxu0 0
      %4895 = vmatmul.mubr.bf16.gmra.mxu0 %v4634
      %v4896 = vpop.f32.mrf.mxu0
      %v4897 = vadd.f32 0.0, %v4896
      %v4898 = vpop.f32.mrf.mxu0
      %v4899 = vpop.f32.mrf.mxu0
      %v4900 = vadd.f32 0.0, %v4899
      %v4901 = vpop.f32.mrf.mxu0
      %4902 = vmatprep.mubr.bf16.mxu0 0
      %4903 = vmatmul.mubr.bf16.gmra.mxu0 %v4637
      %v4904 = vpop.f32.mrf.mxu0
      %v4905 = vadd.f32 0.0, %v4904
      %v4906 = vpop.f32.mrf.mxu0
      %v4907 = vpop.f32.mrf.mxu0
      %v4908 = vadd.f32 0.0, %v4907
      %v4909 = vpop.f32.mrf.mxu0
      %4910 = vmatprep.mubr.bf16.mxu0 0
      %4911 = vmatmul.mubr.bf16.gmra.mxu0 %v4640
      %v4912 = vpop.f32.mrf.mxu0
      %v4913 = vadd.f32 0.0, %v4912
      %v4914 = vpop.f32.mrf.mxu0
      %v4915 = vpop.f32.mrf.mxu0
      %v4916 = vadd.f32 0.0, %v4915
      %v4917 = vpop.f32.mrf.mxu0
      %4918 = vmatprep.mubr.bf16.mxu0 0
      %4919 = vmatmul.mubr.bf16.gmra.mxu0 %v4643
      %v4920 = vpop.f32.mrf.mxu0
      %v4921 = vadd.f32 0.0, %v4920
      %v4922 = vpop.f32.mrf.mxu0
      %v4923 = vpop.f32.mrf.mxu0
      %v4924 = vadd.f32 0.0, %v4923
      %v4925 = vpop.f32.mrf.mxu0
      %4926 = vmatprep.mubr.bf16.mxu0 0
      %4927 = vmatmul.mubr.bf16.gmra.mxu0 %v4646
      %v4928 = vpop.f32.mrf.mxu0
      %v4929 = vadd.f32 0.0, %v4928
      %v4930 = vpop.f32.mrf.mxu0
      %v4931 = vpop.f32.mrf.mxu0
      %v4932 = vadd.f32 0.0, %v4931
      %v4933 = vpop.f32.mrf.mxu0
      %4934 = vmatprep.mubr.bf16.mxu0 0
      %4935 = vmatmul.mubr.bf16.gmra.mxu0 %v4649
      %v4936 = vpop.f32.mrf.mxu0
      %v4937 = vadd.f32 0.0, %v4936
      %v4938 = vpop.f32.mrf.mxu0
      %v4939 = vpop.f32.mrf.mxu0
      %v4940 = vadd.f32 0.0, %v4939
      %v4941 = vpop.f32.mrf.mxu0
      %4942 = vdwg.mxu0
      %v4943 = vadd.f32 %v4196, %v4689
      %v4944 = vadd.f32 %v4197, %v4692
      %v4945 = vadd.f32 %v4198, %v4697
      %v4946 = vadd.f32 %v4199, %v4700
      %v4947 = vadd.f32 %v4200, %v4705
      %v4948 = vadd.f32 %v4201, %v4708
      %v4949 = vadd.f32 %v4202, %v4713
      %v4950 = vadd.f32 %v4203, %v4716
      %v4951 = vadd.f32 %v4204, %v4721
      %v4952 = vadd.f32 %v4205, %v4724
      %v4953 = vadd.f32 %v4206, %v4729
      %v4954 = vadd.f32 %v4207, %v4732
      %v4955 = vadd.f32 %v4208, %v4737
      %v4956 = vadd.f32 %v4209, %v4740
      %v4957 = vadd.f32 %v4210, %v4745
      %v4958 = vadd.f32 %v4211, %v4748
      %v4959 = vadd.f32 %v4212, %v4753
      %v4960 = vadd.f32 %v4213, %v4756
      %v4961 = vadd.f32 %v4214, %v4761
      %v4962 = vadd.f32 %v4215, %v4764
      %v4963 = vadd.f32 %v4216, %v4769
      %v4964 = vadd.f32 %v4217, %v4772
      %v4965 = vadd.f32 %v4218, %v4777
      %v4966 = vadd.f32 %v4219, %v4780
      %v4967 = vadd.f32 %v4220, %v4785
      %v4968 = vadd.f32 %v4221, %v4788
      %v4969 = vadd.f32 %v4222, %v4793
      %v4970 = vadd.f32 %v4223, %v4796
      %v4971 = vadd.f32 %v4224, %v4801
      %v4972 = vadd.f32 %v4225, %v4804
      %v4973 = vadd.f32 %v4226, %v4809
      %v4974 = vadd.f32 %v4227, %v4812
      %v4975 = vadd.f32 %v4228, %v4817
      %v4976 = vadd.f32 %v4229, %v4820
      %v4977 = vadd.f32 %v4230, %v4825
      %v4978 = vadd.f32 %v4231, %v4828
      %v4979 = vadd.f32 %v4232, %v4833
      %v4980 = vadd.f32 %v4233, %v4836
      %v4981 = vadd.f32 %v4234, %v4841
      %v4982 = vadd.f32 %v4235, %v4844
      %v4983 = vadd.f32 %v4236, %v4849
      %v4984 = vadd.f32 %v4237, %v4852
      %v4985 = vadd.f32 %v4238, %v4857
      %v4986 = vadd.f32 %v4239, %v4860
      %v4987 = vadd.f32 %v4240, %v4865
      %v4988 = vadd.f32 %v4241, %v4868
      %v4989 = vadd.f32 %v4242, %v4873
      %v4990 = vadd.f32 %v4243, %v4876
      %v4991 = vadd.f32 %v4244, %v4881
      %v4992 = vadd.f32 %v4245, %v4884
      %v4993 = vadd.f32 %v4246, %v4889
      %v4994 = vadd.f32 %v4247, %v4892
      %v4995 = vadd.f32 %v4248, %v4897
      %v4996 = vadd.f32 %v4249, %v4900
      %v4997 = vadd.f32 %v4250, %v4905
      %v4998 = vadd.f32 %v4251, %v4908
      %v4999 = vadd.f32 %v4252, %v4913
      %v5000 = vadd.f32 %v4253, %v4916
      %v5001 = vadd.f32 %v4254, %v4921
      %v5002 = vadd.f32 %v4255, %v4924
      %v5003 = vadd.f32 %v4256, %v4929
      %v5004 = vadd.f32 %v4257, %v4932
      %v5005 = vadd.f32 %v4258, %v4937
      %v5006 = vadd.f32 %v4259, %v4940
      %v5007 = vld [vmem:[#allocation2 + $0x110] sm:$0x3]
      %s5008 = scalar_lea.vmem %s279, 14
      %v5009 = vld [vmem:[%s5008] sm:$0x3]
      %v5011 = vunpack.c.l.b16 %v5007
      %v5012 = vpack.c.b16 %v5011, %v5011
      %v5014 = vshrl.u32 %v4457, 16
      %v5016 = vrot.slane %v5014, 1
      %v5017 = vshll.u32 %v4457, 16
      %v5019 = vrot.slane %v5017, 2
      %v5020 = vor.u32 %v5016, %v5019
      %v5022 = vshrl.u32 %v4458, 16
      %v5024 = vrot.slane %v5022, 1
      %v5025 = vshll.u32 %v4458, 16
      %v5027 = vrot.slane %v5025, 2
      %v5028 = vor.u32 %v5024, %v5027
      %v5029 = vsel %vm3666, %v5020, %v5028
      %v5031 = vshrl.u32 %v4459, 16
      %v5033 = vrot.slane %v5031, 1
      %v5034 = vshll.u32 %v4459, 16
      %v5036 = vrot.slane %v5034, 2
      %v5037 = vor.u32 %v5033, %v5036
      %v5038 = vsel %vm3666, %v5028, %v5037
      %v5040 = vshrl.u32 %v4460, 16
      %v5042 = vrot.slane %v5040, 1
      %v5043 = vshll.u32 %v4460, 16
      %v5045 = vrot.slane %v5043, 2
      %v5046 = vor.u32 %v5042, %v5045
      %v5047 = vsel %vm3666, %v5037, %v5046
      %v5049 = vshrl.u32 %v4461, 16
      %v5051 = vrot.slane %v5049, 1
      %v5052 = vshll.u32 %v4461, 16
      %v5054 = vrot.slane %v5052, 2
      %v5055 = vor.u32 %v5051, %v5054
      %v5056 = vsel %vm3666, %v5046, %v5055
      %v5058 = vshrl.u32 %v4462, 16
      %v5060 = vrot.slane %v5058, 1
      %v5061 = vshll.u32 %v4462, 16
      %v5063 = vrot.slane %v5061, 2
      %v5064 = vor.u32 %v5060, %v5063
      %v5065 = vsel %vm3666, %v5055, %v5064
      %v5067 = vshrl.u32 %v4463, 16
      %v5069 = vrot.slane %v5067, 1
      %v5070 = vshll.u32 %v4463, 16
      %v5072 = vrot.slane %v5070, 2
      %v5073 = vor.u32 %v5069, %v5072
      %v5074 = vsel %vm3666, %v5064, %v5073
      %v5076 = vshrl.u32 %v4464, 16
      %v5078 = vrot.slane %v5076, 1
      %v5079 = vshll.u32 %v4464, 16
      %v5081 = vrot.slane %v5079, 2
      %v5082 = vor.u32 %v5078, %v5081
      %v5083 = vsel %vm3666, %v5073, %v5082
      %v5085 = vshrl.u32 %v4465, 16
      %v5087 = vrot.slane %v5085, 1
      %v5088 = vshll.u32 %v4465, 16
      %v5090 = vrot.slane %v5088, 2
      %v5091 = vor.u32 %v5087, %v5090
      %v5092 = vsel %vm3666, %v5082, %v5091
      %v5094 = vshrl.u32 %v4466, 16
      %v5096 = vrot.slane %v5094, 1
      %v5097 = vshll.u32 %v4466, 16
      %v5099 = vrot.slane %v5097, 2
      %v5100 = vor.u32 %v5096, %v5099
      %v5101 = vsel %vm3666, %v5091, %v5100
      %v5103 = vshrl.u32 %v4467, 16
      %v5105 = vrot.slane %v5103, 1
      %v5106 = vshll.u32 %v4467, 16
      %v5108 = vrot.slane %v5106, 2
      %v5109 = vor.u32 %v5105, %v5108
      %v5110 = vsel %vm3666, %v5100, %v5109
      %v5112 = vshrl.u32 %v4468, 16
      %v5114 = vrot.slane %v5112, 1
      %v5115 = vshll.u32 %v4468, 16
      %v5117 = vrot.slane %v5115, 2
      %v5118 = vor.u32 %v5114, %v5117
      %v5119 = vsel %vm3666, %v5109, %v5118
      %v5121 = vshrl.u32 %v4469, 16
      %v5123 = vrot.slane %v5121, 1
      %v5124 = vshll.u32 %v4469, 16
      %v5126 = vrot.slane %v5124, 2
      %v5127 = vor.u32 %v5123, %v5126
      %v5128 = vsel %vm3666, %v5118, %v5127
      %v5130 = vshrl.u32 %v4470, 16
      %v5132 = vrot.slane %v5130, 1
      %v5133 = vshll.u32 %v4470, 16
      %v5135 = vrot.slane %v5133, 2
      %v5136 = vor.u32 %v5132, %v5135
      %v5137 = vsel %vm3666, %v5127, %v5136
      %v5139 = vshrl.u32 %v4471, 16
      %v5141 = vrot.slane %v5139, 1
      %v5142 = vshll.u32 %v4471, 16
      %v5144 = vrot.slane %v5142, 2
      %v5145 = vor.u32 %v5141, %v5144
      %v5146 = vsel %vm3666, %v5136, %v5145
      %v5148 = vshrl.u32 %v4472, 16
      %v5150 = vrot.slane %v5148, 1
      %v5151 = vshll.u32 %v4472, 16
      %v5153 = vrot.slane %v5151, 2
      %v5154 = vor.u32 %v5150, %v5153
      %v5155 = vsel %vm3666, %v5145, %v5154
      %v5157 = vshrl.u32 %v4473, 16
      %v5159 = vrot.slane %v5157, 1
      %v5160 = vshll.u32 %v4473, 16
      %v5162 = vrot.slane %v5160, 2
      %v5163 = vor.u32 %v5159, %v5162
      %v5164 = vsel %vm3666, %v5154, %v5163
      %v5166 = vshrl.u32 %v4474, 16
      %v5168 = vrot.slane %v5166, 1
      %v5169 = vshll.u32 %v4474, 16
      %v5171 = vrot.slane %v5169, 2
      %v5172 = vor.u32 %v5168, %v5171
      %v5173 = vsel %vm3666, %v5163, %v5172
      %v5175 = vshrl.u32 %v4475, 16
      %v5177 = vrot.slane %v5175, 1
      %v5178 = vshll.u32 %v4475, 16
      %v5180 = vrot.slane %v5178, 2
      %v5181 = vor.u32 %v5177, %v5180
      %v5182 = vsel %vm3666, %v5172, %v5181
      %v5184 = vshrl.u32 %v4476, 16
      %v5186 = vrot.slane %v5184, 1
      %v5187 = vshll.u32 %v4476, 16
      %v5189 = vrot.slane %v5187, 2
      %v5190 = vor.u32 %v5186, %v5189
      %v5191 = vsel %vm3666, %v5181, %v5190
      %v5193 = vshrl.u32 %v4477, 16
      %v5195 = vrot.slane %v5193, 1
      %v5196 = vshll.u32 %v4477, 16
      %v5198 = vrot.slane %v5196, 2
      %v5199 = vor.u32 %v5195, %v5198
      %v5200 = vsel %vm3666, %v5190, %v5199
      %v5202 = vshrl.u32 %v4478, 16
      %v5204 = vrot.slane %v5202, 1
      %v5205 = vshll.u32 %v4478, 16
      %v5207 = vrot.slane %v5205, 2
      %v5208 = vor.u32 %v5204, %v5207
      %v5209 = vsel %vm3666, %v5199, %v5208
      %v5211 = vshrl.u32 %v4479, 16
      %v5213 = vrot.slane %v5211, 1
      %v5214 = vshll.u32 %v4479, 16
      %v5216 = vrot.slane %v5214, 2
      %v5217 = vor.u32 %v5213, %v5216
      %v5218 = vsel %vm3666, %v5208, %v5217
      %v5220 = vshrl.u32 %v4480, 16
      %v5222 = vrot.slane %v5220, 1
      %v5223 = vshll.u32 %v4480, 16
      %v5225 = vrot.slane %v5223, 2
      %v5226 = vor.u32 %v5222, %v5225
      %v5227 = vsel %vm3666, %v5217, %v5226
      %v5229 = vshrl.u32 %v4481, 16
      %v5231 = vrot.slane %v5229, 1
      %v5232 = vshll.u32 %v4481, 16
      %v5234 = vrot.slane %v5232, 2
      %v5235 = vor.u32 %v5231, %v5234
      %v5236 = vsel %vm3666, %v5226, %v5235
      %v5238 = vshrl.u32 %v4482, 16
      %v5240 = vrot.slane %v5238, 1
      %v5241 = vshll.u32 %v4482, 16
      %v5243 = vrot.slane %v5241, 2
      %v5244 = vor.u32 %v5240, %v5243
      %v5245 = vsel %vm3666, %v5235, %v5244
      %v5247 = vshrl.u32 %v4483, 16
      %v5249 = vrot.slane %v5247, 1
      %v5250 = vshll.u32 %v4483, 16
      %v5252 = vrot.slane %v5250, 2
      %v5253 = vor.u32 %v5249, %v5252
      %v5254 = vsel %vm3666, %v5244, %v5253
      %v5256 = vshrl.u32 %v4484, 16
      %v5258 = vrot.slane %v5256, 1
      %v5259 = vshll.u32 %v4484, 16
      %v5261 = vrot.slane %v5259, 2
      %v5262 = vor.u32 %v5258, %v5261
      %v5263 = vsel %vm3666, %v5253, %v5262
      %v5265 = vshrl.u32 %v4485, 16
      %v5267 = vrot.slane %v5265, 1
      %v5268 = vshll.u32 %v4485, 16
      %v5270 = vrot.slane %v5268, 2
      %v5271 = vor.u32 %v5267, %v5270
      %v5272 = vsel %vm3666, %v5262, %v5271
      %v5274 = vshrl.u32 %v4486, 16
      %v5276 = vrot.slane %v5274, 1
      %v5277 = vshll.u32 %v4486, 16
      %v5279 = vrot.slane %v5277, 2
      %v5280 = vor.u32 %v5276, %v5279
      %v5281 = vsel %vm3666, %v5271, %v5280
      %v5283 = vshrl.u32 %v4487, 16
      %v5285 = vrot.slane %v5283, 1
      %v5286 = vshll.u32 %v4487, 16
      %v5288 = vrot.slane %v5286, 2
      %v5289 = vor.u32 %v5285, %v5288
      %v5290 = vsel %vm3666, %v5280, %v5289
      %v5292 = vshrl.u32 %v4488, 16
      %v5294 = vrot.slane %v5292, 1
      %v5295 = vshll.u32 %v4488, 16
      %v5297 = vrot.slane %v5295, 2
      %v5298 = vor.u32 %v5294, %v5297
      %v5299 = vsel %vm3666, %v5289, %v5298
      %v5301 = vshrl.u32 %v5012, 16
      %v5303 = vrot.slane %v5301, 1
      %v5304 = vshll.u32 %v5012, 16
      %v5306 = vrot.slane %v5304, 2
      %v5307 = vor.u32 %v5303, %v5306
      %v5308 = vsel %vm3666, %v5298, %v5307
      %v5310 = vsel %vm925, %v5029, 0
      %v5313 = vsel %vm925, %v5038, 0
      %v5316 = vsel %vm925, %v5047, 0
      %v5319 = vsel %vm925, %v5056, 0
      %v5322 = vsel %vm925, %v5065, 0
      %v5325 = vsel %vm925, %v5074, 0
      %v5328 = vsel %vm925, %v5083, 0
      %v5331 = vsel %vm925, %v5092, 0
      %v5334 = vsel %vm925, %v5101, 0
      %v5337 = vsel %vm925, %v5110, 0
      %v5340 = vsel %vm925, %v5119, 0
      %v5343 = vsel %vm925, %v5128, 0
      %v5346 = vsel %vm925, %v5137, 0
      %v5349 = vsel %vm925, %v5146, 0
      %v5352 = vsel %vm925, %v5155, 0
      %v5355 = vsel %vm925, %v5164, 0
      %v5358 = vsel %vm925, %v5173, 0
      %v5361 = vsel %vm925, %v5182, 0
      %v5364 = vsel %vm925, %v5191, 0
      %v5367 = vsel %vm925, %v5200, 0
      %v5370 = vsel %vm925, %v5209, 0
      %v5373 = vsel %vm925, %v5218, 0
      %v5376 = vsel %vm925, %v5227, 0
      %v5379 = vsel %vm925, %v5236, 0
      %v5382 = vsel %vm925, %v5245, 0
      %v5385 = vsel %vm925, %v5254, 0
      %v5388 = vsel %vm925, %v5263, 0
      %v5391 = vsel %vm925, %v5272, 0
      %v5394 = vsel %vm925, %v5281, 0
      %v5397 = vsel %vm925, %v5290, 0
      %v5400 = vsel %vm925, %v5299, 0
      %v5403 = vsel %vm925, %v5308, 0
      %v5406 = vsel %vm1022, %v5009, 0
      %5408 = vmatprep.subr.bf16.mxu0 0
      %5409 = vmatpush1.bf16.msra.mxu0 0
      %5410 = vmatprep.subr.bf16.mxu0 0
      %5411 = vmatpush1.bf16.msra.mxu0 0
      %5412 = vmatprep.subr.bf16.mxu0 0
      %5413 = vmatpush1.bf16.msra.mxu0 0
      %5414 = vmatprep.subr.bf16.mxu0 0
      %5415 = vmatpush1.bf16.msra.mxu0 0
      %5416 = vmatprep.subr.bf16.mxu0 0
      %5417 = vmatpush1.bf16.msra.mxu0 0
      %5418 = vmatprep.subr.bf16.mxu0 0
      %5419 = vmatpush1.bf16.msra.mxu0 0
      %5420 = vmatprep.subr.bf16.mxu0 0
      %5421 = vmatpush1.bf16.msra.mxu0 0
      %5422 = vmatprep.subr.bf16.mxu0 0
      %5423 = vmatpush1.bf16.msra.mxu0 %v5406
      %5424 = vmatprep.subr.bf16.mxu0 0
      %5425 = vmatpush2.bf16.msra.mxu0 0
      %5426 = vmatprep.subr.bf16.mxu0 0
      %5427 = vmatpush2.bf16.msra.mxu0 0
      %5428 = vmatprep.subr.bf16.mxu0 0
      %5429 = vmatpush2.bf16.msra.mxu0 0
      %5430 = vmatprep.subr.bf16.mxu0 0
      %5431 = vmatpush2.bf16.msra.mxu0 0
      %5432 = vmatprep.subr.bf16.mxu0 0
      %5433 = vmatpush2.bf16.msra.mxu0 0
      %5434 = vmatprep.subr.bf16.mxu0 0
      %5435 = vmatpush2.bf16.msra.mxu0 0
      %5436 = vmatprep.subr.bf16.mxu0 0
      %5437 = vmatpush2.bf16.msra.mxu0 0
      %5438 = vmatprep.subr.bf16.mxu0 0
      %5439 = vmatpush2.bf16.msra.mxu0 0
      %5440 = vmatprep.mubr.bf16.mxu0 0
      %5441 = vmatmul.mubr.bf16.gmra.mxu0 %v5310
      %v5442 = vpop.f32.mrf.mxu0
      %v5443 = vadd.f32 0.0, %v5442
      %v5444 = vpop.f32.mrf.mxu0
      %v5445 = vpop.f32.mrf.mxu0
      %v5446 = vadd.f32 0.0, %v5445
      %v5447 = vpop.f32.mrf.mxu0
      %5448 = vmatprep.mubr.bf16.mxu0 0
      %5449 = vmatmul.mubr.bf16.gmra.mxu0 %v5313
      %v5450 = vpop.f32.mrf.mxu0
      %v5451 = vadd.f32 0.0, %v5450
      %v5452 = vpop.f32.mrf.mxu0
      %v5453 = vpop.f32.mrf.mxu0
      %v5454 = vadd.f32 0.0, %v5453
      %v5455 = vpop.f32.mrf.mxu0
      %5456 = vmatprep.mubr.bf16.mxu0 0
      %5457 = vmatmul.mubr.bf16.gmra.mxu0 %v5316
      %v5458 = vpop.f32.mrf.mxu0
      %v5459 = vadd.f32 0.0, %v5458
      %v5460 = vpop.f32.mrf.mxu0
      %v5461 = vpop.f32.mrf.mxu0
      %v5462 = vadd.f32 0.0, %v5461
      %v5463 = vpop.f32.mrf.mxu0
      %5464 = vmatprep.mubr.bf16.mxu0 0
      %5465 = vmatmul.mubr.bf16.gmra.mxu0 %v5319
      %v5466 = vpop.f32.mrf.mxu0
      %v5467 = vadd.f32 0.0, %v5466
      %v5468 = vpop.f32.mrf.mxu0
      %v5469 = vpop.f32.mrf.mxu0
      %v5470 = vadd.f32 0.0, %v5469
      %v5471 = vpop.f32.mrf.mxu0
      %5472 = vmatprep.mubr.bf16.mxu0 0
      %5473 = vmatmul.mubr.bf16.gmra.mxu0 %v5322
      %v5474 = vpop.f32.mrf.mxu0
      %v5475 = vadd.f32 0.0, %v5474
      %v5476 = vpop.f32.mrf.mxu0
      %v5477 = vpop.f32.mrf.mxu0
      %v5478 = vadd.f32 0.0, %v5477
      %v5479 = vpop.f32.mrf.mxu0
      %5480 = vmatprep.mubr.bf16.mxu0 0
      %5481 = vmatmul.mubr.bf16.gmra.mxu0 %v5325
      %v5482 = vpop.f32.mrf.mxu0
      %v5483 = vadd.f32 0.0, %v5482
      %v5484 = vpop.f32.mrf.mxu0
      %v5485 = vpop.f32.mrf.mxu0
      %v5486 = vadd.f32 0.0, %v5485
      %v5487 = vpop.f32.mrf.mxu0
      %5488 = vmatprep.mubr.bf16.mxu0 0
      %5489 = vmatmul.mubr.bf16.gmra.mxu0 %v5328
      %v5490 = vpop.f32.mrf.mxu0
      %v5491 = vadd.f32 0.0, %v5490
      %v5492 = vpop.f32.mrf.mxu0
      %v5493 = vpop.f32.mrf.mxu0
      %v5494 = vadd.f32 0.0, %v5493
      %v5495 = vpop.f32.mrf.mxu0
      %5496 = vmatprep.mubr.bf16.mxu0 0
      %5497 = vmatmul.mubr.bf16.gmra.mxu0 %v5331
      %v5498 = vpop.f32.mrf.mxu0
      %v5499 = vadd.f32 0.0, %v5498
      %v5500 = vpop.f32.mrf.mxu0
      %v5501 = vpop.f32.mrf.mxu0
      %v5502 = vadd.f32 0.0, %v5501
      %v5503 = vpop.f32.mrf.mxu0
      %5504 = vmatprep.mubr.bf16.mxu0 0
      %5505 = vmatmul.mubr.bf16.gmra.mxu0 %v5334
      %v5506 = vpop.f32.mrf.mxu0
      %v5507 = vadd.f32 0.0, %v5506
      %v5508 = vpop.f32.mrf.mxu0
      %v5509 = vpop.f32.mrf.mxu0
      %v5510 = vadd.f32 0.0, %v5509
      %v5511 = vpop.f32.mrf.mxu0
      %5512 = vmatprep.mubr.bf16.mxu0 0
      %5513 = vmatmul.mubr.bf16.gmra.mxu0 %v5337
      %v5514 = vpop.f32.mrf.mxu0
      %v5515 = vadd.f32 0.0, %v5514
      %v5516 = vpop.f32.mrf.mxu0
      %v5517 = vpop.f32.mrf.mxu0
      %v5518 = vadd.f32 0.0, %v5517
      %v5519 = vpop.f32.mrf.mxu0
      %5520 = vmatprep.mubr.bf16.mxu0 0
      %5521 = vmatmul.mubr.bf16.gmra.mxu0 %v5340
      %v5522 = vpop.f32.mrf.mxu0
      %v5523 = vadd.f32 0.0, %v5522
      %v5524 = vpop.f32.mrf.mxu0
      %v5525 = vpop.f32.mrf.mxu0
      %v5526 = vadd.f32 0.0, %v5525
      %v5527 = vpop.f32.mrf.mxu0
      %5528 = vmatprep.mubr.bf16.mxu0 0
      %5529 = vmatmul.mubr.bf16.gmra.mxu0 %v5343
      %v5530 = vpop.f32.mrf.mxu0
      %v5531 = vadd.f32 0.0, %v5530
      %v5532 = vpop.f32.mrf.mxu0
      %v5533 = vpop.f32.mrf.mxu0
      %v5534 = vadd.f32 0.0, %v5533
      %v5535 = vpop.f32.mrf.mxu0
      %5536 = vmatprep.mubr.bf16.mxu0 0
      %5537 = vmatmul.mubr.bf16.gmra.mxu0 %v5346
      %v5538 = vpop.f32.mrf.mxu0
      %v5539 = vadd.f32 0.0, %v5538
      %v5540 = vpop.f32.mrf.mxu0
      %v5541 = vpop.f32.mrf.mxu0
      %v5542 = vadd.f32 0.0, %v5541
      %v5543 = vpop.f32.mrf.mxu0
      %5544 = vmatprep.mubr.bf16.mxu0 0
      %5545 = vmatmul.mubr.bf16.gmra.mxu0 %v5349
      %v5546 = vpop.f32.mrf.mxu0
      %v5547 = vadd.f32 0.0, %v5546
      %v5548 = vpop.f32.mrf.mxu0
      %v5549 = vpop.f32.mrf.mxu0
      %v5550 = vadd.f32 0.0, %v5549
      %v5551 = vpop.f32.mrf.mxu0
      %5552 = vmatprep.mubr.bf16.mxu0 0
      %5553 = vmatmul.mubr.bf16.gmra.mxu0 %v5352
      %v5554 = vpop.f32.mrf.mxu0
      %v5555 = vadd.f32 0.0, %v5554
      %v5556 = vpop.f32.mrf.mxu0
      %v5557 = vpop.f32.mrf.mxu0
      %v5558 = vadd.f32 0.0, %v5557
      %v5559 = vpop.f32.mrf.mxu0
      %5560 = vmatprep.mubr.bf16.mxu0 0
      %5561 = vmatmul.mubr.bf16.gmra.mxu0 %v5355
      %v5562 = vpop.f32.mrf.mxu0
      %v5563 = vadd.f32 0.0, %v5562
      %v5564 = vpop.f32.mrf.mxu0
      %v5565 = vpop.f32.mrf.mxu0
      %v5566 = vadd.f32 0.0, %v5565
      %v5567 = vpop.f32.mrf.mxu0
      %5568 = vmatprep.mubr.bf16.mxu0 0
      %5569 = vmatmul.mubr.bf16.gmra.mxu0 %v5358
      %v5570 = vpop.f32.mrf.mxu0
      %v5571 = vadd.f32 0.0, %v5570
      %v5572 = vpop.f32.mrf.mxu0
      %v5573 = vpop.f32.mrf.mxu0
      %v5574 = vadd.f32 0.0, %v5573
      %v5575 = vpop.f32.mrf.mxu0
      %5576 = vmatprep.mubr.bf16.mxu0 0
      %5577 = vmatmul.mubr.bf16.gmra.mxu0 %v5361
      %v5578 = vpop.f32.mrf.mxu0
      %v5579 = vadd.f32 0.0, %v5578
      %v5580 = vpop.f32.mrf.mxu0
      %v5581 = vpop.f32.mrf.mxu0
      %v5582 = vadd.f32 0.0, %v5581
      %v5583 = vpop.f32.mrf.mxu0
      %5584 = vmatprep.mubr.bf16.mxu0 0
      %5585 = vmatmul.mubr.bf16.gmra.mxu0 %v5364
      %v5586 = vpop.f32.mrf.mxu0
      %v5587 = vadd.f32 0.0, %v5586
      %v5588 = vpop.f32.mrf.mxu0
      %v5589 = vpop.f32.mrf.mxu0
      %v5590 = vadd.f32 0.0, %v5589
      %v5591 = vpop.f32.mrf.mxu0
      %5592 = vmatprep.mubr.bf16.mxu0 0
      %5593 = vmatmul.mubr.bf16.gmra.mxu0 %v5367
      %v5594 = vpop.f32.mrf.mxu0
      %v5595 = vadd.f32 0.0, %v5594
      %v5596 = vpop.f32.mrf.mxu0
      %v5597 = vpop.f32.mrf.mxu0
      %v5598 = vadd.f32 0.0, %v5597
      %v5599 = vpop.f32.mrf.mxu0
      %5600 = vmatprep.mubr.bf16.mxu0 0
      %5601 = vmatmul.mubr.bf16.gmra.mxu0 %v5370
      %v5602 = vpop.f32.mrf.mxu0
      %v5603 = vadd.f32 0.0, %v5602
      %v5604 = vpop.f32.mrf.mxu0
      %v5605 = vpop.f32.mrf.mxu0
      %v5606 = vadd.f32 0.0, %v5605
      %v5607 = vpop.f32.mrf.mxu0
      %5608 = vmatprep.mubr.bf16.mxu0 0
      %5609 = vmatmul.mubr.bf16.gmra.mxu0 %v5373
      %v5610 = vpop.f32.mrf.mxu0
      %v5611 = vadd.f32 0.0, %v5610
      %v5612 = vpop.f32.mrf.mxu0
      %v5613 = vpop.f32.mrf.mxu0
      %v5614 = vadd.f32 0.0, %v5613
      %v5615 = vpop.f32.mrf.mxu0
      %5616 = vmatprep.mubr.bf16.mxu0 0
      %5617 = vmatmul.mubr.bf16.gmra.mxu0 %v5376
      %v5618 = vpop.f32.mrf.mxu0
      %v5619 = vadd.f32 0.0, %v5618
      %v5620 = vpop.f32.mrf.mxu0
      %v5621 = vpop.f32.mrf.mxu0
      %v5622 = vadd.f32 0.0, %v5621
      %v5623 = vpop.f32.mrf.mxu0
      %5624 = vmatprep.mubr.bf16.mxu0 0
      %5625 = vmatmul.mubr.bf16.gmra.mxu0 %v5379
      %v5626 = vpop.f32.mrf.mxu0
      %v5627 = vadd.f32 0.0, %v5626
      %v5628 = vpop.f32.mrf.mxu0
      %v5629 = vpop.f32.mrf.mxu0
      %v5630 = vadd.f32 0.0, %v5629
      %v5631 = vpop.f32.mrf.mxu0
      %5632 = vmatprep.mubr.bf16.mxu0 0
      %5633 = vmatmul.mubr.bf16.gmra.mxu0 %v5382
      %v5634 = vpop.f32.mrf.mxu0
      %v5635 = vadd.f32 0.0, %v5634
      %v5636 = vpop.f32.mrf.mxu0
      %v5637 = vpop.f32.mrf.mxu0
      %v5638 = vadd.f32 0.0, %v5637
      %v5639 = vpop.f32.mrf.mxu0
      %5640 = vmatprep.mubr.bf16.mxu0 0
      %5641 = vmatmul.mubr.bf16.gmra.mxu0 %v5385
      %v5642 = vpop.f32.mrf.mxu0
      %v5643 = vadd.f32 0.0, %v5642
      %v5644 = vpop.f32.mrf.mxu0
      %v5645 = vpop.f32.mrf.mxu0
      %v5646 = vadd.f32 0.0, %v5645
      %v5647 = vpop.f32.mrf.mxu0
      %5648 = vmatprep.mubr.bf16.mxu0 0
      %5649 = vmatmul.mubr.bf16.gmra.mxu0 %v5388
      %v5650 = vpop.f32.mrf.mxu0
      %v5651 = vadd.f32 0.0, %v5650
      %v5652 = vpop.f32.mrf.mxu0
      %v5653 = vpop.f32.mrf.mxu0
      %v5654 = vadd.f32 0.0, %v5653
      %v5655 = vpop.f32.mrf.mxu0
      %5656 = vmatprep.mubr.bf16.mxu0 0
      %5657 = vmatmul.mubr.bf16.gmra.mxu0 %v5391
      %v5658 = vpop.f32.mrf.mxu0
      %v5659 = vadd.f32 0.0, %v5658
      %v5660 = vpop.f32.mrf.mxu0
      %v5661 = vpop.f32.mrf.mxu0
      %v5662 = vadd.f32 0.0, %v5661
      %v5663 = vpop.f32.mrf.mxu0
      %5664 = vmatprep.mubr.bf16.mxu0 0
      %5665 = vmatmul.mubr.bf16.gmra.mxu0 %v5394
      %v5666 = vpop.f32.mrf.mxu0
      %v5667 = vadd.f32 0.0, %v5666
      %v5668 = vpop.f32.mrf.mxu0
      %v5669 = vpop.f32.mrf.mxu0
      %v5670 = vadd.f32 0.0, %v5669
      %v5671 = vpop.f32.mrf.mxu0
      %5672 = vmatprep.mubr.bf16.mxu0 0
      %5673 = vmatmul.mubr.bf16.gmra.mxu0 %v5397
      %v5674 = vpop.f32.mrf.mxu0
      %v5675 = vadd.f32 0.0, %v5674
      %v5676 = vpop.f32.mrf.mxu0
      %v5677 = vpop.f32.mrf.mxu0
      %v5678 = vadd.f32 0.0, %v5677
      %v5679 = vpop.f32.mrf.mxu0
      %5680 = vmatprep.mubr.bf16.mxu0 0
      %5681 = vmatmul.mubr.bf16.gmra.mxu0 %v5400
      %v5682 = vpop.f32.mrf.mxu0
      %v5683 = vadd.f32 0.0, %v5682
      %v5684 = vpop.f32.mrf.mxu0
      %v5685 = vpop.f32.mrf.mxu0
      %v5686 = vadd.f32 0.0, %v5685
      %v5687 = vpop.f32.mrf.mxu0
      %5688 = vmatprep.mubr.bf16.mxu0 0
      %5689 = vmatmul.mubr.bf16.gmra.mxu0 %v5403
      %v5690 = vpop.f32.mrf.mxu0
      %v5691 = vadd.f32 0.0, %v5690
      %v5692 = vpop.f32.mrf.mxu0
      %v5693 = vpop.f32.mrf.mxu0
      %v5694 = vadd.f32 0.0, %v5693
      %v5695 = vpop.f32.mrf.mxu0
      %5696 = vdwg.mxu0
      %v5697 = vadd.f32 %v4943, %v5443
      %v5698 = vadd.f32 %v4944, %v5446
      %v5699 = vadd.f32 %v4945, %v5451
      %v5700 = vadd.f32 %v4946, %v5454
      %v5701 = vadd.f32 %v4947, %v5459
      %v5702 = vadd.f32 %v4948, %v5462
      %v5703 = vadd.f32 %v4949, %v5467
      %v5704 = vadd.f32 %v4950, %v5470
      %v5705 = vadd.f32 %v4951, %v5475
      %v5706 = vadd.f32 %v4952, %v5478
      %v5707 = vadd.f32 %v4953, %v5483
      %v5708 = vadd.f32 %v4954, %v5486
      %v5709 = vadd.f32 %v4955, %v5491
      %v5710 = vadd.f32 %v4956, %v5494
      %v5711 = vadd.f32 %v4957, %v5499
      %v5712 = vadd.f32 %v4958, %v5502
      %v5713 = vadd.f32 %v4959, %v5507
      %v5714 = vadd.f32 %v4960, %v5510
      %v5715 = vadd.f32 %v4961, %v5515
      %v5716 = vadd.f32 %v4962, %v5518
      %v5717 = vadd.f32 %v4963, %v5523
      %v5718 = vadd.f32 %v4964, %v5526
      %v5719 = vadd.f32 %v4965, %v5531
      %v5720 = vadd.f32 %v4966, %v5534
      %v5721 = vadd.f32 %v4967, %v5539
      %v5722 = vadd.f32 %v4968, %v5542
      %v5723 = vadd.f32 %v4969, %v5547
      %v5724 = vadd.f32 %v4970, %v5550
      %v5725 = vadd.f32 %v4971, %v5555
      %v5726 = vadd.f32 %v4972, %v5558
      %v5727 = vadd.f32 %v4973, %v5563
      %v5728 = vadd.f32 %v4974, %v5566
      %v5729 = vadd.f32 %v4975, %v5571
      %v5730 = vadd.f32 %v4976, %v5574
      %v5731 = vadd.f32 %v4977, %v5579
      %v5732 = vadd.f32 %v4978, %v5582
      %v5733 = vadd.f32 %v4979, %v5587
      %v5734 = vadd.f32 %v4980, %v5590
      %v5735 = vadd.f32 %v4981, %v5595
      %v5736 = vadd.f32 %v4982, %v5598
      %v5737 = vadd.f32 %v4983, %v5603
      %v5738 = vadd.f32 %v4984, %v5606
      %v5739 = vadd.f32 %v4985, %v5611
      %v5740 = vadd.f32 %v4986, %v5614
      %v5741 = vadd.f32 %v4987, %v5619
      %v5742 = vadd.f32 %v4988, %v5622
      %v5743 = vadd.f32 %v4989, %v5627
      %v5744 = vadd.f32 %v4990, %v5630
      %v5745 = vadd.f32 %v4991, %v5635
      %v5746 = vadd.f32 %v4992, %v5638
      %v5747 = vadd.f32 %v4993, %v5643
      %v5748 = vadd.f32 %v4994, %v5646
      %v5749 = vadd.f32 %v4995, %v5651
      %v5750 = vadd.f32 %v4996, %v5654
      %v5751 = vadd.f32 %v4997, %v5659
      %v5752 = vadd.f32 %v4998, %v5662
      %v5753 = vadd.f32 %v4999, %v5667
      %v5754 = vadd.f32 %v5000, %v5670
      %v5755 = vadd.f32 %v5001, %v5675
      %v5756 = vadd.f32 %v5002, %v5678
      %v5757 = vadd.f32 %v5003, %v5683
      %v5758 = vadd.f32 %v5004, %v5686
      %v5759 = vadd.f32 %v5005, %v5691
      %v5760 = vadd.f32 %v5006, %v5694
      %v5761 = vld [vmem:[#allocation2 + $0x10] sm:$0xc]
      %s5762 = scalar_lea.vmem %s279, 16
      %v5763 = vld [vmem:[%s5762] sm:$0x3]
      %v5765 = vunpack.c.l.b16 %v5761
      %v5766 = vpack.c.b16 %v4393, %v5765
      %vm5767 = vcmask 1045504
      %v5768 = vrot.slane %v5766, 2
      %v5769 = vrot.slane %v4458, 2
      %v5770 = vsel %vm5767, %v5768, %v5769
      %v5771 = vrot.slane %v4459, 2
      %v5772 = vsel %vm5767, %v5769, %v5771
      %v5773 = vrot.slane %v4460, 2
      %v5774 = vsel %vm5767, %v5771, %v5773
      %v5775 = vrot.slane %v4461, 2
      %v5776 = vsel %vm5767, %v5773, %v5775
      %v5777 = vrot.slane %v4462, 2
      %v5778 = vsel %vm5767, %v5775, %v5777
      %v5779 = vrot.slane %v4463, 2
      %v5780 = vsel %vm5767, %v5777, %v5779
      %v5781 = vrot.slane %v4464, 2
      %v5782 = vsel %vm5767, %v5779, %v5781
      %v5783 = vrot.slane %v4465, 2
      %v5784 = vsel %vm5767, %v5781, %v5783
      %v5785 = vrot.slane %v4466, 2
      %v5786 = vsel %vm5767, %v5783, %v5785
      %v5787 = vrot.slane %v4467, 2
      %v5788 = vsel %vm5767, %v5785, %v5787
      %v5789 = vrot.slane %v4468, 2
      %v5790 = vsel %vm5767, %v5787, %v5789
      %v5791 = vrot.slane %v4469, 2
      %v5792 = vsel %vm5767, %v5789, %v5791
      %v5793 = vrot.slane %v4470, 2
      %v5794 = vsel %vm5767, %v5791, %v5793
      %v5795 = vrot.slane %v4471, 2
      %v5796 = vsel %vm5767, %v5793, %v5795
      %v5797 = vrot.slane %v4472, 2
      %v5798 = vsel %vm5767, %v5795, %v5797
      %v5799 = vrot.slane %v4473, 2
      %v5800 = vsel %vm5767, %v5797, %v5799
      %v5801 = vrot.slane %v4474, 2
      %v5802 = vsel %vm5767, %v5799, %v5801
      %v5803 = vrot.slane %v4475, 2
      %v5804 = vsel %vm5767, %v5801, %v5803
      %v5805 = vrot.slane %v4476, 2
      %v5806 = vsel %vm5767, %v5803, %v5805
      %v5807 = vrot.slane %v4477, 2
      %v5808 = vsel %vm5767, %v5805, %v5807
      %v5809 = vrot.slane %v4478, 2
      %v5810 = vsel %vm5767, %v5807, %v5809
      %v5811 = vrot.slane %v4479, 2
      %v5812 = vsel %vm5767, %v5809, %v5811
      %v5813 = vrot.slane %v4480, 2
      %v5814 = vsel %vm5767, %v5811, %v5813
      %v5815 = vrot.slane %v4481, 2
      %v5816 = vsel %vm5767, %v5813, %v5815
      %v5817 = vrot.slane %v4482, 2
      %v5818 = vsel %vm5767, %v5815, %v5817
      %v5819 = vrot.slane %v4483, 2
      %v5820 = vsel %vm5767, %v5817, %v5819
      %v5821 = vrot.slane %v4484, 2
      %v5822 = vsel %vm5767, %v5819, %v5821
      %v5823 = vrot.slane %v4485, 2
      %v5824 = vsel %vm5767, %v5821, %v5823
      %v5825 = vrot.slane %v4486, 2
      %v5826 = vsel %vm5767, %v5823, %v5825
      %v5827 = vrot.slane %v4487, 2
      %v5828 = vsel %vm5767, %v5825, %v5827
      %v5829 = vrot.slane %v4488, 2
      %v5830 = vsel %vm5767, %v5827, %v5829
      %v5831 = vrot.slane %v5012, 2
      %v5832 = vsel %vm5767, %v5829, %v5831
      %v5834 = vsel %vm925, %v5770, 0
      %v5837 = vsel %vm925, %v5772, 0
      %v5840 = vsel %vm925, %v5774, 0
      %v5843 = vsel %vm925, %v5776, 0
      %v5846 = vsel %vm925, %v5778, 0
      %v5849 = vsel %vm925, %v5780, 0
      %v5852 = vsel %vm925, %v5782, 0
      %v5855 = vsel %vm925, %v5784, 0
      %v5858 = vsel %vm925, %v5786, 0
      %v5861 = vsel %vm925, %v5788, 0
      %v5864 = vsel %vm925, %v5790, 0
      %v5867 = vsel %vm925, %v5792, 0
      %v5870 = vsel %vm925, %v5794, 0
      %v5873 = vsel %vm925, %v5796, 0
      %v5876 = vsel %vm925, %v5798, 0
      %v5879 = vsel %vm925, %v5800, 0
      %v5882 = vsel %vm925, %v5802, 0
      %v5885 = vsel %vm925, %v5804, 0
      %v5888 = vsel %vm925, %v5806, 0
      %v5891 = vsel %vm925, %v5808, 0
      %v5894 = vsel %vm925, %v5810, 0
      %v5897 = vsel %vm925, %v5812, 0
      %v5900 = vsel %vm925, %v5814, 0
      %v5903 = vsel %vm925, %v5816, 0
      %v5906 = vsel %vm925, %v5818, 0
      %v5909 = vsel %vm925, %v5820, 0
      %v5912 = vsel %vm925, %v5822, 0
      %v5915 = vsel %vm925, %v5824, 0
      %v5918 = vsel %vm925, %v5826, 0
      %v5921 = vsel %vm925, %v5828, 0
      %v5924 = vsel %vm925, %v5830, 0
      %v5927 = vsel %vm925, %v5832, 0
      %v5930 = vsel %vm1022, %v5763, 0
      %5932 = vmatprep.subr.bf16.mxu0 0
      %5933 = vmatpush1.bf16.msra.mxu0 0
      %5934 = vmatprep.subr.bf16.mxu0 0
      %5935 = vmatpush1.bf16.msra.mxu0 0
      %5936 = vmatprep.subr.bf16.mxu0 0
      %5937 = vmatpush1.bf16.msra.mxu0 0
      %5938 = vmatprep.subr.bf16.mxu0 0
      %5939 = vmatpush1.bf16.msra.mxu0 0
      %5940 = vmatprep.subr.bf16.mxu0 0
      %5941 = vmatpush1.bf16.msra.mxu0 0
      %5942 = vmatprep.subr.bf16.mxu0 0
      %5943 = vmatpush1.bf16.msra.mxu0 0
      %5944 = vmatprep.subr.bf16.mxu0 0
      %5945 = vmatpush1.bf16.msra.mxu0 0
      %5946 = vmatprep.subr.bf16.mxu0 0
      %5947 = vmatpush1.bf16.msra.mxu0 %v5930
      %5948 = vmatprep.subr.bf16.mxu0 0
      %5949 = vmatpush2.bf16.msra.mxu0 0
      %5950 = vmatprep.subr.bf16.mxu0 0
      %5951 = vmatpush2.bf16.msra.mxu0 0
      %5952 = vmatprep.subr.bf16.mxu0 0
      %5953 = vmatpush2.bf16.msra.mxu0 0
      %5954 = vmatprep.subr.bf16.mxu0 0
      %5955 = vmatpush2.bf16.msra.mxu0 0
      %5956 = vmatprep.subr.bf16.mxu0 0
      %5957 = vmatpush2.bf16.msra.mxu0 0
      %5958 = vmatprep.subr.bf16.mxu0 0
      %5959 = vmatpush2.bf16.msra.mxu0 0
      %5960 = vmatprep.subr.bf16.mxu0 0
      %5961 = vmatpush2.bf16.msra.mxu0 0
      %5962 = vmatprep.subr.bf16.mxu0 0
      %5963 = vmatpush2.bf16.msra.mxu0 0
      %5964 = vmatprep.mubr.bf16.mxu0 0
      %5965 = vmatmul.mubr.bf16.gmra.mxu0 %v5834
      %v5966 = vpop.f32.mrf.mxu0
      %v5967 = vadd.f32 0.0, %v5966
      %v5968 = vpop.f32.mrf.mxu0
      %v5969 = vpop.f32.mrf.mxu0
      %v5970 = vadd.f32 0.0, %v5969
      %v5971 = vpop.f32.mrf.mxu0
      %5972 = vmatprep.mubr.bf16.mxu0 0
      %5973 = vmatmul.mubr.bf16.gmra.mxu0 %v5837
      %v5974 = vpop.f32.mrf.mxu0
      %v5975 = vadd.f32 0.0, %v5974
      %v5976 = vpop.f32.mrf.mxu0
      %v5977 = vpop.f32.mrf.mxu0
      %v5978 = vadd.f32 0.0, %v5977
      %v5979 = vpop.f32.mrf.mxu0
      %5980 = vmatprep.mubr.bf16.mxu0 0
      %5981 = vmatmul.mubr.bf16.gmra.mxu0 %v5840
      %v5982 = vpop.f32.mrf.mxu0
      %v5983 = vadd.f32 0.0, %v5982
      %v5984 = vpop.f32.mrf.mxu0
      %v5985 = vpop.f32.mrf.mxu0
      %v5986 = vadd.f32 0.0, %v5985
      %v5987 = vpop.f32.mrf.mxu0
      %5988 = vmatprep.mubr.bf16.mxu0 0
      %5989 = vmatmul.mubr.bf16.gmra.mxu0 %v5843
      %v5990 = vpop.f32.mrf.mxu0
      %v5991 = vadd.f32 0.0, %v5990
      %v5992 = vpop.f32.mrf.mxu0
      %v5993 = vpop.f32.mrf.mxu0
      %v5994 = vadd.f32 0.0, %v5993
      %v5995 = vpop.f32.mrf.mxu0
      %5996 = vmatprep.mubr.bf16.mxu0 0
      %5997 = vmatmul.mubr.bf16.gmra.mxu0 %v5846
      %v5998 = vpop.f32.mrf.mxu0
      %v5999 = vadd.f32 0.0, %v5998
      %v6000 = vpop.f32.mrf.mxu0
      %v6001 = vpop.f32.mrf.mxu0
      %v6002 = vadd.f32 0.0, %v6001
      %v6003 = vpop.f32.mrf.mxu0
      %6004 = vmatprep.mubr.bf16.mxu0 0
      %6005 = vmatmul.mubr.bf16.gmra.mxu0 %v5849
      %v6006 = vpop.f32.mrf.mxu0
      %v6007 = vadd.f32 0.0, %v6006
      %v6008 = vpop.f32.mrf.mxu0
      %v6009 = vpop.f32.mrf.mxu0
      %v6010 = vadd.f32 0.0, %v6009
      %v6011 = vpop.f32.mrf.mxu0
      %6012 = vmatprep.mubr.bf16.mxu0 0
      %6013 = vmatmul.mubr.bf16.gmra.mxu0 %v5852
      %v6014 = vpop.f32.mrf.mxu0
      %v6015 = vadd.f32 0.0, %v6014
      %v6016 = vpop.f32.mrf.mxu0
      %v6017 = vpop.f32.mrf.mxu0
      %v6018 = vadd.f32 0.0, %v6017
      %v6019 = vpop.f32.mrf.mxu0
      %6020 = vmatprep.mubr.bf16.mxu0 0
      %6021 = vmatmul.mubr.bf16.gmra.mxu0 %v5855
      %v6022 = vpop.f32.mrf.mxu0
      %v6023 = vadd.f32 0.0, %v6022
      %v6024 = vpop.f32.mrf.mxu0
      %v6025 = vpop.f32.mrf.mxu0
      %v6026 = vadd.f32 0.0, %v6025
      %v6027 = vpop.f32.mrf.mxu0
      %6028 = vmatprep.mubr.bf16.mxu0 0
      %6029 = vmatmul.mubr.bf16.gmra.mxu0 %v5858
      %v6030 = vpop.f32.mrf.mxu0
      %v6031 = vadd.f32 0.0, %v6030
      %v6032 = vpop.f32.mrf.mxu0
      %v6033 = vpop.f32.mrf.mxu0
      %v6034 = vadd.f32 0.0, %v6033
      %v6035 = vpop.f32.mrf.mxu0
      %6036 = vmatprep.mubr.bf16.mxu0 0
      %6037 = vmatmul.mubr.bf16.gmra.mxu0 %v5861
      %v6038 = vpop.f32.mrf.mxu0
      %v6039 = vadd.f32 0.0, %v6038
      %v6040 = vpop.f32.mrf.mxu0
      %v6041 = vpop.f32.mrf.mxu0
      %v6042 = vadd.f32 0.0, %v6041
      %v6043 = vpop.f32.mrf.mxu0
      %6044 = vmatprep.mubr.bf16.mxu0 0
      %6045 = vmatmul.mubr.bf16.gmra.mxu0 %v5864
      %v6046 = vpop.f32.mrf.mxu0
      %v6047 = vadd.f32 0.0, %v6046
      %v6048 = vpop.f32.mrf.mxu0
      %v6049 = vpop.f32.mrf.mxu0
      %v6050 = vadd.f32 0.0, %v6049
      %v6051 = vpop.f32.mrf.mxu0
      %6052 = vmatprep.mubr.bf16.mxu0 0
      %6053 = vmatmul.mubr.bf16.gmra.mxu0 %v5867
      %v6054 = vpop.f32.mrf.mxu0
      %v6055 = vadd.f32 0.0, %v6054
      %v6056 = vpop.f32.mrf.mxu0
      %v6057 = vpop.f32.mrf.mxu0
      %v6058 = vadd.f32 0.0, %v6057
      %v6059 = vpop.f32.mrf.mxu0
      %6060 = vmatprep.mubr.bf16.mxu0 0
      %6061 = vmatmul.mubr.bf16.gmra.mxu0 %v5870
      %v6062 = vpop.f32.mrf.mxu0
      %v6063 = vadd.f32 0.0, %v6062
      %v6064 = vpop.f32.mrf.mxu0
      %v6065 = vpop.f32.mrf.mxu0
      %v6066 = vadd.f32 0.0, %v6065
      %v6067 = vpop.f32.mrf.mxu0
      %6068 = vmatprep.mubr.bf16.mxu0 0
      %6069 = vmatmul.mubr.bf16.gmra.mxu0 %v5873
      %v6070 = vpop.f32.mrf.mxu0
      %v6071 = vadd.f32 0.0, %v6070
      %v6072 = vpop.f32.mrf.mxu0
      %v6073 = vpop.f32.mrf.mxu0
      %v6074 = vadd.f32 0.0, %v6073
      %v6075 = vpop.f32.mrf.mxu0
      %6076 = vmatprep.mubr.bf16.mxu0 0
      %6077 = vmatmul.mubr.bf16.gmra.mxu0 %v5876
      %v6078 = vpop.f32.mrf.mxu0
      %v6079 = vadd.f32 0.0, %v6078
      %v6080 = vpop.f32.mrf.mxu0
      %v6081 = vpop.f32.mrf.mxu0
      %v6082 = vadd.f32 0.0, %v6081
      %v6083 = vpop.f32.mrf.mxu0
      %6084 = vmatprep.mubr.bf16.mxu0 0
      %6085 = vmatmul.mubr.bf16.gmra.mxu0 %v5879
      %v6086 = vpop.f32.mrf.mxu0
      %v6087 = vadd.f32 0.0, %v6086
      %v6088 = vpop.f32.mrf.mxu0
      %v6089 = vpop.f32.mrf.mxu0
      %v6090 = vadd.f32 0.0, %v6089
      %v6091 = vpop.f32.mrf.mxu0
      %6092 = vmatprep.mubr.bf16.mxu0 0
      %6093 = vmatmul.mubr.bf16.gmra.mxu0 %v5882
      %v6094 = vpop.f32.mrf.mxu0
      %v6095 = vadd.f32 0.0, %v6094
      %v6096 = vpop.f32.mrf.mxu0
      %v6097 = vpop.f32.mrf.mxu0
      %v6098 = vadd.f32 0.0, %v6097
      %v6099 = vpop.f32.mrf.mxu0
      %6100 = vmatprep.mubr.bf16.mxu0 0
      %6101 = vmatmul.mubr.bf16.gmra.mxu0 %v5885
      %v6102 = vpop.f32.mrf.mxu0
      %v6103 = vadd.f32 0.0, %v6102
      %v6104 = vpop.f32.mrf.mxu0
      %v6105 = vpop.f32.mrf.mxu0
      %v6106 = vadd.f32 0.0, %v6105
      %v6107 = vpop.f32.mrf.mxu0
      %6108 = vmatprep.mubr.bf16.mxu0 0
      %6109 = vmatmul.mubr.bf16.gmra.mxu0 %v5888
      %v6110 = vpop.f32.mrf.mxu0
      %v6111 = vadd.f32 0.0, %v6110
      %v6112 = vpop.f32.mrf.mxu0
      %v6113 = vpop.f32.mrf.mxu0
      %v6114 = vadd.f32 0.0, %v6113
      %v6115 = vpop.f32.mrf.mxu0
      %6116 = vmatprep.mubr.bf16.mxu0 0
      %6117 = vmatmul.mubr.bf16.gmra.mxu0 %v5891
      %v6118 = vpop.f32.mrf.mxu0
      %v6119 = vadd.f32 0.0, %v6118
      %v6120 = vpop.f32.mrf.mxu0
      %v6121 = vpop.f32.mrf.mxu0
      %v6122 = vadd.f32 0.0, %v6121
      %v6123 = vpop.f32.mrf.mxu0
      %6124 = vmatprep.mubr.bf16.mxu0 0
      %6125 = vmatmul.mubr.bf16.gmra.mxu0 %v5894
      %v6126 = vpop.f32.mrf.mxu0
      %v6127 = vadd.f32 0.0, %v6126
      %v6128 = vpop.f32.mrf.mxu0
      %v6129 = vpop.f32.mrf.mxu0
      %v6130 = vadd.f32 0.0, %v6129
      %v6131 = vpop.f32.mrf.mxu0
      %6132 = vmatprep.mubr.bf16.mxu0 0
      %6133 = vmatmul.mubr.bf16.gmra.mxu0 %v5897
      %v6134 = vpop.f32.mrf.mxu0
      %v6135 = vadd.f32 0.0, %v6134
      %v6136 = vpop.f32.mrf.mxu0
      %v6137 = vpop.f32.mrf.mxu0
      %v6138 = vadd.f32 0.0, %v6137
      %v6139 = vpop.f32.mrf.mxu0
      %6140 = vmatprep.mubr.bf16.mxu0 0
      %6141 = vmatmul.mubr.bf16.gmra.mxu0 %v5900
      %v6142 = vpop.f32.mrf.mxu0
      %v6143 = vadd.f32 0.0, %v6142
      %v6144 = vpop.f32.mrf.mxu0
      %v6145 = vpop.f32.mrf.mxu0
      %v6146 = vadd.f32 0.0, %v6145
      %v6147 = vpop.f32.mrf.mxu0
      %6148 = vmatprep.mubr.bf16.mxu0 0
      %6149 = vmatmul.mubr.bf16.gmra.mxu0 %v5903
      %v6150 = vpop.f32.mrf.mxu0
      %v6151 = vadd.f32 0.0, %v6150
      %v6152 = vpop.f32.mrf.mxu0
      %v6153 = vpop.f32.mrf.mxu0
      %v6154 = vadd.f32 0.0, %v6153
      %v6155 = vpop.f32.mrf.mxu0
      %6156 = vmatprep.mubr.bf16.mxu0 0
      %6157 = vmatmul.mubr.bf16.gmra.mxu0 %v5906
      %v6158 = vpop.f32.mrf.mxu0
      %v6159 = vadd.f32 0.0, %v6158
      %v6160 = vpop.f32.mrf.mxu0
      %v6161 = vpop.f32.mrf.mxu0
      %v6162 = vadd.f32 0.0, %v6161
      %v6163 = vpop.f32.mrf.mxu0
      %6164 = vmatprep.mubr.bf16.mxu0 0
      %6165 = vmatmul.mubr.bf16.gmra.mxu0 %v5909
      %v6166 = vpop.f32.mrf.mxu0
      %v6167 = vadd.f32 0.0, %v6166
      %v6168 = vpop.f32.mrf.mxu0
      %v6169 = vpop.f32.mrf.mxu0
      %v6170 = vadd.f32 0.0, %v6169
      %v6171 = vpop.f32.mrf.mxu0
      %6172 = vmatprep.mubr.bf16.mxu0 0
      %6173 = vmatmul.mubr.bf16.gmra.mxu0 %v5912
      %v6174 = vpop.f32.mrf.mxu0
      %v6175 = vadd.f32 0.0, %v6174
      %v6176 = vpop.f32.mrf.mxu0
      %v6177 = vpop.f32.mrf.mxu0
      %v6178 = vadd.f32 0.0, %v6177
      %v6179 = vpop.f32.mrf.mxu0
      %6180 = vmatprep.mubr.bf16.mxu0 0
      %6181 = vmatmul.mubr.bf16.gmra.mxu0 %v5915
      %v6182 = vpop.f32.mrf.mxu0
      %v6183 = vadd.f32 0.0, %v6182
      %v6184 = vpop.f32.mrf.mxu0
      %v6185 = vpop.f32.mrf.mxu0
      %v6186 = vadd.f32 0.0, %v6185
      %v6187 = vpop.f32.mrf.mxu0
      %6188 = vmatprep.mubr.bf16.mxu0 0
      %6189 = vmatmul.mubr.bf16.gmra.mxu0 %v5918
      %v6190 = vpop.f32.mrf.mxu0
      %v6191 = vadd.f32 0.0, %v6190
      %v6192 = vpop.f32.mrf.mxu0
      %v6193 = vpop.f32.mrf.mxu0
      %v6194 = vadd.f32 0.0, %v6193
      %v6195 = vpop.f32.mrf.mxu0
      %6196 = vmatprep.mubr.bf16.mxu0 0
      %6197 = vmatmul.mubr.bf16.gmra.mxu0 %v5921
      %v6198 = vpop.f32.mrf.mxu0
      %v6199 = vadd.f32 0.0, %v6198
      %v6200 = vpop.f32.mrf.mxu0
      %v6201 = vpop.f32.mrf.mxu0
      %v6202 = vadd.f32 0.0, %v6201
      %v6203 = vpop.f32.mrf.mxu0
      %6204 = vmatprep.mubr.bf16.mxu0 0
      %6205 = vmatmul.mubr.bf16.gmra.mxu0 %v5924
      %v6206 = vpop.f32.mrf.mxu0
      %v6207 = vadd.f32 0.0, %v6206
      %v6208 = vpop.f32.mrf.mxu0
      %v6209 = vpop.f32.mrf.mxu0
      %v6210 = vadd.f32 0.0, %v6209
      %v6211 = vpop.f32.mrf.mxu0
      %6212 = vmatprep.mubr.bf16.mxu0 0
      %6213 = vmatmul.mubr.bf16.gmra.mxu0 %v5927
      %v6214 = vpop.f32.mrf.mxu0
      %v6215 = vadd.f32 0.0, %v6214
      %v6216 = vpop.f32.mrf.mxu0
      %v6217 = vpop.f32.mrf.mxu0
      %v6218 = vadd.f32 0.0, %v6217
      %v6219 = vpop.f32.mrf.mxu0
      %6220 = vdwg.mxu0
      %v6221 = vadd.f32 %v5697, %v5967
      %v6222 = vadd.f32 %v5698, %v5970
      %v6223 = vadd.f32 %v5699, %v5975
      %v6224 = vadd.f32 %v5700, %v5978
      %v6225 = vadd.f32 %v5701, %v5983
      %v6226 = vadd.f32 %v5702, %v5986
      %v6227 = vadd.f32 %v5703, %v5991
      %v6228 = vadd.f32 %v5704, %v5994
      %v6229 = vadd.f32 %v5705, %v5999
      %v6230 = vadd.f32 %v5706, %v6002
      %v6231 = vadd.f32 %v5707, %v6007
      %v6232 = vadd.f32 %v5708, %v6010
      %v6233 = vadd.f32 %v5709, %v6015
      %v6234 = vadd.f32 %v5710, %v6018
      %v6235 = vadd.f32 %v5711, %v6023
      %v6236 = vadd.f32 %v5712, %v6026
      %v6237 = vadd.f32 %v5713, %v6031
      %v6238 = vadd.f32 %v5714, %v6034
      %v6239 = vadd.f32 %v5715, %v6039
      %v6240 = vadd.f32 %v5716, %v6042
      %v6241 = vadd.f32 %v5717, %v6047
      %v6242 = vadd.f32 %v5718, %v6050
      %v6243 = vadd.f32 %v5719, %v6055
      %v6244 = vadd.f32 %v5720, %v6058
      %v6245 = vadd.f32 %v5721, %v6063
      %v6246 = vadd.f32 %v5722, %v6066
      %v6247 = vadd.f32 %v5723, %v6071
      %v6248 = vadd.f32 %v5724, %v6074
      %v6249 = vadd.f32 %v5725, %v6079
      %v6250 = vadd.f32 %v5726, %v6082
      %v6251 = vadd.f32 %v5727, %v6087
      %v6252 = vadd.f32 %v5728, %v6090
      %v6253 = vadd.f32 %v5729, %v6095
      %v6254 = vadd.f32 %v5730, %v6098
      %v6255 = vadd.f32 %v5731, %v6103
      %v6256 = vadd.f32 %v5732, %v6106
      %v6257 = vadd.f32 %v5733, %v6111
      %v6258 = vadd.f32 %v5734, %v6114
      %v6259 = vadd.f32 %v5735, %v6119
      %v6260 = vadd.f32 %v5736, %v6122
      %v6261 = vadd.f32 %v5737, %v6127
      %v6262 = vadd.f32 %v5738, %v6130
      %v6263 = vadd.f32 %v5739, %v6135
      %v6264 = vadd.f32 %v5740, %v6138
      %v6265 = vadd.f32 %v5741, %v6143
      %v6266 = vadd.f32 %v5742, %v6146
      %v6267 = vadd.f32 %v5743, %v6151
      %v6268 = vadd.f32 %v5744, %v6154
      %v6269 = vadd.f32 %v5745, %v6159
      %v6270 = vadd.f32 %v5746, %v6162
      %v6271 = vadd.f32 %v5747, %v6167
      %v6272 = vadd.f32 %v5748, %v6170
      %v6273 = vadd.f32 %v5749, %v6175
      %v6274 = vadd.f32 %v5750, %v6178
      %v6275 = vadd.f32 %v5751, %v6183
      %v6276 = vadd.f32 %v5752, %v6186
      %v6277 = vadd.f32 %v5753, %v6191
      %v6278 = vadd.f32 %v5754, %v6194
      %v6279 = vadd.f32 %v5755, %v6199
      %v6280 = vadd.f32 %v5756, %v6202
      %v6281 = vadd.f32 %v5757, %v6207
      %v6282 = vadd.f32 %v5758, %v6210
      %v6283 = vadd.f32 %v5759, %v6215
      %v6284 = vadd.f32 %v5760, %v6218
      %v6285 = vld [vmem:[%s282] sm:$0x1]
      %v6287 = vlaneseq
      %v6288 = vshrl.u32 %v6287, 7
      %v6289 = vsub.s32 0, %v6288
      %v6290 = vrot.slane %v6285, %v6289
      %v6292 = vadd.f32 %v6221, %v6290
      %v6293 = vadd.f32 %v6222, %v6290
      %v6294 = vadd.f32 %v6223, %v6290
      %v6295 = vadd.f32 %v6224, %v6290
      %v6296 = vadd.f32 %v6225, %v6290
      %v6297 = vadd.f32 %v6226, %v6290
      %v6298 = vadd.f32 %v6227, %v6290
      %v6299 = vadd.f32 %v6228, %v6290
      %v6300 = vadd.f32 %v6229, %v6290
      %v6301 = vadd.f32 %v6230, %v6290
      %v6302 = vadd.f32 %v6231, %v6290
      %v6303 = vadd.f32 %v6232, %v6290
      %v6304 = vadd.f32 %v6233, %v6290
      %v6305 = vadd.f32 %v6234, %v6290
      %v6306 = vadd.f32 %v6235, %v6290
      %v6307 = vadd.f32 %v6236, %v6290
      %v6308 = vadd.f32 %v6237, %v6290
      %v6309 = vadd.f32 %v6238, %v6290
      %v6310 = vadd.f32 %v6239, %v6290
      %v6311 = vadd.f32 %v6240, %v6290
      %v6312 = vadd.f32 %v6241, %v6290
      %v6313 = vadd.f32 %v6242, %v6290
      %v6314 = vadd.f32 %v6243, %v6290
      %v6315 = vadd.f32 %v6244, %v6290
      %v6316 = vadd.f32 %v6245, %v6290
      %v6317 = vadd.f32 %v6246, %v6290
      %v6318 = vadd.f32 %v6247, %v6290
      %v6319 = vadd.f32 %v6248, %v6290
      %v6320 = vadd.f32 %v6249, %v6290
      %v6321 = vadd.f32 %v6250, %v6290
      %v6322 = vadd.f32 %v6251, %v6290
      %v6323 = vadd.f32 %v6252, %v6290
      %v6324 = vadd.f32 %v6253, %v6290
      %v6325 = vadd.f32 %v6254, %v6290
      %v6326 = vadd.f32 %v6255, %v6290
      %v6327 = vadd.f32 %v6256, %v6290
      %v6328 = vadd.f32 %v6257, %v6290
      %v6329 = vadd.f32 %v6258, %v6290
      %v6330 = vadd.f32 %v6259, %v6290
      %v6331 = vadd.f32 %v6260, %v6290
      %v6332 = vadd.f32 %v6261, %v6290
      %v6333 = vadd.f32 %v6262, %v6290
      %v6334 = vadd.f32 %v6263, %v6290
      %v6335 = vadd.f32 %v6264, %v6290
      %v6336 = vadd.f32 %v6265, %v6290
      %v6337 = vadd.f32 %v6266, %v6290
      %v6338 = vadd.f32 %v6267, %v6290
      %v6339 = vadd.f32 %v6268, %v6290
      %v6340 = vadd.f32 %v6269, %v6290
      %v6341 = vadd.f32 %v6270, %v6290
      %v6342 = vadd.f32 %v6271, %v6290
      %v6343 = vadd.f32 %v6272, %v6290
      %v6344 = vadd.f32 %v6273, %v6290
      %v6345 = vadd.f32 %v6274, %v6290
      %v6346 = vadd.f32 %v6275, %v6290
      %v6347 = vadd.f32 %v6276, %v6290
      %v6348 = vadd.f32 %v6277, %v6290
      %v6349 = vadd.f32 %v6278, %v6290
      %v6350 = vadd.f32 %v6279, %v6290
      %v6351 = vadd.f32 %v6280, %v6290
      %v6352 = vadd.f32 %v6281, %v6290
      %v6353 = vadd.f32 %v6282, %v6290
      %v6354 = vadd.f32 %v6283, %v6290
      %v6355 = vadd.f32 %v6284, %v6290
      %v6356 = vmax.f32 %v6292, 0.0
      %v6357 = vmax.f32 %v6293, 0.0
      %v6358 = vmax.f32 %v6294, 0.0
      %v6359 = vmax.f32 %v6295, 0.0
      %v6360 = vmax.f32 %v6296, 0.0
      %v6361 = vmax.f32 %v6297, 0.0
      %v6362 = vmax.f32 %v6298, 0.0
      %v6363 = vmax.f32 %v6299, 0.0
      %v6364 = vmax.f32 %v6300, 0.0
      %v6365 = vmax.f32 %v6301, 0.0
      %v6366 = vmax.f32 %v6302, 0.0
      %v6367 = vmax.f32 %v6303, 0.0
      %v6368 = vmax.f32 %v6304, 0.0
      %v6369 = vmax.f32 %v6305, 0.0
      %v6370 = vmax.f32 %v6306, 0.0
      %v6371 = vmax.f32 %v6307, 0.0
      %v6372 = vmax.f32 %v6308, 0.0
      %v6373 = vmax.f32 %v6309, 0.0
      %v6374 = vmax.f32 %v6310, 0.0
      %v6375 = vmax.f32 %v6311, 0.0
      %v6376 = vmax.f32 %v6312, 0.0
      %v6377 = vmax.f32 %v6313, 0.0
      %v6378 = vmax.f32 %v6314, 0.0
      %v6379 = vmax.f32 %v6315, 0.0
      %v6380 = vmax.f32 %v6316, 0.0
      %v6381 = vmax.f32 %v6317, 0.0
      %v6382 = vmax.f32 %v6318, 0.0
      %v6383 = vmax.f32 %v6319, 0.0
      %v6384 = vmax.f32 %v6320, 0.0
      %v6385 = vmax.f32 %v6321, 0.0
      %v6386 = vmax.f32 %v6322, 0.0
      %v6387 = vmax.f32 %v6323, 0.0
      %v6388 = vmax.f32 %v6324, 0.0
      %v6389 = vmax.f32 %v6325, 0.0
      %v6390 = vmax.f32 %v6326, 0.0
      %v6391 = vmax.f32 %v6327, 0.0
      %v6392 = vmax.f32 %v6328, 0.0
      %v6393 = vmax.f32 %v6329, 0.0
      %v6394 = vmax.f32 %v6330, 0.0
      %v6395 = vmax.f32 %v6331, 0.0
      %v6396 = vmax.f32 %v6332, 0.0
      %v6397 = vmax.f32 %v6333, 0.0
      %v6398 = vmax.f32 %v6334, 0.0
      %v6399 = vmax.f32 %v6335, 0.0
      %v6400 = vmax.f32 %v6336, 0.0
      %v6401 = vmax.f32 %v6337, 0.0
      %v6402 = vmax.f32 %v6338, 0.0
      %v6403 = vmax.f32 %v6339, 0.0
      %v6404 = vmax.f32 %v6340, 0.0
      %v6405 = vmax.f32 %v6341, 0.0
      %v6406 = vmax.f32 %v6342, 0.0
      %v6407 = vmax.f32 %v6343, 0.0
      %v6408 = vmax.f32 %v6344, 0.0
      %v6409 = vmax.f32 %v6345, 0.0
      %v6410 = vmax.f32 %v6346, 0.0
      %v6411 = vmax.f32 %v6347, 0.0
      %v6412 = vmax.f32 %v6348, 0.0
      %v6413 = vmax.f32 %v6349, 0.0
      %v6414 = vmax.f32 %v6350, 0.0
      %v6415 = vmax.f32 %v6351, 0.0
      %v6416 = vmax.f32 %v6352, 0.0
      %v6417 = vmax.f32 %v6353, 0.0
      %v6418 = vmax.f32 %v6354, 0.0
      %v6419 = vmax.f32 %v6355, 0.0
      %6420 = vst [vmem:[%s290] sm:$0xff] %v6356
      %6421 = vst [vmem:[%s290 + $0x8] sm:$0xff] %v6357
      %6422 = vst [vmem:[%s290 + $0x10] sm:$0xff] %v6358
      %6423 = vst [vmem:[%s290 + $0x18] sm:$0xff] %v6359
      %6424 = vst [vmem:[%s290 + $0x20] sm:$0xff] %v6360
      %6425 = vst [vmem:[%s290 + $0x28] sm:$0xff] %v6361
      %6426 = vst [vmem:[%s290 + $0x30] sm:$0xff] %v6362
      %6427 = vst [vmem:[%s290 + $0x38] sm:$0xff] %v6363
      %6428 = vst [vmem:[%s290 + $0x40] sm:$0xff] %v6364
      %6429 = vst [vmem:[%s290 + $0x48] sm:$0xff] %v6365
      %6430 = vst [vmem:[%s290 + $0x50] sm:$0xff] %v6366
      %6431 = vst [vmem:[%s290 + $0x58] sm:$0xff] %v6367
      %6432 = vst [vmem:[%s290 + $0x60] sm:$0xff] %v6368
      %6433 = vst [vmem:[%s290 + $0x68] sm:$0xff] %v6369
      %6434 = vst [vmem:[%s290 + $0x70] sm:$0xff] %v6370
      %6435 = vst [vmem:[%s290 + $0x78] sm:$0xff] %v6371
      %6436 = vst [vmem:[%s290 + $0x80] sm:$0xff] %v6372
      %6437 = vst [vmem:[%s290 + $0x88] sm:$0xff] %v6373
      %6438 = vst [vmem:[%s290 + $0x90] sm:$0xff] %v6374
      %6439 = vst [vmem:[%s290 + $0x98] sm:$0xff] %v6375
      %6440 = vst [vmem:[%s290 + $0xa0] sm:$0xff] %v6376
      %6441 = vst [vmem:[%s290 + $0xa8] sm:$0xff] %v6377
      %6442 = vst [vmem:[%s290 + $0xb0] sm:$0xff] %v6378
      %6443 = vst [vmem:[%s290 + $0xb8] sm:$0xff] %v6379
      %6444 = vst [vmem:[%s290 + $0xc0] sm:$0xff] %v6380
      %6445 = vst [vmem:[%s290 + $0xc8] sm:$0xff] %v6381
      %6446 = vst [vmem:[%s290 + $0xd0] sm:$0xff] %v6382
      %6447 = vst [vmem:[%s290 + $0xd8] sm:$0xff] %v6383
      %6448 = vst [vmem:[%s290 + $0xe0] sm:$0xff] %v6384
      %6449 = vst [vmem:[%s290 + $0xe8] sm:$0xff] %v6385
      %6450 = vst [vmem:[%s290 + $0xf0] sm:$0xff] %v6386
      %6451 = vst [vmem:[%s290 + $0xf8] sm:$0xff] %v6387
      %6452 = vst [vmem:[%s290 + $0x100] sm:$0xff] %v6388
      %6453 = vst [vmem:[%s290 + $0x108] sm:$0xff] %v6389
      %6454 = vst [vmem:[%s290 + $0x110] sm:$0xff] %v6390
      %6455 = vst [vmem:[%s290 + $0x118] sm:$0xff] %v6391
      %6456 = vst [vmem:[%s290 + $0x120] sm:$0xff] %v6392
      %6457 = vst [vmem:[%s290 + $0x128] sm:$0xff] %v6393
      %6458 = vst [vmem:[%s290 + $0x130] sm:$0xff] %v6394
      %6459 = vst [vmem:[%s290 + $0x138] sm:$0xff] %v6395
      %6460 = vst [vmem:[%s290 + $0x140] sm:$0xff] %v6396
      %6461 = vst [vmem:[%s290 + $0x148] sm:$0xff] %v6397
      %6462 = vst [vmem:[%s290 + $0x150] sm:$0xff] %v6398
      %6463 = vst [vmem:[%s290 + $0x158] sm:$0xff] %v6399
      %6464 = vst [vmem:[%s290 + $0x160] sm:$0xff] %v6400
      %6465 = vst [vmem:[%s290 + $0x168] sm:$0xff] %v6401
      %6466 = vst [vmem:[%s290 + $0x170] sm:$0xff] %v6402
      %6467 = vst [vmem:[%s290 + $0x178] sm:$0xff] %v6403
      %6468 = vst [vmem:[%s290 + $0x180] sm:$0xff] %v6404
      %6469 = vst [vmem:[%s290 + $0x188] sm:$0xff] %v6405
      %6470 = vst [vmem:[%s290 + $0x190] sm:$0xff] %v6406
      %6471 = vst [vmem:[%s290 + $0x198] sm:$0xff] %v6407
      %6472 = vst [vmem:[%s290 + $0x1a0] sm:$0xff] %v6408
      %6473 = vst [vmem:[%s290 + $0x1a8] sm:$0xff] %v6409
      %6474 = vst [vmem:[%s290 + $0x1b0] sm:$0xff] %v6410
      %6475 = vst [vmem:[%s290 + $0x1b8] sm:$0xff] %v6411
      %6476 = vst [vmem:[%s290 + $0x1c0] sm:$0xff] %v6412
      %6477 = vst [vmem:[%s290 + $0x1c8] sm:$0xff] %v6413
      %6478 = vst [vmem:[%s290 + $0x1d0] sm:$0xff] %v6414
      %6479 = vst [vmem:[%s290 + $0x1d8] sm:$0xff] %v6415
      %6480 = vst [vmem:[%s290 + $0x1e0] sm:$0xff] %v6416
      %6481 = vst [vmem:[%s290 + $0x1e8] sm:$0xff] %v6417
      %6482 = vst [vmem:[%s290 + $0x1f0] sm:$0xff] %v6418
      %6483 = vst [vmem:[%s290 + $0x1f8] sm:$0xff] %v6419
      %s6484 = smul.u32 64, %s19
      %p6485 = scmp.lt.s32.totalorder %s6484, 127
      %s6486 = scalar_select %p6485, %s6484, 127
      %p6487 = scmp.lt.s32.totalorder %s20, 0
      %s6488 = scalar_select %p6487, %s20, 0
      %s6489 = sadd.s32 %s6488, %s6486
      %s6490 = smul.addr %s6489, 8
      %s6491 = scalar_lea.vmem %s4, %s6490
      // Predicated region
      $region37: #{repvgg_block_forward.1} parent=35 // pred_check
        %p6492 = pneg %p151
      $region38: #{repvgg_block_forward.1} parent=35 // pred_check_branch
        %6494 = sbr.rel (%p6492) target = $region40
      $region39: #{repvgg_block_forward.1} parent=35 // pred_region
        %s6495 = smul.u32 64, %s19
      $region40: #{repvgg_block_forward.1} parent=35 // pred_fallthru
        _
    $region36: #{repvgg_block_forward.1} parent=5 // pred_fallthru
      _
    %p6496 = scmp.le.s32.totalorder 2, %s10
    // Predicated region
    $region41: #{repvgg_block_forward.1} parent=5 // pred_check
      %p6497 = pneg %p6496
    $region42: #{repvgg_block_forward.1} parent=5 // pred_check_branch
      %6499 = sbr.rel (%p6497) target = $region44
    $region43: #{repvgg_block_forward.1} parent=5 // pred_region
      %s6500 = ssub.s32 %s10, 2
      // Predicated region
      $region45: #{repvgg_block_forward.1} parent=43 // pred_check
        %p6501 = pneg %p157
      $region46: #{repvgg_block_forward.1} parent=43 // pred_check_branch
        %6503 = sbr.rel (%p6501) target = $region48
      $region47: #{repvgg_block_forward.1} parent=43 // pred_region
        %s6504 = smul.u32 64, %s21
        %p6505 = scmp.lt.s32.totalorder %s6504, 127
        %s6506 = scalar_select %p6505, %s6504, 127
        %p6507 = scmp.lt.s32.totalorder %s22, 0
        %s6508 = scalar_select %p6507, %s22, 0
        %s6509 = sadd.s32 %s6508, %s6506
        %s6510 = smul.addr %s6509, 8
        %s6511 = scalar_lea.vmem %s4, %s6510
      $region48: #{repvgg_block_forward.1} parent=43 // pred_fallthru
        _
    $region44: #{repvgg_block_forward.1} parent=5 // pred_fallthru
      _
  $region6: #{repvgg_block_forward.1} parent=0 // loop_footer
    %s14 = sadd.s32 1, %s10
  $region7: #{repvgg_block_forward.1} parent=0 // loop_footer_branch
    %9 = sbr.rel target = $region3
  $region8: #{repvgg_block_forward.1} parent=0 // loop_exit
    _

</llo_original>
